<compile_context>
chip_gen: v7x
topology: tpu7x:2x2x1
jax: 0.10.0
libtpu: 0.0.40
codegen_flags: <defaults>
</compile_context>

<pallas_src>
import math

import jax
import jax.numpy as jnp
from jax import lax
from jax.experimental import pallas as pl
from jax.experimental.pallas import tpu as pltpu

BN_EPS = 1e-5
COL_EPS = 1e-9

_VMEM_CAP = None


# ---------------------------------------------------------------------------
# small helpers
# ---------------------------------------------------------------------------
def _vmem_cap_bytes():
    """Physical VMEM per TensorCore (generation-aware; conservative fallback)."""
    global _VMEM_CAP
    if _VMEM_CAP is None:
        cap = None
        try:
            cap = getattr(pltpu.get_tpu_info(), "vmem_capacity_bytes", None)
        except Exception:
            cap = None
        _VMEM_CAP = int(cap) if cap else (64 << 20)   # assume v7x-like if unknown
    return _VMEM_CAP


def _pick_tile(n, cap):
    """Largest multiple of 128 that divides n and is <= cap (requires n % 128 == 0)."""
    for t in range(min(max(cap, 128), n), 127, -128):
        if n % t == 0:
            return t
    return n


def _choose_tn(n):
    """Elementwise / conv tile along N: bigger on 128 MiB parts, 512 on v7x."""
    return _pick_tile(n, 1024 if _vmem_cap_bytes() >= (96 << 20) else 512)


def _choose_tq(c, n):
    """Query-tile for the fused SA kernel sized so the per-step working set
    (~3x (tq, N) f32 softmax temps) plus full-tensor residents fit the budget."""
    cap = _vmem_cap_bytes()
    fixed = c * n * (4 + 4 + 4 + 2) + (c // 4) * n * 2 + (8 << 20)  # x, num, epilogue, t, k
    budget = int(cap * 0.6) - fixed
    per_col = n * 4 * 3 + c * 4 * 3
    cap_tq = budget // max(per_col, 1)
    cap_tq = int(min(max(cap_tq, 128), n, 1024))
    return _pick_tile(n, cap_tq)


def _vmem_limit(blocks, working=()):
    """Scoped-VMEM request: double-buffered blocks + ~3x live working temps + margin,
    clamped with headroom below the generation's physical VMEM."""
    total = 0
    for shape, dtype in blocks:
        total += 2 * math.prod(shape) * jnp.dtype(dtype).itemsize
    for shape, dtype in working:
        total += 3 * math.prod(shape) * jnp.dtype(dtype).itemsize
    total += 4 << 20
    cap = _vmem_cap_bytes()
    return int(min(max(total, 32 << 20), int(cap * 0.7)))


def _combine_bn(pmean, pm2, count, gamma, beta):
    """Combine equal-size per-part (mean, centered M2) stats (Chan's formula) and fold
    the training-mode BatchNorm into per-channel scale/shift, both shaped (C, 1).
    `pmean`/`pm2` have shape (parts..., C, 1); each part covers `count` samples."""
    parts = pmean.shape[:-2]
    n_parts = math.prod(parts) if parts else 1
    total = n_parts * count
    axes = tuple(range(len(parts)))
    mean = jnp.mean(pmean, axis=axes)                                       # (C, 1)
    m2 = jnp.sum(pm2, axis=axes) + count * jnp.sum((pmean - mean) ** 2, axis=axes)
    var = m2 / total                                                        # biased (training BN)
    inv = lax.rsqrt(var + BN_EPS)
    scale = gamma.reshape(-1, 1) * inv
    shift = beta.reshape(-1, 1) - mean * scale
    return scale, shift


# ---------------------------------------------------------------------------
# kernels
# ---------------------------------------------------------------------------
def conv1_kernel(x_ref, w_ref, t_ref, pmean_ref, pm2_ref):
    """t1 = W1 @ x_tile (bf16 MXU, f32 acc), stored bf16, plus per-tile BN stats."""
    x = x_ref[...].astype(jnp.bfloat16)                                     # (C, tn)
    t = jnp.dot(w_ref[...], x, preferred_element_type=jnp.float32)         # (C, tn) f32
    t_ref[...] = t.astype(t_ref.dtype)
    mean = jnp.sum(t, axis=-1, keepdims=True) * (1.0 / t.shape[-1])
    d = t - mean
    pmean_ref[...] = mean
    pm2_ref[...] = jnp.sum(d * d, axis=-1, keepdims=True)


def conv2_fused_kernel(t1_ref, scale_ref, shift_ref, w_ref, t_ref, pmean_ref, pm2_ref):
    """Fused BN1+ReLU prologue (y1 never hits HBM) then t2 = W2 @ y1 + BN2 stats."""
    y1 = jnp.maximum(t1_ref[...].astype(jnp.float32) * scale_ref[...] + shift_ref[...], 0.0)
    t = jnp.dot(w_ref[...], y1.astype(jnp.bfloat16), preferred_element_type=jnp.float32)
    t_ref[...] = t.astype(t_ref.dtype)
    mean = jnp.sum(t, axis=-1, keepdims=True) * (1.0 / t.shape[-1])
    d = t - mean
    pmean_ref[...] = mean
    pm2_ref[...] = jnp.sum(d * d, axis=-1, keepdims=True)


def sa_fused_kernel(x_ref, xq_ref, wq_ref, wv_ref, bv_ref, wt_ref, bt_ref,
                    t_ref, pmean_ref, pm2_ref,
                    k_sc, num_sc, cs_sc):
    """Streamed offset-attention fused with the trans-conv epilogue.

    Grid = (B, query_tiles).  Per step: accumulate num[c,j] += sum_i v[c,i]*att[i,j]
    and colsum[j] += sum_i att[i,j] in VMEM scratch.  On the last step compute
    x_r = num / (1e-9 + colsum), t = Wt (x - x_r) + bt and its BN stats, and emit
    them as the only HBM outputs (num/colsum never leave VMEM)."""
    i = pl.program_id(1)
    nq = pl.num_programs(1)

    @pl.when(i == 0)
    def _():
        num_sc[...] = jnp.zeros_like(num_sc)
        cs_sc[...] = jnp.zeros_like(cs_sc)
        # Shared q/k projection over the full sequence, computed once per batch.
        k_sc[...] = jnp.dot(wq_ref[...], x_ref[...].astype(jnp.bfloat16),
                            preferred_element_type=jnp.float32).astype(jnp.bfloat16)

    xq = xq_ref[...].astype(jnp.bfloat16)                                   # (C, tq)
    q = jnp.dot(wq_ref[...], xq,
                preferred_element_type=jnp.float32).astype(jnp.bfloat16)    # (C4, tq)
    energy = lax.dot_general(q, k_sc[...], (((0,), (0,)), ((), ())),
                             preferred_element_type=jnp.float32)            # (tq, N)

    # Row softmax (torch dim=-1), exact divide on the reduced (tq, 1) vector.
    rmax = jnp.max(energy, axis=-1, keepdims=True)
    p = jnp.exp(energy - rmax)
    rsum = jnp.sum(p, axis=-1, keepdims=True)
    att = p * (1.0 / rsum)                                                  # (tq, N) f32

    v = jnp.dot(wv_ref[...], xq, preferred_element_type=jnp.float32) + bv_ref[...]  # (C, tq)
    num_sc[...] += jnp.dot(v.astype(jnp.bfloat16), att.astype(jnp.bfloat16),
                           preferred_element_type=jnp.float32)              # (C, N)
    cs_sc[...] += jnp.sum(att, axis=0, keepdims=True)                       # (1, N)

    @pl.when(i == nq - 1)
    def _():
        inv_col = 1.0 / (COL_EPS + cs_sc[...])                              # (1, N), exact
        xr = num_sc[...] * inv_col                                          # (C, N)
        d = (x_ref[...] - xr).astype(jnp.bfloat16)                          # x stays f32
        t = jnp.dot(wt_ref[...], d, preferred_element_type=jnp.float32) + bt_ref[...]
        t_ref[...] = t.astype(t_ref.dtype)                                  # bf16 to HBM
        mean = jnp.sum(t, axis=-1, keepdims=True) * (1.0 / t.shape[-1])
        dd = t - mean
        pmean_ref[...] = mean
        pm2_ref[...] = jnp.sum(dd * dd, axis=-1, keepdims=True)


def bn_act_kernel(t_ref, scale_ref, shift_ref, o_ref):
    t = t_ref[...].astype(jnp.float32)
    o_ref[...] = jnp.maximum(t * scale_ref[...] + shift_ref[...], 0.0)


def bn_act_res_kernel(t_ref, res_ref, scale_ref, shift_ref, o_ref):
    t = t_ref[...].astype(jnp.float32)
    o_ref[...] = res_ref[...] + jnp.maximum(t * scale_ref[...] + shift_ref[...], 0.0)


# ---------------------------------------------------------------------------
# pallas_call wrappers
# ---------------------------------------------------------------------------
def _conv1_call(x, w_bf, tn):
    B, C, N = x.shape
    nt = N // tn
    vmem = _vmem_limit(
        [((C, tn), jnp.float32), ((C, C), jnp.bfloat16),
         ((C, tn), jnp.bfloat16), ((C, 1), jnp.float32), ((C, 1), jnp.float32)],
        working=[((C, tn), jnp.float32)])
    return pl.pallas_call(
        conv1_kernel,
        grid=(B, nt),
        in_specs=[
            pl.BlockSpec((None, C, tn), lambda b, i: (b, 0, i)),
            pl.BlockSpec((C, C), lambda b, i: (0, 0)),
        ],
        out_specs=(
            pl.BlockSpec((None, C, tn), lambda b, i: (b, 0, i)),
            pl.BlockSpec((None, None, C, 1), lambda b, i: (b, i, 0, 0)),
            pl.BlockSpec((None, None, C, 1), lambda b, i: (b, i, 0, 0)),
        ),
        out_shape=(
            jax.ShapeDtypeStruct((B, C, N), jnp.bfloat16),
            jax.ShapeDtypeStruct((B, nt, C, 1), jnp.float32),
            jax.ShapeDtypeStruct((B, nt, C, 1), jnp.float32),
        ),
        compiler_params=pltpu.CompilerParams(
            dimension_semantics=("parallel", "parallel"), vmem_limit_bytes=vmem),
    )(x, w_bf)


def _conv2_call(t1, scale1, shift1, w_bf, tn):
    B, C, N = t1.shape
    nt = N // tn
    vmem = _vmem_limit(
        [((C, tn), jnp.bfloat16), ((C, 1), jnp.float32), ((C, 1), jnp.float32),
         ((C, C), jnp.bfloat16),
         ((C, tn), jnp.bfloat16), ((C, 1), jnp.float32), ((C, 1), jnp.float32)],
        working=[((C, tn), jnp.float32)])
    return pl.pallas_call(
        conv2_fused_kernel,
        grid=(B, nt),
        in_specs=[
            pl.BlockSpec((None, C, tn), lambda b, i: (b, 0, i)),
            pl.BlockSpec((C, 1), lambda b, i: (0, 0)),
            pl.BlockSpec((C, 1), lambda b, i: (0, 0)),
            pl.BlockSpec((C, C), lambda b, i: (0, 0)),
        ],
        out_specs=(
            pl.BlockSpec((None, C, tn), lambda b, i: (b, 0, i)),
            pl.BlockSpec((None, None, C, 1), lambda b, i: (b, i, 0, 0)),
            pl.BlockSpec((None, None, C, 1), lambda b, i: (b, i, 0, 0)),
        ),
        out_shape=(
            jax.ShapeDtypeStruct((B, C, N), jnp.bfloat16),
            jax.ShapeDtypeStruct((B, nt, C, 1), jnp.float32),
            jax.ShapeDtypeStruct((B, nt, C, 1), jnp.float32),
        ),
        compiler_params=pltpu.CompilerParams(
            dimension_semantics=("parallel", "parallel"), vmem_limit_bytes=vmem),
    )(t1, scale1, shift1, w_bf)


def _sa_fused_call(x, wq_bf, wv_bf, bv, wt_bf, bt, tq):
    B, C, N = x.shape
    C4 = wq_bf.shape[0]
    nq = N // tq
    vmem = _vmem_limit(
        blocks=[((C, N), jnp.float32),                                   # full x per batch
                ((C, tq), jnp.float32),                                  # streamed query tile
                ((C4, C), jnp.bfloat16), ((C, C), jnp.bfloat16), ((C, C), jnp.bfloat16),
                ((C, 1), jnp.float32), ((C, 1), jnp.float32),
                ((C, N), jnp.bfloat16),                                  # t output
                ((C, 1), jnp.float32), ((C, 1), jnp.float32),
                ((C4, N), jnp.bfloat16), ((C, N), jnp.float32), ((8, N), jnp.float32)],
        working=[((tq, N), jnp.float32), ((C, N), jnp.float32)])
    return pl.pallas_call(
        sa_fused_kernel,
        grid=(B, nq),
        in_specs=[
            pl.BlockSpec((None, C, N), lambda b, i: (b, 0, 0)),   # full x (keys + trans epilogue)
            pl.BlockSpec((None, C, tq), lambda b, i: (b, 0, i)),  # streamed query columns
            pl.BlockSpec((C4, C), lambda b, i: (0, 0)),           # Wq (= Wk, shared)
            pl.BlockSpec((C, C), lambda b, i: (0, 0)),            # Wv
            pl.BlockSpec((C, 1), lambda b, i: (0, 0)),            # bv
            pl.BlockSpec((C, C), lambda b, i: (0, 0)),            # Wt
            pl.BlockSpec((C, 1), lambda b, i: (0, 0)),            # bt
        ],
        out_specs=(
            pl.BlockSpec((None, C, N), lambda b, i: (b, 0, 0)),   # t = Wt(x - x_r) + bt (bf16)
            pl.BlockSpec((None, C, 1), lambda b, i: (b, 0, 0)),   # per-batch BN mean
            pl.BlockSpec((None, C, 1), lambda b, i: (b, 0, 0)),   # per-batch BN centered M2
        ),
        out_shape=(
            jax.ShapeDtypeStruct((B, C, N), jnp.bfloat16),
            jax.ShapeDtypeStruct((B, C, 1), jnp.float32),
            jax.ShapeDtypeStruct((B, C, 1), jnp.float32),
        ),
        scratch_shapes=[
            pltpu.VMEM((C4, N), jnp.bfloat16),    # k = Wq x, cached per batch
            pltpu.VMEM((C, N), jnp.float32),      # numerator accumulator
            pltpu.VMEM((1, N), jnp.float32),      # attention column sums
        ],
        compiler_params=pltpu.CompilerParams(
            dimension_semantics=("parallel", "arbitrary"), vmem_limit_bytes=vmem),
    )(x, x, wq_bf, wv_bf, bv, wt_bf, bt)


def _bn_act_call(t, scale, shift, tn, residual=None):
    B, C, N = t.shape
    nt = N // tn
    blk = pl.BlockSpec((None, C, tn), lambda b, i: (b, 0, i))
    par = pl.BlockSpec((C, 1), lambda b, i: (0, 0))
    if residual is None:
        kernel, in_specs, args = bn_act_kernel, [blk, par, par], (t, scale, shift)
        big = [((C, tn), jnp.bfloat16), ((C, tn), jnp.float32)]
    else:
        kernel, in_specs, args = (bn_act_res_kernel, [blk, blk, par, par],
                                  (t, residual, scale, shift))
        big = [((C, tn), jnp.bfloat16), ((C, tn), jnp.float32), ((C, tn), jnp.float32)]
    vmem = _vmem_limit(big + [((C, 1), jnp.float32)] * 2,
                       working=[((C, tn), jnp.float32)])
    return pl.pallas_call(
        kernel,
        grid=(B, nt),
        in_specs=in_specs,
        out_specs=blk,
        out_shape=jax.ShapeDtypeStruct((B, C, N), jnp.float32),
        compiler_params=pltpu.CompilerParams(
            dimension_semantics=("parallel", "parallel"), vmem_limit_bytes=vmem),
    )(*args)


# ---------------------------------------------------------------------------
# module forward
# ---------------------------------------------------------------------------
def sa_layer(x, params, tn):
    """One SA_Layer; x: (B, C, N) f32 (residual chain kept in f32)."""
    wq, wv, bv, wt, bt, gamma, beta = params
    B, C, N = x.shape
    tq = _choose_tq(C, N)
    t, pmean, pm2 = _sa_fused_call(
        x, wq.astype(jnp.bfloat16), wv.astype(jnp.bfloat16), bv.reshape(C, 1),
        wt.astype(jnp.bfloat16), bt.reshape(C, 1), tq)
    scale, shift = _combine_bn(pmean, pm2, N, gamma, beta)
    return _bn_act_call(t, scale, shift, tn, residual=x)      # x + relu(BN(Wt(x - x_r) + bt))


def point_transformer_last(x, params):
    """x: (B, C, N) f32  ->  (B, 4C, N) f32 (cat of the four SA outputs)."""
    B, C, N = x.shape
    assert N % 128 == 0 and C % 8 == 0, "need lane-aligned N and sublane-friendly C"
    w1, (g1, b1), w2, (g2, b2), sa_params = params
    tn = _choose_tn(N)

    # conv1 (BN1 stats) -> conv2 with fused BN1+ReLU prologue (BN2 stats) -> BN2+ReLU
    t1, pm, pq = _conv1_call(x, w1.astype(jnp.bfloat16), tn)
    s1, sh1 = _combine_bn(pm, pq, tn, g1, b1)
    t2, pm, pq = _conv2_call(t1, s1, sh1, w2.astype(jnp.bfloat16), tn)
    s2, sh2 = _combine_bn(pm, pq, tn, g2, b2)
    y = _bn_act_call(t2, s2, sh2, tn)

    outs = []
    for p in sa_params:
        y = sa_layer(y, p, tn)
        outs.append(y)
    return jnp.concatenate(outs, axis=1)
    # TODO(synk): BatchNorm1d running_mean/running_var momentum updates (training-state
    # side effects) are not reproduced; only the forward pass with batch stats is.


# ---------------------------------------------------------------------------
# demo / smoke test
# ---------------------------------------------------------------------------
if __name__ == "__main__":
    B, C, N = 2, 64, 128       # small, TPU-friendly: C % 8 == 0, N multiple of 128
    C4 = C // 4

    keys = iter(jax.random.split(jax.random.PRNGKey(0), 32))
    x = jax.random.normal(next(keys), (B, C, N), jnp.float32)

    w1 = 0.1 * jax.random.normal(next(keys), (C, C), jnp.float32)   # conv1 (no bias)
    w2 = 0.1 * jax.random.normal(next(keys), (C, C), jnp.float32)   # conv2 (no bias)
    bn1 = (jnp.ones((C,), jnp.float32), jnp.zeros((C,), jnp.float32))
    bn2 = (jnp.ones((C,), jnp.float32), jnp.zeros((C,), jnp.float32))

    def make_sa_params():
        wq = 0.1 * jax.random.normal(next(keys), (C4, C), jnp.float32)  # shared q/k, no bias
        wv = 0.1 * jax.random.normal(next(keys), (C, C), jnp.float32)
        bv = 0.1 * jax.random.normal(next(keys), (C,), jnp.float32)
        wt = 0.1 * jax.random.normal(next(keys), (C, C), jnp.float32)
        bt = 0.1 * jax.random.normal(next(keys), (C,), jnp.float32)
        gamma = jnp.ones((C,), jnp.float32)
        beta = jnp.zeros((C,), jnp.float32)
        return (wq, wv, bv, wt, bt, gamma, beta)

    sa_params = tuple(make_sa_params() for _ in range(4))

    fwd = jax.jit(point_transformer_last)
    out = fwd(x, (w1, bn1, w2, bn2, sa_params))
    jax.block_until_ready(out)

    assert out.shape == (B, 4 * C, N) and out.dtype == jnp.float32
    assert bool(jnp.all(jnp.isfinite(out)))
    print("KERNEL_OK")
</pallas_src>

<mosaic_0001>
module attributes {stable_mosaic.version = 11 : i64} {
  func.func @conv1_kernel(%arg0: i32, %arg1: i32, %arg2: memref<1x64x128xf32, #tpu.memory_space<vmem>>, %arg3: memref<64x64xbf16, #tpu.memory_space<vmem>>, %arg4: memref<1x64x128xbf16, #tpu.memory_space<vmem>>, %arg5: memref<1x1x64x1xf32, #tpu.memory_space<vmem>>, %arg6: memref<1x1x64x1xf32, #tpu.memory_space<vmem>>) attributes {dimension_semantics = [#tpu.dimension_semantics<parallel>, #tpu.dimension_semantics<parallel>], iteration_bounds = array<i64: 2, 1>, scalar_prefetch = 0 : i64, scratch_operands = 0 : i64, tpu.core_type = #tpu.core_type<tc>, window_params = [{transform_indices = @transform_0, window_bounds = array<i64: 1, 64, 128>}, {pipeline_mode = #tpu.pipeline_mode<synchronous>, transform_indices = @transform_1, window_bounds = array<i64: 64, 64>}, {transform_indices = @transform_2, window_bounds = array<i64: 1, 64, 128>}, {transform_indices = @transform_3, window_bounds = array<i64: 1, 1, 64, 1>}, {transform_indices = @transform_4, window_bounds = array<i64: 1, 1, 64, 1>}]} {
    %c0 = arith.constant 0 : index
    %c0_0 = arith.constant 0 : index
    %c0_1 = arith.constant 0 : index
    %0 = vector.load %arg2[%c0, %c0_0, %c0_1] : memref<1x64x128xf32, #tpu.memory_space<vmem>>, vector<1x64x128xf32>
    %1 = vector.shape_cast %0 : vector<1x64x128xf32> to vector<64x128xf32>
    %2 = arith.truncf %1 : vector<64x128xf32> to vector<64x128xbf16>
    %c0_2 = arith.constant 0 : index
    %c0_3 = arith.constant 0 : index
    %3 = vector.load %arg3[%c0_2, %c0_3] : memref<64x64xbf16, #tpu.memory_space<vmem>>, vector<64x64xbf16>
    %cst = arith.constant dense<0.000000e+00> : vector<64x128xf32>
    %4 = tpu.matmul %3, %2, %cst {dimension_numbers = #tpu.dot_dimension_numbers<[1], [0], [0], [1], [0, 0, 1, 1], [], []>} : vector<64x64xbf16>, vector<64x128xbf16>, vector<64x128xf32> -> vector<64x128xf32>
    %5 = arith.truncf %4 : vector<64x128xf32> to vector<64x128xbf16>
    %c0_4 = arith.constant 0 : index
    %c0_5 = arith.constant 0 : index
    %c0_6 = arith.constant 0 : index
    %6 = vector.load %arg4[%c0_4, %c0_5, %c0_6] : memref<1x64x128xbf16, #tpu.memory_space<vmem>>, vector<1x64x128xbf16>
    %7 = vector.shape_cast %6 : vector<1x64x128xbf16> to vector<64x128xbf16>
    %8 = vector.shape_cast %5 : vector<64x128xbf16> to vector<1x64x128xbf16>
    tpu.vector_store %arg4[%c0_4, %c0_5, %c0_6], %8 {strides = array<i32>} : memref<1x64x128xbf16, #tpu.memory_space<vmem>>, vector<1x64x128xbf16>,
    %cst_7 = arith.constant dense<0.000000e+00> : vector<64xf32>
    %9 = vector.multi_reduction <add>, %4, %cst_7 [1] : vector<64x128xf32> to vector<64xf32>
    %10 = vector.shape_cast %9 : vector<64xf32> to vector<64x1xf32>
    %cst_8 = arith.constant 7.812500e-03 : f32
    %11 = vector.broadcast %cst_8 : f32 to vector<64x1xf32>
    %12 = arith.mulf %10, %11 : vector<64x1xf32>
    %13 = vector.broadcast %12 : vector<64x1xf32> to vector<64x128xf32>
    %14 = arith.subf %4, %13 : vector<64x128xf32>
    %c0_9 = arith.constant 0 : index
    %c0_10 = arith.constant 0 : index
    %c0_11 = arith.constant 0 : index
    %c0_12 = arith.constant 0 : index
    %15 = vector.load %arg5[%c0_9, %c0_10, %c0_11, %c0_12] : memref<1x1x64x1xf32, #tpu.memory_space<vmem>>, vector<1x1x64x1xf32>
    %16 = vector.shape_cast %15 : vector<1x1x64x1xf32> to vector<64x1xf32>
    %17 = vector.shape_cast %12 : vector<64x1xf32> to vector<1x1x64x1xf32>
    tpu.vector_store %arg5[%c0_9, %c0_10, %c0_11, %c0_12], %17 {strides = array<i32>} : memref<1x1x64x1xf32, #tpu.memory_space<vmem>>, vector<1x1x64x1xf32>,
    %18 = arith.mulf %14, %14 : vector<64x128xf32>
    %cst_13 = arith.constant dense<0.000000e+00> : vector<64xf32>
    %19 = vector.multi_reduction <add>, %18, %cst_13 [1] : vector<64x128xf32> to vector<64xf32>
    %20 = vector.shape_cast %19 : vector<64xf32> to vector<64x1xf32>
    %c0_14 = arith.constant 0 : index
    %c0_15 = arith.constant 0 : index
    %c0_16 = arith.constant 0 : index
    %c0_17 = arith.constant 0 : index
    %21 = vector.load %arg6[%c0_14, %c0_15, %c0_16, %c0_17] : memref<1x1x64x1xf32, #tpu.memory_space<vmem>>, vector<1x1x64x1xf32>
    %22 = vector.shape_cast %21 : vector<1x1x64x1xf32> to vector<64x1xf32>
    %23 = vector.shape_cast %20 : vector<64x1xf32> to vector<1x1x64x1xf32>
    tpu.vector_store %arg6[%c0_14, %c0_15, %c0_16, %c0_17], %23 {strides = array<i32>} : memref<1x1x64x1xf32, #tpu.memory_space<vmem>>, vector<1x1x64x1xf32>,
    return
  }
  func.func @transform_0(%arg0: i32, %arg1: i32) -> (i32, i32, i32) {
    %c0_i32 = arith.constant 0 : i32
    %c0_i32_0 = arith.constant 0 : i32
    return %arg0, %c0_i32, %arg1 : i32, i32, i32
  }
  func.func @transform_1(%arg0: i32, %arg1: i32) -> (i32, i32) {
    %c0_i32 = arith.constant 0 : i32
    %c0_i32_0 = arith.constant 0 : i32
    %c0_i32_1 = arith.constant 0 : i32
    return %c0_i32, %c0_i32_0 : i32, i32
  }
  func.func @transform_2(%arg0: i32, %arg1: i32) -> (i32, i32, i32) {
    %c0_i32 = arith.constant 0 : i32
    %c0_i32_0 = arith.constant 0 : i32
    return %arg0, %c0_i32, %arg1 : i32, i32, i32
  }
  func.func @transform_3(%arg0: i32, %arg1: i32) -> (i32, i32, i32, i32) {
    %c0_i32 = arith.constant 0 : i32
    %c0_i32_0 = arith.constant 0 : i32
    %c0_i32_1 = arith.constant 0 : i32
    return %arg0, %arg1, %c0_i32, %c0_i32_0 : i32, i32, i32, i32
  }
  func.func @transform_4(%arg0: i32, %arg1: i32) -> (i32, i32, i32, i32) {
    %c0_i32 = arith.constant 0 : i32
    %c0_i32_0 = arith.constant 0 : i32
    %c0_i32_1 = arith.constant 0 : i32
    return %arg0, %arg1, %c0_i32, %c0_i32_0 : i32, i32, i32, i32
  }
}

module attributes {stable_mosaic.version = 11 : i64} {
  func.func @conv2_fused_kernel(%arg0: i32, %arg1: i32, %arg2: memref<1x64x128xbf16, #tpu.memory_space<vmem>>, %arg3: memref<64x1xf32, #tpu.memory_space<vmem>>, %arg4: memref<64x1xf32, #tpu.memory_space<vmem>>, %arg5: memref<64x64xbf16, #tpu.memory_space<vmem>>, %arg6: memref<1x64x128xbf16, #tpu.memory_space<vmem>>, %arg7: memref<1x1x64x1xf32, #tpu.memory_space<vmem>>, %arg8: memref<1x1x64x1xf32, #tpu.memory_space<vmem>>) attributes {dimension_semantics = [#tpu.dimension_semantics<parallel>, #tpu.dimension_semantics<parallel>], iteration_bounds = array<i64: 2, 1>, scalar_prefetch = 0 : i64, scratch_operands = 0 : i64, tpu.core_type = #tpu.core_type<tc>, window_params = [{transform_indices = @transform_0, window_bounds = array<i64: 1, 64, 128>}, {pipeline_mode = #tpu.pipeline_mode<synchronous>, transform_indices = @transform_1, window_bounds = array<i64: 64, 1>}, {pipeline_mode = #tpu.pipeline_mode<synchronous>, transform_indices = @transform_2, window_bounds = array<i64: 64, 1>}, {pipeline_mode = #tpu.pipeline_mode<synchronous>, transform_indices = @transform_3, window_bounds = array<i64: 64, 64>}, {transform_indices = @transform_4, window_bounds = array<i64: 1, 64, 128>}, {transform_indices = @transform_5, window_bounds = array<i64: 1, 1, 64, 1>}, {transform_indices = @transform_6, window_bounds = array<i64: 1, 1, 64, 1>}]} {
    %c0 = arith.constant 0 : index
    %c0_0 = arith.constant 0 : index
    %c0_1 = arith.constant 0 : index
    %0 = vector.load %arg2[%c0, %c0_0, %c0_1] : memref<1x64x128xbf16, #tpu.memory_space<vmem>>, vector<1x64x128xbf16>
    %1 = vector.shape_cast %0 : vector<1x64x128xbf16> to vector<64x128xbf16>
    %2 = arith.extf %1 : vector<64x128xbf16> to vector<64x128xf32>
    %c0_2 = arith.constant 0 : index
    %c0_3 = arith.constant 0 : index
    %3 = vector.load %arg3[%c0_2, %c0_3] : memref<64x1xf32, #tpu.memory_space<vmem>>, vector<64x1xf32>
    %4 = vector.broadcast %3 : vector<64x1xf32> to vector<64x128xf32>
    %5 = arith.mulf %2, %4 : vector<64x128xf32>
    %c0_4 = arith.constant 0 : index
    %c0_5 = arith.constant 0 : index
    %6 = vector.load %arg4[%c0_4, %c0_5] : memref<64x1xf32, #tpu.memory_space<vmem>>, vector<64x1xf32>
    %7 = vector.broadcast %6 : vector<64x1xf32> to vector<64x128xf32>
    %8 = arith.addf %5, %7 : vector<64x128xf32>
    %cst = arith.constant 0.000000e+00 : f32
    %9 = vector.broadcast %cst : f32 to vector<64x128xf32>
    %10 = arith.maximumf %8, %9 : vector<64x128xf32>
    %c0_6 = arith.constant 0 : index
    %c0_7 = arith.constant 0 : index
    %11 = vector.load %arg5[%c0_6, %c0_7] : memref<64x64xbf16, #tpu.memory_space<vmem>>, vector<64x64xbf16>
    %12 = arith.truncf %10 : vector<64x128xf32> to vector<64x128xbf16>
    %cst_8 = arith.constant dense<0.000000e+00> : vector<64x128xf32>
    %13 = tpu.matmul %11, %12, %cst_8 {dimension_numbers = #tpu.dot_dimension_numbers<[1], [0], [0], [1], [0, 0, 1, 1], [], []>} : vector<64x64xbf16>, vector<64x128xbf16>, vector<64x128xf32> -> vector<64x128xf32>
    %14 = arith.truncf %13 : vector<64x128xf32> to vector<64x128xbf16>
    %c0_9 = arith.constant 0 : index
    %c0_10 = arith.constant 0 : index
    %c0_11 = arith.constant 0 : index
    %15 = vector.load %arg6[%c0_9, %c0_10, %c0_11] : memref<1x64x128xbf16, #tpu.memory_space<vmem>>, vector<1x64x128xbf16>
    %16 = vector.shape_cast %15 : vector<1x64x128xbf16> to vector<64x128xbf16>
    %17 = vector.shape_cast %14 : vector<64x128xbf16> to vector<1x64x128xbf16>
    tpu.vector_store %arg6[%c0_9, %c0_10, %c0_11], %17 {strides = array<i32>} : memref<1x64x128xbf16, #tpu.memory_space<vmem>>, vector<1x64x128xbf16>,
    %cst_12 = arith.constant dense<0.000000e+00> : vector<64xf32>
    %18 = vector.multi_reduction <add>, %13, %cst_12 [1] : vector<64x128xf32> to vector<64xf32>
    %19 = vector.shape_cast %18 : vector<64xf32> to vector<64x1xf32>
    %cst_13 = arith.constant 7.812500e-03 : f32
    %20 = vector.broadcast %cst_13 : f32 to vector<64x1xf32>
    %21 = arith.mulf %19, %20 : vector<64x1xf32>
    %22 = vector.broadcast %21 : vector<64x1xf32> to vector<64x128xf32>
    %23 = arith.subf %13, %22 : vector<64x128xf32>
    %c0_14 = arith.constant 0 : index
    %c0_15 = arith.constant 0 : index
    %c0_16 = arith.constant 0 : index
    %c0_17 = arith.constant 0 : index
    %24 = vector.load %arg7[%c0_14, %c0_15, %c0_16, %c0_17] : memref<1x1x64x1xf32, #tpu.memory_space<vmem>>, vector<1x1x64x1xf32>
    %25 = vector.shape_cast %24 : vector<1x1x64x1xf32> to vector<64x1xf32>
    %26 = vector.shape_cast %21 : vector<64x1xf32> to vector<1x1x64x1xf32>
    tpu.vector_store %arg7[%c0_14, %c0_15, %c0_16, %c0_17], %26 {strides = array<i32>} : memref<1x1x64x1xf32, #tpu.memory_space<vmem>>, vector<1x1x64x1xf32>,
    %27 = arith.mulf %23, %23 : vector<64x128xf32>
    %cst_18 = arith.constant dense<0.000000e+00> : vector<64xf32>
    %28 = vector.multi_reduction <add>, %27, %cst_18 [1] : vector<64x128xf32> to vector<64xf32>
    %29 = vector.shape_cast %28 : vector<64xf32> to vector<64x1xf32>
    %c0_19 = arith.constant 0 : index
    %c0_20 = arith.constant 0 : index
    %c0_21 = arith.constant 0 : index
    %c0_22 = arith.constant 0 : index
    %30 = vector.load %arg8[%c0_19, %c0_20, %c0_21, %c0_22] : memref<1x1x64x1xf32, #tpu.memory_space<vmem>>, vector<1x1x64x1xf32>
    %31 = vector.shape_cast %30 : vector<1x1x64x1xf32> to vector<64x1xf32>
    %32 = vector.shape_cast %29 : vector<64x1xf32> to vector<1x1x64x1xf32>
    tpu.vector_store %arg8[%c0_19, %c0_20, %c0_21, %c0_22], %32 {strides = array<i32>} : memref<1x1x64x1xf32, #tpu.memory_space<vmem>>, vector<1x1x64x1xf32>,
    return
  }
  func.func @transform_0(%arg0: i32, %arg1: i32) -> (i32, i32, i32) {
    %c0_i32 = arith.constant 0 : i32
    %c0_i32_0 = arith.constant 0 : i32
    return %arg0, %c0_i32, %arg1 : i32, i32, i32
  }
  func.func @transform_1(%arg0: i32, %arg1: i32) -> (i32, i32) {
    %c0_i32 = arith.constant 0 : i32
    %c0_i32_0 = arith.constant 0 : i32
    %c0_i32_1 = arith.constant 0 : i32
    return %c0_i32, %c0_i32_0 : i32, i32
  }
  func.func @transform_2(%arg0: i32, %arg1: i32) -> (i32, i32) {
    %c0_i32 = arith.constant 0 : i32
    %c0_i32_0 = arith.constant 0 : i32
    %c0_i32_1 = arith.constant 0 : i32
    return %c0_i32, %c0_i32_0 : i32, i32
  }
  func.func @transform_3(%arg0: i32, %arg1: i32) -> (i32, i32) {
    %c0_i32 = arith.constant 0 : i32
    %c0_i32_0 = arith.constant 0 : i32
    %c0_i32_1 = arith.constant 0 : i32
    return %c0_i32, %c0_i32_0 : i32, i32
  }
  func.func @transform_4(%arg0: i32, %arg1: i32) -> (i32, i32, i32) {
    %c0_i32 = arith.constant 0 : i32
    %c0_i32_0 = arith.constant 0 : i32
    return %arg0, %c0_i32, %arg1 : i32, i32, i32
  }
  func.func @transform_5(%arg0: i32, %arg1: i32) -> (i32, i32, i32, i32) {
    %c0_i32 = arith.constant 0 : i32
    %c0_i32_0 = arith.constant 0 : i32
    %c0_i32_1 = arith.constant 0 : i32
    return %arg0, %arg1, %c0_i32, %c0_i32_0 : i32, i32, i32, i32
  }
  func.func @transform_6(%arg0: i32, %arg1: i32) -> (i32, i32, i32, i32) {
    %c0_i32 = arith.constant 0 : i32
    %c0_i32_0 = arith.constant 0 : i32
    %c0_i32_1 = arith.constant 0 : i32
    return %arg0, %arg1, %c0_i32, %c0_i32_0 : i32, i32, i32, i32
  }
}

module attributes {stable_mosaic.version = 11 : i64} {
  func.func @bn_act_kernel(%arg0: i32, %arg1: i32, %arg2: memref<1x64x128xbf16, #tpu.memory_space<vmem>>, %arg3: memref<64x1xf32, #tpu.memory_space<vmem>>, %arg4: memref<64x1xf32, #tpu.memory_space<vmem>>, %arg5: memref<1x64x128xf32, #tpu.memory_space<vmem>>) attributes {dimension_semantics = [#tpu.dimension_semantics<parallel>, #tpu.dimension_semantics<parallel>], iteration_bounds = array<i64: 2, 1>, scalar_prefetch = 0 : i64, scratch_operands = 0 : i64, tpu.core_type = #tpu.core_type<tc>, window_params = [{transform_indices = @transform_0, window_bounds = array<i64: 1, 64, 128>}, {pipeline_mode = #tpu.pipeline_mode<synchronous>, transform_indices = @transform_1, window_bounds = array<i64: 64, 1>}, {pipeline_mode = #tpu.pipeline_mode<synchronous>, transform_indices = @transform_2, window_bounds = array<i64: 64, 1>}, {transform_indices = @transform_3, window_bounds = array<i64: 1, 64, 128>}]} {
    %c0 = arith.constant 0 : index
    %c0_0 = arith.constant 0 : index
    %c0_1 = arith.constant 0 : index
    %0 = vector.load %arg2[%c0, %c0_0, %c0_1] : memref<1x64x128xbf16, #tpu.memory_space<vmem>>, vector<1x64x128xbf16>
    %1 = vector.shape_cast %0 : vector<1x64x128xbf16> to vector<64x128xbf16>
    %2 = arith.extf %1 : vector<64x128xbf16> to vector<64x128xf32>
    %c0_2 = arith.constant 0 : index
    %c0_3 = arith.constant 0 : index
    %3 = vector.load %arg3[%c0_2, %c0_3] : memref<64x1xf32, #tpu.memory_space<vmem>>, vector<64x1xf32>
    %4 = vector.broadcast %3 : vector<64x1xf32> to vector<64x128xf32>
    %5 = arith.mulf %2, %4 : vector<64x128xf32>
    %c0_4 = arith.constant 0 : index
    %c0_5 = arith.constant 0 : index
    %6 = vector.load %arg4[%c0_4, %c0_5] : memref<64x1xf32, #tpu.memory_space<vmem>>, vector<64x1xf32>
    %7 = vector.broadcast %6 : vector<64x1xf32> to vector<64x128xf32>
    %8 = arith.addf %5, %7 : vector<64x128xf32>
    %cst = arith.constant 0.000000e+00 : f32
    %9 = vector.broadcast %cst : f32 to vector<64x128xf32>
    %10 = arith.maximumf %8, %9 : vector<64x128xf32>
    %c0_6 = arith.constant 0 : index
    %c0_7 = arith.constant 0 : index
    %c0_8 = arith.constant 0 : index
    %11 = vector.load %arg5[%c0_6, %c0_7, %c0_8] : memref<1x64x128xf32, #tpu.memory_space<vmem>>, vector<1x64x128xf32>
    %12 = vector.shape_cast %11 : vector<1x64x128xf32> to vector<64x128xf32>
    %13 = vector.shape_cast %10 : vector<64x128xf32> to vector<1x64x128xf32>
    tpu.vector_store %arg5[%c0_6, %c0_7, %c0_8], %13 {strides = array<i32>} : memref<1x64x128xf32, #tpu.memory_space<vmem>>, vector<1x64x128xf32>,
    return
  }
  func.func @transform_0(%arg0: i32, %arg1: i32) -> (i32, i32, i32) {
    %c0_i32 = arith.constant 0 : i32
    %c0_i32_0 = arith.constant 0 : i32
    return %arg0, %c0_i32, %arg1 : i32, i32, i32
  }
  func.func @transform_1(%arg0: i32, %arg1: i32) -> (i32, i32) {
    %c0_i32 = arith.constant 0 : i32
    %c0_i32_0 = arith.constant 0 : i32
    %c0_i32_1 = arith.constant 0 : i32
    return %c0_i32, %c0_i32_0 : i32, i32
  }
  func.func @transform_2(%arg0: i32, %arg1: i32) -> (i32, i32) {
    %c0_i32 = arith.constant 0 : i32
    %c0_i32_0 = arith.constant 0 : i32
    %c0_i32_1 = arith.constant 0 : i32
    return %c0_i32, %c0_i32_0 : i32, i32
  }
  func.func @transform_3(%arg0: i32, %arg1: i32) -> (i32, i32, i32) {
    %c0_i32 = arith.constant 0 : i32
    %c0_i32_0 = arith.constant 0 : i32
    return %arg0, %c0_i32, %arg1 : i32, i32, i32
  }
}

module attributes {stable_mosaic.version = 11 : i64} {
  func.func @sa_fused_kernel(%arg0: i32, %arg1: i32, %arg2: memref<1x64x128xf32, #tpu.memory_space<vmem>>, %arg3: memref<1x64x128xf32, #tpu.memory_space<vmem>>, %arg4: memref<16x64xbf16, #tpu.memory_space<vmem>>, %arg5: memref<64x64xbf16, #tpu.memory_space<vmem>>, %arg6: memref<64x1xf32, #tpu.memory_space<vmem>>, %arg7: memref<64x64xbf16, #tpu.memory_space<vmem>>, %arg8: memref<64x1xf32, #tpu.memory_space<vmem>>, %arg9: memref<1x64x128xbf16, #tpu.memory_space<vmem>>, %arg10: memref<1x64x1xf32, #tpu.memory_space<vmem>>, %arg11: memref<1x64x1xf32, #tpu.memory_space<vmem>>, %arg12: memref<16x128xbf16, #tpu.memory_space<vmem>>, %arg13: memref<64x128xf32, #tpu.memory_space<vmem>>, %arg14: memref<1x128xf32, #tpu.memory_space<vmem>>) attributes {dimension_semantics = [#tpu.dimension_semantics<parallel>, #tpu.dimension_semantics<arbitrary>], iteration_bounds = array<i64: 2, 1>, scalar_prefetch = 0 : i64, scratch_operands = 3 : i64, tpu.core_type = #tpu.core_type<tc>, window_params = [{transform_indices = @transform_0, window_bounds = array<i64: 1, 64, 128>}, {transform_indices = @transform_1, window_bounds = array<i64: 1, 64, 128>}, {pipeline_mode = #tpu.pipeline_mode<synchronous>, transform_indices = @transform_2, window_bounds = array<i64: 16, 64>}, {pipeline_mode = #tpu.pipeline_mode<synchronous>, transform_indices = @transform_3, window_bounds = array<i64: 64, 64>}, {pipeline_mode = #tpu.pipeline_mode<synchronous>, transform_indices = @transform_4, window_bounds = array<i64: 64, 1>}, {pipeline_mode = #tpu.pipeline_mode<synchronous>, transform_indices = @transform_5, window_bounds = array<i64: 64, 64>}, {pipeline_mode = #tpu.pipeline_mode<synchronous>, transform_indices = @transform_6, window_bounds = array<i64: 64, 1>}, {transform_indices = @transform_7, window_bounds = array<i64: 1, 64, 128>}, {transform_indices = @transform_8, window_bounds = array<i64: 1, 64, 1>}, {transform_indices = @transform_9, window_bounds = array<i64: 1, 64, 1>}]} {
    %c0_i32 = arith.constant 0 : i32
    %0 = arith.cmpi eq, %arg1, %c0_i32 : i32
    %1 = arith.extui %0 : i1 to i32
    %c0_i32_0 = arith.constant 0 : i32
    %2 = arith.cmpi ne, %1, %c0_i32_0 : i32
    scf.if %2 {
      %cst_28 = arith.constant 0.000000e+00 : f32
      %41 = vector.broadcast %cst_28 : f32 to vector<64x128xf32>
      %c0_29 = arith.constant 0 : index
      %c0_30 = arith.constant 0 : index
      %42 = vector.load %arg13[%c0_29, %c0_30] : memref<64x128xf32, #tpu.memory_space<vmem>>, vector<64x128xf32>
      tpu.vector_store %arg13[%c0_29, %c0_30], %41 {strides = array<i32>} : memref<64x128xf32, #tpu.memory_space<vmem>>, vector<64x128xf32>,
      %cst_31 = arith.constant 0.000000e+00 : f32
      %43 = vector.broadcast %cst_31 : f32 to vector<1x128xf32>
      %c0_32 = arith.constant 0 : index
      %c0_33 = arith.constant 0 : index
      %44 = vector.load %arg14[%c0_32, %c0_33] : memref<1x128xf32, #tpu.memory_space<vmem>>, vector<1x128xf32>
      tpu.vector_store %arg14[%c0_32, %c0_33], %43 {strides = array<i32>} : memref<1x128xf32, #tpu.memory_space<vmem>>, vector<1x128xf32>,
      %c0_34 = arith.constant 0 : index
      %c0_35 = arith.constant 0 : index
      %45 = vector.load %arg4[%c0_34, %c0_35] : memref<16x64xbf16, #tpu.memory_space<vmem>>, vector<16x64xbf16>
      %c0_36 = arith.constant 0 : index
      %c0_37 = arith.constant 0 : index
      %c0_38 = arith.constant 0 : index
      %46 = vector.load %arg2[%c0_36, %c0_37, %c0_38] : memref<1x64x128xf32, #tpu.memory_space<vmem>>, vector<1x64x128xf32>
      %47 = vector.shape_cast %46 : vector<1x64x128xf32> to vector<64x128xf32>
      %48 = arith.truncf %47 : vector<64x128xf32> to vector<64x128xbf16>
      %cst_39 = arith.constant dense<0.000000e+00> : vector<16x128xf32>
      %49 = tpu.matmul %45, %48, %cst_39 {dimension_numbers = #tpu.dot_dimension_numbers<[1], [0], [0], [1], [0, 0, 1, 1], [], []>} : vector<16x64xbf16>, vector<64x128xbf16>, vector<16x128xf32> -> vector<16x128xf32>
      %50 = arith.truncf %49 : vector<16x128xf32> to vector<16x128xbf16>
      %c0_40 = arith.constant 0 : index
      %c0_41 = arith.constant 0 : index
      %51 = vector.load %arg12[%c0_40, %c0_41] : memref<16x128xbf16, #tpu.memory_space<vmem>>, vector<16x128xbf16>
      tpu.vector_store %arg12[%c0_40, %c0_41], %50 {strides = array<i32>} : memref<16x128xbf16, #tpu.memory_space<vmem>>, vector<16x128xbf16>,
    } else {
    }
    %c0 = arith.constant 0 : index
    %c0_1 = arith.constant 0 : index
    %c0_2 = arith.constant 0 : index
    %3 = vector.load %arg3[%c0, %c0_1, %c0_2] : memref<1x64x128xf32, #tpu.memory_space<vmem>>, vector<1x64x128xf32>
    %4 = vector.shape_cast %3 : vector<1x64x128xf32> to vector<64x128xf32>
    %5 = arith.truncf %4 : vector<64x128xf32> to vector<64x128xbf16>
    %c0_3 = arith.constant 0 : index
    %c0_4 = arith.constant 0 : index
    %6 = vector.load %arg4[%c0_3, %c0_4] : memref<16x64xbf16, #tpu.memory_space<vmem>>, vector<16x64xbf16>
    %cst = arith.constant dense<0.000000e+00> : vector<16x128xf32>
    %7 = tpu.matmul %6, %5, %cst {dimension_numbers = #tpu.dot_dimension_numbers<[1], [0], [0], [1], [0, 0, 1, 1], [], []>} : vector<16x64xbf16>, vector<64x128xbf16>, vector<16x128xf32> -> vector<16x128xf32>
    %8 = arith.truncf %7 : vector<16x128xf32> to vector<16x128xbf16>
    %c0_5 = arith.constant 0 : index
    %c0_6 = arith.constant 0 : index
    %9 = vector.load %arg12[%c0_5, %c0_6] : memref<16x128xbf16, #tpu.memory_space<vmem>>, vector<16x128xbf16>
    %cst_7 = arith.constant dense<0.000000e+00> : vector<128x128xf32>
    %10 = tpu.matmul %8, %9, %cst_7 {dimension_numbers = #tpu.dot_dimension_numbers<[0], [0], [1], [1], [0, 1, 1, 1], [], []>} : vector<16x128xbf16>, vector<16x128xbf16>, vector<128x128xf32> -> vector<128x128xf32>
    %cst_8 = arith.constant dense<0xFF800000> : vector<128xf32>
    %11 = vector.multi_reduction <maximumf>, %10, %cst_8 [1] : vector<128x128xf32> to vector<128xf32>
    %12 = vector.shape_cast %11 : vector<128xf32> to vector<128x1xf32>
    %13 = vector.broadcast %12 : vector<128x1xf32> to vector<128x128xf32>
    %14 = arith.subf %10, %13 : vector<128x128xf32>
    %15 = math.exp %14 : vector<128x128xf32>
    %cst_9 = arith.constant dense<0.000000e+00> : vector<128xf32>
    %16 = vector.multi_reduction <add>, %15, %cst_9 [1] : vector<128x128xf32> to vector<128xf32>
    %17 = vector.shape_cast %16 : vector<128xf32> to vector<128x1xf32>
    %cst_10 = arith.constant 1.000000e+00 : f32
    %18 = vector.broadcast %cst_10 : f32 to vector<128x1xf32>
    %19 = arith.divf %18, %17 : vector<128x1xf32>
    %20 = vector.broadcast %19 : vector<128x1xf32> to vector<128x128xf32>
    %21 = arith.mulf %15, %20 : vector<128x128xf32>
    %c0_11 = arith.constant 0 : index
    %c0_12 = arith.constant 0 : index
    %22 = vector.load %arg5[%c0_11, %c0_12] : memref<64x64xbf16, #tpu.memory_space<vmem>>, vector<64x64xbf16>
    %cst_13 = arith.constant dense<0.000000e+00> : vector<64x128xf32>
    %23 = tpu.matmul %22, %5, %cst_13 {dimension_numbers = #tpu.dot_dimension_numbers<[1], [0], [0], [1], [0, 0, 1, 1], [], []>} : vector<64x64xbf16>, vector<64x128xbf16>, vector<64x128xf32> -> vector<64x128xf32>
    %c0_14 = arith.constant 0 : index
    %c0_15 = arith.constant 0 : index
    %24 = vector.load %arg6[%c0_14, %c0_15] : memref<64x1xf32, #tpu.memory_space<vmem>>, vector<64x1xf32>
    %25 = vector.broadcast %24 : vector<64x1xf32> to vector<64x128xf32>
    %26 = arith.addf %23, %25 : vector<64x128xf32>
    %c0_16 = arith.constant 0 : index
    %c0_17 = arith.constant 0 : index
    %27 = vector.load %arg13[%c0_16, %c0_17] : memref<64x128xf32, #tpu.memory_space<vmem>>, vector<64x128xf32>
    %28 = arith.truncf %26 : vector<64x128xf32> to vector<64x128xbf16>
    %29 = arith.truncf %21 : vector<128x128xf32> to vector<128x128xbf16>
    %cst_18 = arith.constant dense<0.000000e+00> : vector<64x128xf32>
    %30 = tpu.matmul %28, %29, %cst_18 {dimension_numbers = #tpu.dot_dimension_numbers<[1], [0], [0], [1], [0, 0, 1, 1], [], []>} : vector<64x128xbf16>, vector<128x128xbf16>, vector<64x128xf32> -> vector<64x128xf32>
    %31 = arith.addf %27, %30 : vector<64x128xf32>
    %c0_19 = arith.constant 0 : index
    %c0_20 = arith.constant 0 : index
    %32 = vector.load %arg13[%c0_19, %c0_20] : memref<64x128xf32, #tpu.memory_space<vmem>>, vector<64x128xf32>
    tpu.vector_store %arg13[%c0_19, %c0_20], %31 {strides = array<i32>} : memref<64x128xf32, #tpu.memory_space<vmem>>, vector<64x128xf32>,
    %c0_21 = arith.constant 0 : index
    %c0_22 = arith.constant 0 : index
    %33 = vector.load %arg14[%c0_21, %c0_22] : memref<1x128xf32, #tpu.memory_space<vmem>>, vector<1x128xf32>
    %cst_23 = arith.constant dense<0.000000e+00> : vector<128xf32>
    %34 = vector.multi_reduction <add>, %21, %cst_23 [0] : vector<128x128xf32> to vector<128xf32>
    %35 = vector.shape_cast %34 : vector<128xf32> to vector<1x128xf32>
    %36 = arith.addf %33, %35 : vector<1x128xf32>
    %c0_24 = arith.constant 0 : index
    %c0_25 = arith.constant 0 : index
    %37 = vector.load %arg14[%c0_24, %c0_25] : memref<1x128xf32, #tpu.memory_space<vmem>>, vector<1x128xf32>
    tpu.vector_store %arg14[%c0_24, %c0_25], %36 {strides = array<i32>} : memref<1x128xf32, #tpu.memory_space<vmem>>, vector<1x128xf32>,
    %c0_i32_26 = arith.constant 0 : i32
    %38 = arith.cmpi eq, %arg1, %c0_i32_26 : i32
    %39 = arith.extui %38 : i1 to i32
    %c0_i32_27 = arith.constant 0 : i32
    %40 = arith.cmpi ne, %39, %c0_i32_27 : i32
    scf.if %40 {
      %c0_28 = arith.constant 0 : index
      %c0_29 = arith.constant 0 : index
      %41 = vector.load %arg14[%c0_28, %c0_29] : memref<1x128xf32, #tpu.memory_space<vmem>>, vector<1x128xf32>
      %cst_30 = arith.constant 9.99999971E-10 : f32
      %42 = vector.broadcast %cst_30 : f32 to vector<1x128xf32>
      %43 = arith.addf %42, %41 : vector<1x128xf32>
      %cst_31 = arith.constant 1.000000e+00 : f32
      %44 = vector.broadcast %cst_31 : f32 to vector<1x128xf32>
      %45 = arith.divf %44, %43 : vector<1x128xf32>
      %c0_32 = arith.constant 0 : index
      %c0_33 = arith.constant 0 : index
      %46 = vector.load %arg13[%c0_32, %c0_33] : memref<64x128xf32, #tpu.memory_space<vmem>>, vector<64x128xf32>
      %47 = vector.broadcast %45 : vector<1x128xf32> to vector<64x128xf32>
      %48 = arith.mulf %46, %47 : vector<64x128xf32>
      %c0_34 = arith.constant 0 : index
      %c0_35 = arith.constant 0 : index
      %c0_36 = arith.constant 0 : index
      %49 = vector.load %arg2[%c0_34, %c0_35, %c0_36] : memref<1x64x128xf32, #tpu.memory_space<vmem>>, vector<1x64x128xf32>
      %50 = vector.shape_cast %49 : vector<1x64x128xf32> to vector<64x128xf32>
      %51 = arith.subf %50, %48 : vector<64x128xf32>
      %52 = arith.truncf %51 : vector<64x128xf32> to vector<64x128xbf16>
      %c0_37 = arith.constant 0 : index
      %c0_38 = arith.constant 0 : index
      %53 = vector.load %arg7[%c0_37, %c0_38] : memref<64x64xbf16, #tpu.memory_space<vmem>>, vector<64x64xbf16>
      %cst_39 = arith.constant dense<0.000000e+00> : vector<64x128xf32>
      %54 = tpu.matmul %53, %52, %cst_39 {dimension_numbers = #tpu.dot_dimension_numbers<[1], [0], [0], [1], [0, 0, 1, 1], [], []>} : vector<64x64xbf16>, vector<64x128xbf16>, vector<64x128xf32> -> vector<64x128xf32>
      %c0_40 = arith.constant 0 : index
      %c0_41 = arith.constant 0 : index
      %55 = vector.load %arg8[%c0_40, %c0_41] : memref<64x1xf32, #tpu.memory_space<vmem>>, vector<64x1xf32>
      %56 = vector.broadcast %55 : vector<64x1xf32> to vector<64x128xf32>
      %57 = arith.addf %54, %56 : vector<64x128xf32>
      %58 = arith.truncf %57 : vector<64x128xf32> to vector<64x128xbf16>
      %c0_42 = arith.constant 0 : index
      %c0_43 = arith.constant 0 : index
      %c0_44 = arith.constant 0 : index
      %59 = vector.load %arg9[%c0_42, %c0_43, %c0_44] : memref<1x64x128xbf16, #tpu.memory_space<vmem>>, vector<1x64x128xbf16>
      %60 = vector.shape_cast %59 : vector<1x64x128xbf16> to vector<64x128xbf16>
      %61 = vector.shape_cast %58 : vector<64x128xbf16> to vector<1x64x128xbf16>
      tpu.vector_store %arg9[%c0_42, %c0_43, %c0_44], %61 {strides = array<i32>} : memref<1x64x128xbf16, #tpu.memory_space<vmem>>, vector<1x64x128xbf16>,
      %cst_45 = arith.constant dense<0.000000e+00> : vector<64xf32>
      %62 = vector.multi_reduction <add>, %57, %cst_45 [1] : vector<64x128xf32> to vector<64xf32>
      %63 = vector.shape_cast %62 : vector<64xf32> to vector<64x1xf32>
      %cst_46 = arith.constant 7.812500e-03 : f32
      %64 = vector.broadcast %cst_46 : f32 to vector<64x1xf32>
      %65 = arith.mulf %63, %64 : vector<64x1xf32>
      %66 = vector.broadcast %65 : vector<64x1xf32> to vector<64x128xf32>
      %67 = arith.subf %57, %66 : vector<64x128xf32>
      %c0_47 = arith.constant 0 : index
      %c0_48 = arith.constant 0 : index
      %c0_49 = arith.constant 0 : index
      %68 = vector.load %arg10[%c0_47, %c0_48, %c0_49] : memref<1x64x1xf32, #tpu.memory_space<vmem>>, vector<1x64x1xf32>
      %69 = vector.shape_cast %68 : vector<1x64x1xf32> to vector<64x1xf32>
      %70 = vector.shape_cast %65 : vector<64x1xf32> to vector<1x64x1xf32>
      tpu.vector_store %arg10[%c0_47, %c0_48, %c0_49], %70 {strides = array<i32>} : memref<1x64x1xf32, #tpu.memory_space<vmem>>, vector<1x64x1xf32>,
      %71 = arith.mulf %67, %67 : vector<64x128xf32>
      %cst_50 = arith.constant dense<0.000000e+00> : vector<64xf32>
      %72 = vector.multi_reduction <add>, %71, %cst_50 [1] : vector<64x128xf32> to vector<64xf32>
      %73 = vector.shape_cast %72 : vector<64xf32> to vector<64x1xf32>
      %c0_51 = arith.constant 0 : index
      %c0_52 = arith.constant 0 : index
      %c0_53 = arith.constant 0 : index
      %74 = vector.load %arg11[%c0_51, %c0_52, %c0_53] : memref<1x64x1xf32, #tpu.memory_space<vmem>>, vector<1x64x1xf32>
      %75 = vector.shape_cast %74 : vector<1x64x1xf32> to vector<64x1xf32>
      %76 = vector.shape_cast %73 : vector<64x1xf32> to vector<1x64x1xf32>
      tpu.vector_store %arg11[%c0_51, %c0_52, %c0_53], %76 {strides = array<i32>} : memref<1x64x1xf32, #tpu.memory_space<vmem>>, vector<1x64x1xf32>,
    } else {
    }
    return
  }
  func.func @transform_0(%arg0: i32, %arg1: i32) -> (i32, i32, i32) {
    %c0_i32 = arith.constant 0 : i32
    %c0_i32_0 = arith.constant 0 : i32
    %c0_i32_1 = arith.constant 0 : i32
    return %arg0, %c0_i32, %c0_i32_0 : i32, i32, i32
  }
  func.func @transform_1(%arg0: i32, %arg1: i32) -> (i32, i32, i32) {
    %c0_i32 = arith.constant 0 : i32
    %c0_i32_0 = arith.constant 0 : i32
    return %arg0, %c0_i32, %arg1 : i32, i32, i32
  }
  func.func @transform_2(%arg0: i32, %arg1: i32) -> (i32, i32) {
    %c0_i32 = arith.constant 0 : i32
    %c0_i32_0 = arith.constant 0 : i32
    %c0_i32_1 = arith.constant 0 : i32
    return %c0_i32, %c0_i32_0 : i32, i32
  }
  func.func @transform_3(%arg0: i32, %arg1: i32) -> (i32, i32) {
    %c0_i32 = arith.constant 0 : i32
    %c0_i32_0 = arith.constant 0 : i32
    %c0_i32_1 = arith.constant 0 : i32
    return %c0_i32, %c0_i32_0 : i32, i32
  }
  func.func @transform_4(%arg0: i32, %arg1: i32) -> (i32, i32) {
    %c0_i32 = arith.constant 0 : i32
    %c0_i32_0 = arith.constant 0 : i32
    %c0_i32_1 = arith.constant 0 : i32
    return %c0_i32, %c0_i32_0 : i32, i32
  }
  func.func @transform_5(%arg0: i32, %arg1: i32) -> (i32, i32) {
    %c0_i32 = arith.constant 0 : i32
    %c0_i32_0 = arith.constant 0 : i32
    %c0_i32_1 = arith.constant 0 : i32
    return %c0_i32, %c0_i32_0 : i32, i32
  }
  func.func @transform_6(%arg0: i32, %arg1: i32) -> (i32, i32) {
    %c0_i32 = arith.constant 0 : i32
    %c0_i32_0 = arith.constant 0 : i32
    %c0_i32_1 = arith.constant 0 : i32
    return %c0_i32, %c0_i32_0 : i32, i32
  }
  func.func @transform_7(%arg0: i32, %arg1: i32) -> (i32, i32, i32) {
    %c0_i32 = arith.constant 0 : i32
    %c0_i32_0 = arith.constant 0 : i32
    %c0_i32_1 = arith.constant 0 : i32
    return %arg0, %c0_i32, %c0_i32_0 : i32, i32, i32
  }
  func.func @transform_8(%arg0: i32, %arg1: i32) -> (i32, i32, i32) {
    %c0_i32 = arith.constant 0 : i32
    %c0_i32_0 = arith.constant 0 : i32
    %c0_i32_1 = arith.constant 0 : i32
    return %arg0, %c0_i32, %c0_i32_0 : i32, i32, i32
  }
  func.func @transform_9(%arg0: i32, %arg1: i32) -> (i32, i32, i32) {
    %c0_i32 = arith.constant 0 : i32
    %c0_i32_0 = arith.constant 0 : i32
    %c0_i32_1 = arith.constant 0 : i32
    return %arg0, %c0_i32, %c0_i32_0 : i32, i32, i32
  }
}

module attributes {stable_mosaic.version = 11 : i64} {
  func.func @bn_act_res_kernel(%arg0: i32, %arg1: i32, %arg2: memref<1x64x128xbf16, #tpu.memory_space<vmem>>, %arg3: memref<1x64x128xf32, #tpu.memory_space<vmem>>, %arg4: memref<64x1xf32, #tpu.memory_space<vmem>>, %arg5: memref<64x1xf32, #tpu.memory_space<vmem>>, %arg6: memref<1x64x128xf32, #tpu.memory_space<vmem>>) attributes {dimension_semantics = [#tpu.dimension_semantics<parallel>, #tpu.dimension_semantics<parallel>], iteration_bounds = array<i64: 2, 1>, scalar_prefetch = 0 : i64, scratch_operands = 0 : i64, tpu.core_type = #tpu.core_type<tc>, window_params = [{transform_indices = @transform_0, window_bounds = array<i64: 1, 64, 128>}, {transform_indices = @transform_1, window_bounds = array<i64: 1, 64, 128>}, {pipeline_mode = #tpu.pipeline_mode<synchronous>, transform_indices = @transform_2, window_bounds = array<i64: 64, 1>}, {pipeline_mode = #tpu.pipeline_mode<synchronous>, transform_indices = @transform_3, window_bounds = array<i64: 64, 1>}, {transform_indices = @transform_4, window_bounds = array<i64: 1, 64, 128>}]} {
    %c0 = arith.constant 0 : index
    %c0_0 = arith.constant 0 : index
    %c0_1 = arith.constant 0 : index
    %0 = vector.load %arg2[%c0, %c0_0, %c0_1] : memref<1x64x128xbf16, #tpu.memory_space<vmem>>, vector<1x64x128xbf16>
    %1 = vector.shape_cast %0 : vector<1x64x128xbf16> to vector<64x128xbf16>
    %2 = arith.extf %1 : vector<64x128xbf16> to vector<64x128xf32>
    %c0_2 = arith.constant 0 : index
    %c0_3 = arith.constant 0 : index
    %c0_4 = arith.constant 0 : index
    %3 = vector.load %arg3[%c0_2, %c0_3, %c0_4] : memref<1x64x128xf32, #tpu.memory_space<vmem>>, vector<1x64x128xf32>
    %4 = vector.shape_cast %3 : vector<1x64x128xf32> to vector<64x128xf32>
    %c0_5 = arith.constant 0 : index
    %c0_6 = arith.constant 0 : index
    %5 = vector.load %arg4[%c0_5, %c0_6] : memref<64x1xf32, #tpu.memory_space<vmem>>, vector<64x1xf32>
    %6 = vector.broadcast %5 : vector<64x1xf32> to vector<64x128xf32>
    %7 = arith.mulf %2, %6 : vector<64x128xf32>
    %c0_7 = arith.constant 0 : index
    %c0_8 = arith.constant 0 : index
    %8 = vector.load %arg5[%c0_7, %c0_8] : memref<64x1xf32, #tpu.memory_space<vmem>>, vector<64x1xf32>
    %9 = vector.broadcast %8 : vector<64x1xf32> to vector<64x128xf32>
    %10 = arith.addf %7, %9 : vector<64x128xf32>
    %cst = arith.constant 0.000000e+00 : f32
    %11 = vector.broadcast %cst : f32 to vector<64x128xf32>
    %12 = arith.maximumf %10, %11 : vector<64x128xf32>
    %13 = arith.addf %4, %12 : vector<64x128xf32>
    %c0_9 = arith.constant 0 : index
    %c0_10 = arith.constant 0 : index
    %c0_11 = arith.constant 0 : index
    %14 = vector.load %arg6[%c0_9, %c0_10, %c0_11] : memref<1x64x128xf32, #tpu.memory_space<vmem>>, vector<1x64x128xf32>
    %15 = vector.shape_cast %14 : vector<1x64x128xf32> to vector<64x128xf32>
    %16 = vector.shape_cast %13 : vector<64x128xf32> to vector<1x64x128xf32>
    tpu.vector_store %arg6[%c0_9, %c0_10, %c0_11], %16 {strides = array<i32>} : memref<1x64x128xf32, #tpu.memory_space<vmem>>, vector<1x64x128xf32>,
    return
  }
  func.func @transform_0(%arg0: i32, %arg1: i32) -> (i32, i32, i32) {
    %c0_i32 = arith.constant 0 : i32
    %c0_i32_0 = arith.constant 0 : i32
    return %arg0, %c0_i32, %arg1 : i32, i32, i32
  }
  func.func @transform_1(%arg0: i32, %arg1: i32) -> (i32, i32, i32) {
    %c0_i32 = arith.constant 0 : i32
    %c0_i32_0 = arith.constant 0 : i32
    return %arg0, %c0_i32, %arg1 : i32, i32, i32
  }
  func.func @transform_2(%arg0: i32, %arg1: i32) -> (i32, i32) {
    %c0_i32 = arith.constant 0 : i32
    %c0_i32_0 = arith.constant 0 : i32
    %c0_i32_1 = arith.constant 0 : i32
    return %c0_i32, %c0_i32_0 : i32, i32
  }
  func.func @transform_3(%arg0: i32, %arg1: i32) -> (i32, i32) {
    %c0_i32 = arith.constant 0 : i32
    %c0_i32_0 = arith.constant 0 : i32
    %c0_i32_1 = arith.constant 0 : i32
    return %c0_i32, %c0_i32_0 : i32, i32
  }
  func.func @transform_4(%arg0: i32, %arg1: i32) -> (i32, i32, i32) {
    %c0_i32 = arith.constant 0 : i32
    %c0_i32_0 = arith.constant 0 : i32
    return %arg0, %c0_i32, %arg1 : i32, i32, i32
  }
}

</mosaic_0001>

<llo_original>
// kernel: point_transformer_last.13
$region0: #{point_transformer_last.13}
  #allocation0 [shape = 'u32[]', space=smem, size = 0x4, offset = 0x4, fixed_abs, tag = 'smem constant byte address 0x4 - core index']
  #allocation1 [shape = 'u32[144,128]{1,0:T(1,128)}', space=vmem, size = 0x12000, scoped, tag = 'internal scratch']
  %s0 = inlined_call_operand.vmem [shape: bf16[2,64,128], index: 0, kind: input, shape index: {}]
  %s1 = inlined_call_operand.vmem [shape: f32[64,1], index: 1, kind: input, shape index: {}]
  %s2 = inlined_call_operand.vmem [shape: f32[64,1], index: 2, kind: input, shape index: {}]
  %s3 = inlined_call_operand.vmem [shape: f32[2,64,128], index: 3, kind: output, shape index: {}]
  %s4 = sld [smem:[#allocation0]]
  $region45: #{point_transformer_last.13} parent=0
    _
  %s6 = ssub.s32 1, %s4
  %s7 = scalar_select 0, %s6, %s4
  loop: start=0, step=1, limit=4
  $region2: #{point_transformer_last.13} parent=0 // loop_pre_header
    _
  $region3: #{point_transformer_last.13} parent=0 // loop_header
    %s9 = sphi 0, %s13
    %p10 = scmp.ge.s32.totalorder %s9, 4
    %s16 = sphi 0, %s28
    %s17 = sphi 0, %s24
    %s18 = sphi 0, %s16
    %s19 = sphi 0, %s17
    %s20 = sphi 0, %s18
    %s21 = sphi 0, %s19
    %s33 = sphi 0, %s35
    %s36 = sphi 0, %s33
    %s37 = sphi 0, %s36
    %s53 = sphi 0, %s37
    %s57 = sphi 0, %s57
    %s59 = sphi 0, %s57
    %s60 = sphi 0, %s59
    %s74 = sphi 0, %s60
    %s78 = sphi 0, %s78
    %s80 = sphi 0, %s78
    %s81 = sphi 0, %s80
    %s95 = sphi 0, %s81
    %s103 = sphi 0, %s105
    %s106 = sphi 0, %s103
    %s107 = sphi 0, %s106
    %s123 = sphi 0, %s107
  $region4: #{point_transformer_last.13} parent=0 // loop_header_branch
    %12 = sbr.rel (%p10) target = $region8
  $region5: #{point_transformer_last.13} parent=0 // loop_body
    %s14 = ssub.s32 %s9, 1
    %s15 = ssub.s32 %s9, 2
    %s22 = sadd.s32 1, %s17
    %p23 = scmp.ge.s32.totalorder %s22, 1
    %s24 = scalar_select %p23, 0, %s22
    %s25 = sadd.s32 1, %s16
    %s26 = scalar_select %p23, %s25, %s16
    %p27 = scmp.ge.s32.totalorder %s26, 2
    %s28 = scalar_select %p27, 0, %s26
    %s29 = ssub.s32 %s16, %s28
    %s30 = ssub.s32 %s17, %s24
    %s31 = sor.u32 %s29, %s30
    %p32 = scmp.eq.s32.totalorder %s31, 0
    %s34 = sadd.s32 %s33, 1
    %s35 = scalar_select %p32, %s33, %s34
    %p38 = pneg %p32
    %p39 = scmp.eq.s32.totalorder %s9, 1
    %p40 = por %p38, %p39
    %p41 = scmp.ne.s32.totalorder %s33, %s36
    %p42 = scmp.eq.s32.totalorder %s9, 0
    %p43 = por %p41, %p42
    %p44 = scmp.ne.s32.totalorder %s33, %s36
    %p45 = scmp.eq.s32.totalorder %s14, 1
    %p46 = por %p44, %p45
    %p47 = scmp.ne.s32.totalorder %s36, %s37
    %p48 = scmp.eq.s32.totalorder %s14, 0
    %p49 = por %p47, %p48
    %p50 = scmp.ne.s32.totalorder %s36, %s37
    %p51 = scmp.eq.s32.totalorder %s15, 1
    %p52 = por %p50, %p51
    %p54 = scmp.ne.s32.totalorder %s37, %s53
    %p55 = scmp.eq.s32.totalorder %s15, 0
    %p56 = por %p54, %p55
    %s58 = sadd.s32 %s57, 1
    %p61 = scmp.eq.s32.totalorder %s9, 1
    %p62 = scmp.ne.s32.totalorder %s57, %s59
    %p63 = scmp.eq.s32.totalorder %s9, 0
    %p64 = por %p62, %p63
    %p65 = scmp.ne.s32.totalorder %s57, %s59
    %p66 = scmp.eq.s32.totalorder %s14, 1
    %p67 = por %p65, %p66
    %p68 = scmp.ne.s32.totalorder %s59, %s60
    %p69 = scmp.eq.s32.totalorder %s14, 0
    %p70 = por %p68, %p69
    %p71 = scmp.ne.s32.totalorder %s59, %s60
    %p72 = scmp.eq.s32.totalorder %s15, 1
    %p73 = por %p71, %p72
    %p75 = scmp.ne.s32.totalorder %s60, %s74
    %p76 = scmp.eq.s32.totalorder %s15, 0
    %p77 = por %p75, %p76
    %s79 = sadd.s32 %s78, 1
    %p82 = scmp.eq.s32.totalorder %s9, 1
    %p83 = scmp.ne.s32.totalorder %s78, %s80
    %p84 = scmp.eq.s32.totalorder %s9, 0
    %p85 = por %p83, %p84
    %p86 = scmp.ne.s32.totalorder %s78, %s80
    %p87 = scmp.eq.s32.totalorder %s14, 1
    %p88 = por %p86, %p87
    %p89 = scmp.ne.s32.totalorder %s80, %s81
    %p90 = scmp.eq.s32.totalorder %s14, 0
    %p91 = por %p89, %p90
    %p92 = scmp.ne.s32.totalorder %s80, %s81
    %p93 = scmp.eq.s32.totalorder %s15, 1
    %p94 = por %p92, %p93
    %p96 = scmp.ne.s32.totalorder %s81, %s95
    %p97 = scmp.eq.s32.totalorder %s15, 0
    %p98 = por %p96, %p97
    %s99 = ssub.s32 %s16, %s28
    %s100 = ssub.s32 %s17, %s24
    %s101 = sor.u32 %s99, %s100
    %p102 = scmp.eq.s32.totalorder %s101, 0
    %s104 = sadd.s32 %s103, 1
    %s105 = scalar_select %p102, %s103, %s104
    %p108 = pneg %p102
    %p109 = scmp.eq.s32.totalorder %s9, 1
    %p110 = por %p108, %p109
    %p111 = scmp.ne.s32.totalorder %s103, %s106
    %p112 = scmp.eq.s32.totalorder %s9, 0
    %p113 = por %p111, %p112
    %p114 = scmp.ne.s32.totalorder %s103, %s106
    %p115 = scmp.eq.s32.totalorder %s14, 1
    %p116 = por %p114, %p115
    %p117 = scmp.ne.s32.totalorder %s106, %s107
    %p118 = scmp.eq.s32.totalorder %s14, 0
    %p119 = por %p117, %p118
    %p120 = scmp.ne.s32.totalorder %s106, %s107
    %p121 = scmp.eq.s32.totalorder %s15, 1
    %p122 = por %p120, %p121
    %p124 = scmp.ne.s32.totalorder %s107, %s123
    %p125 = scmp.eq.s32.totalorder %s15, 0
    %p126 = por %p124, %p125
    %p127 = scmp.le.s32.totalorder 1, %s9
    %p128 = scmp.lt.s32.totalorder %s9, 3
    %p129 = pnand %p127, %p128
    %p130 = pneg %p129
    // Predicated region
    $region9: #{point_transformer_last.13} parent=5 // pred_check
      _
    $region10: #{point_transformer_last.13} parent=5 // pred_check_branch
      %132 = sbr.rel (%p129) target = $region12
    $region11: #{point_transformer_last.13} parent=5 // pred_region
      %s133 = ssub.s32 %s9, 1
      // Predicated region
      $region13: #{point_transformer_last.13} parent=11 // pred_check
        %p134 = pneg %p70
      $region14: #{point_transformer_last.13} parent=11 // pred_check_branch
        %136 = sbr.rel (%p134) target = $region16
      $region15: #{point_transformer_last.13} parent=11 // pred_region
        _
      $region16: #{point_transformer_last.13} parent=11 // pred_fallthru
        _
      // Predicated region
      $region17: #{point_transformer_last.13} parent=11 // pred_check
        %p137 = pneg %p91
      $region18: #{point_transformer_last.13} parent=11 // pred_check_branch
        %139 = sbr.rel (%p137) target = $region20
      $region19: #{point_transformer_last.13} parent=11 // pred_region
        _
      $region20: #{point_transformer_last.13} parent=11 // pred_fallthru
        _
    $region12: #{point_transformer_last.13} parent=5 // pred_fallthru
      _
    %p140 = scmp.lt.s32.totalorder %s9, 2
    // Predicated region
    $region21: #{point_transformer_last.13} parent=5 // pred_check
      %p141 = pneg %p140
    $region22: #{point_transformer_last.13} parent=5 // pred_check_branch
      %143 = sbr.rel (%p141) target = $region24
    $region23: #{point_transformer_last.13} parent=5 // pred_region
      // Predicated region
      $region25: #{point_transformer_last.13} parent=23 // pred_check
        %p144 = pneg %p43
      $region26: #{point_transformer_last.13} parent=23 // pred_check_branch
        %146 = sbr.rel (%p144) target = $region28
      $region27: #{point_transformer_last.13} parent=23 // pred_region
        %p147 = scmp.lt.s32.totalorder %s16, 1
        %s148 = scalar_select %p147, %s16, 1
        %p149 = scmp.lt.s32.totalorder %s17, 0
        %s150 = scalar_select %p149, %s17, 0
        %s151 = smul.addr %s148, 8
        %s152 = sadd.s32 %s150, %s151
        %s153 = smul.addr %s152, 4
        %s154 = scalar_lea.vmem %s0, %s153
      $region28: #{point_transformer_last.13} parent=23 // pred_fallthru
        _
    $region24: #{point_transformer_last.13} parent=5 // pred_fallthru
      _
    %p155 = scmp.le.s32.totalorder 1, %s9
    %p156 = scmp.lt.s32.totalorder %s9, 3
    %p157 = pnand %p155, %p156
    %p158 = pneg %p157
    // Predicated region
    $region29: #{point_transformer_last.13} parent=5 // pred_check
      _
    $region30: #{point_transformer_last.13} parent=5 // pred_check_branch
      %160 = sbr.rel (%p157) target = $region32
    $region31: #{point_transformer_last.13} parent=5 // pred_region
      %s161 = ssub.s32 %s9, 1
      %p162 = scmp.lt.s32.totalorder %s18, 1
      %s163 = scalar_select %p162, %s18, 1
      %p164 = scmp.lt.s32.totalorder %s19, 0
      %s165 = scalar_select %p164, %s19, 0
      %s166 = smul.addr %s163, 8
      %s167 = sadd.s32 %s165, %s166
      %s168 = smul.addr %s167, 4
      %s169 = scalar_lea.vmem %s0, %s168
      %p170 = pneg %p49
      %p171 = pneg %p46
      %p172 = pneg %p70
      %p173 = pneg %p67
      %p174 = pneg %p91
      %p175 = pneg %p88
      %p176 = pneg %p119
      %p177 = pneg %p116
      %p178 = scmp.lt.s32.totalorder %s18, 1
      %s179 = scalar_select %p178, %s18, 1
      %p180 = scmp.lt.s32.totalorder %s19, 0
      %s181 = scalar_select %p180, %s19, 0
      %s182 = smul.addr %s179, 8
      %s183 = sadd.s32 %s181, %s182
      %s184 = smul.addr %s183, 8
      %s185 = scalar_lea.vmem %s3, %s184
      %p186 = scmp.lt.s32.totalorder %s18, 1
      %s187 = scalar_select %p186, %s18, 1
      %p188 = scmp.lt.s32.totalorder %s19, 0
      %s189 = scalar_select %p188, %s19, 0
      %s190 = smul.addr %s187, 8
      %s191 = sadd.s32 %s189, %s190
      %s192 = smul.addr %s191, 4
      %s193 = scalar_lea.vmem %s0, %s192
      %p194 = scmp.lt.s32.totalorder %s18, 1
      %s195 = scalar_select %p194, %s18, 1
      %p196 = scmp.lt.s32.totalorder %s19, 0
      %s197 = scalar_select %p196, %s19, 0
      %s198 = smul.addr %s195, 8
      %s199 = sadd.s32 %s197, %s198
      %s200 = smul.addr %s199, 8
      %s201 = scalar_lea.vmem %s3, %s200
      %v202 = vld [vmem:[%s193] sm:$0xf]
      %v203 = vld [vmem:[%s193 + $0x4] sm:$0xf]
      %v204 = vld [vmem:[%s193 + $0x8] sm:$0xf]
      %v205 = vld [vmem:[%s193 + $0xc] sm:$0xf]
      %v206 = vld [vmem:[%s193 + $0x10] sm:$0xf]
      %v207 = vld [vmem:[%s193 + $0x14] sm:$0xf]
      %v208 = vld [vmem:[%s193 + $0x18] sm:$0xf]
      %v209 = vld [vmem:[%s193 + $0x1c] sm:$0xf]
      %v210 = vunpack.c.l.bf16 %v202
      %v211 = vunpack.c.l.bf16 %v203
      %v212 = vunpack.c.l.bf16 %v204
      %v213 = vunpack.c.l.bf16 %v205
      %v214 = vunpack.c.l.bf16 %v206
      %v215 = vunpack.c.l.bf16 %v207
      %v216 = vunpack.c.l.bf16 %v208
      %v217 = vunpack.c.l.bf16 %v209
      %v218 = vld [vmem:[%s1] sm:$0xff]
      %v219 = vld [vmem:[%s1 + $0x8] sm:$0xff]
      %v220 = vld [vmem:[%s1 + $0x10] sm:$0xff]
      %v221 = vld [vmem:[%s1 + $0x18] sm:$0xff]
      %v222 = vld [vmem:[%s1 + $0x20] sm:$0xff]
      %v223 = vld [vmem:[%s1 + $0x28] sm:$0xff]
      %v224 = vld [vmem:[%s1 + $0x30] sm:$0xff]
      %v225 = vld [vmem:[%s1 + $0x38] sm:$0xff]
      %227 = vset.pattern.permute.xlu0 0
      %228 = vperm.xlu0 %227, %v218
      %v229 = vpop.permute.xlu0 %228
      %232 = vset.pattern.permute.xlu0 0
      %233 = vperm.xlu0 %232, %v219
      %v234 = vpop.permute.xlu0 %233
      %237 = vset.pattern.permute.xlu0 0
      %238 = vperm.xlu0 %237, %v220
      %v239 = vpop.permute.xlu0 %238
      %242 = vset.pattern.permute.xlu0 0
      %243 = vperm.xlu0 %242, %v221
      %v244 = vpop.permute.xlu0 %243
      %247 = vset.pattern.permute.xlu0 0
      %248 = vperm.xlu0 %247, %v222
      %v249 = vpop.permute.xlu0 %248
      %252 = vset.pattern.permute.xlu0 0
      %253 = vperm.xlu0 %252, %v223
      %v254 = vpop.permute.xlu0 %253
      %257 = vset.pattern.permute.xlu0 0
      %258 = vperm.xlu0 %257, %v224
      %v259 = vpop.permute.xlu0 %258
      %262 = vset.pattern.permute.xlu0 0
      %263 = vperm.xlu0 %262, %v225
      %v264 = vpop.permute.xlu0 %263
      %v266 = vmul.f32 %v210, %v229
      %v267 = vmul.f32 %v211, %v234
      %v268 = vmul.f32 %v212, %v239
      %v269 = vmul.f32 %v213, %v244
      %v270 = vmul.f32 %v214, %v249
      %v271 = vmul.f32 %v215, %v254
      %v272 = vmul.f32 %v216, %v259
      %v273 = vmul.f32 %v217, %v264
      %v274 = vld [vmem:[%s2] sm:$0xff]
      %v275 = vld [vmem:[%s2 + $0x8] sm:$0xff]
      %v276 = vld [vmem:[%s2 + $0x10] sm:$0xff]
      %v277 = vld [vmem:[%s2 + $0x18] sm:$0xff]
      %v278 = vld [vmem:[%s2 + $0x20] sm:$0xff]
      %v279 = vld [vmem:[%s2 + $0x28] sm:$0xff]
      %v280 = vld [vmem:[%s2 + $0x30] sm:$0xff]
      %v281 = vld [vmem:[%s2 + $0x38] sm:$0xff]
      %283 = vset.pattern.permute.xlu0 0
      %284 = vperm.xlu0 %283, %v274
      %v285 = vpop.permute.xlu0 %284
      %288 = vset.pattern.permute.xlu0 0
      %289 = vperm.xlu0 %288, %v275
      %v290 = vpop.permute.xlu0 %289
      %293 = vset.pattern.permute.xlu0 0
      %294 = vperm.xlu0 %293, %v276
      %v295 = vpop.permute.xlu0 %294
      %298 = vset.pattern.permute.xlu0 0
      %299 = vperm.xlu0 %298, %v277
      %v300 = vpop.permute.xlu0 %299
      %303 = vset.pattern.permute.xlu0 0
      %304 = vperm.xlu0 %303, %v278
      %v305 = vpop.permute.xlu0 %304
      %308 = vset.pattern.permute.xlu0 0
      %309 = vperm.xlu0 %308, %v279
      %v310 = vpop.permute.xlu0 %309
      %313 = vset.pattern.permute.xlu0 0
      %314 = vperm.xlu0 %313, %v280
      %v315 = vpop.permute.xlu0 %314
      %318 = vset.pattern.permute.xlu0 0
      %319 = vperm.xlu0 %318, %v281
      %v320 = vpop.permute.xlu0 %319
      %v322 = vadd.f32 %v266, %v285
      %v323 = vadd.f32 %v267, %v290
      %v324 = vadd.f32 %v268, %v295
      %v325 = vadd.f32 %v269, %v300
      %v326 = vadd.f32 %v270, %v305
      %v327 = vadd.f32 %v271, %v310
      %v328 = vadd.f32 %v272, %v315
      %v329 = vadd.f32 %v273, %v320
      %v330 = vmax.f32 %v322, 0.0
      %v331 = vmax.f32 %v323, 0.0
      %v332 = vmax.f32 %v324, 0.0
      %v333 = vmax.f32 %v325, 0.0
      %v334 = vmax.f32 %v326, 0.0
      %v335 = vmax.f32 %v327, 0.0
      %v336 = vmax.f32 %v328, 0.0
      %v337 = vmax.f32 %v329, 0.0
      %338 = vst [vmem:[%s201] sm:$0xff] %v330
      %339 = vst [vmem:[%s201 + $0x8] sm:$0xff] %v331
      %340 = vst [vmem:[%s201 + $0x10] sm:$0xff] %v332
      %341 = vst [vmem:[%s201 + $0x18] sm:$0xff] %v333
      %342 = vst [vmem:[%s201 + $0x20] sm:$0xff] %v334
      %343 = vst [vmem:[%s201 + $0x28] sm:$0xff] %v335
      %344 = vst [vmem:[%s201 + $0x30] sm:$0xff] %v336
      %345 = vst [vmem:[%s201 + $0x38] sm:$0xff] %v337
      %p346 = scmp.lt.s32.totalorder %s18, 1
      %s347 = scalar_select %p346, %s18, 1
      %p348 = scmp.lt.s32.totalorder %s19, 0
      %s349 = scalar_select %p348, %s19, 0
      %s350 = smul.addr %s347, 8
      %s351 = sadd.s32 %s349, %s350
      %s352 = smul.addr %s351, 8
      %s353 = scalar_lea.vmem %s3, %s352
      // Predicated region
      $region33: #{point_transformer_last.13} parent=31 // pred_check
        %p354 = pneg %p116
      $region34: #{point_transformer_last.13} parent=31 // pred_check_branch
        %356 = sbr.rel (%p354) target = $region36
      $region35: #{point_transformer_last.13} parent=31 // pred_region
        _
      $region36: #{point_transformer_last.13} parent=31 // pred_fallthru
        _
    $region32: #{point_transformer_last.13} parent=5 // pred_fallthru
      _
    %p357 = scmp.le.s32.totalorder 2, %s9
    // Predicated region
    $region37: #{point_transformer_last.13} parent=5 // pred_check
      %p358 = pneg %p357
    $region38: #{point_transformer_last.13} parent=5 // pred_check_branch
      %360 = sbr.rel (%p358) target = $region40
    $region39: #{point_transformer_last.13} parent=5 // pred_region
      %s361 = ssub.s32 %s9, 2
      // Predicated region
      $region41: #{point_transformer_last.13} parent=39 // pred_check
        %p362 = pneg %p122
      $region42: #{point_transformer_last.13} parent=39 // pred_check_branch
        %364 = sbr.rel (%p362) target = $region44
      $region43: #{point_transformer_last.13} parent=39 // pred_region
        %p365 = scmp.lt.s32.totalorder %s20, 1
        %s366 = scalar_select %p365, %s20, 1
        %p367 = scmp.lt.s32.totalorder %s21, 0
        %s368 = scalar_select %p367, %s21, 0
        %s369 = smul.addr %s366, 8
        %s370 = sadd.s32 %s368, %s369
        %s371 = smul.addr %s370, 8
        %s372 = scalar_lea.vmem %s3, %s371
      $region44: #{point_transformer_last.13} parent=39 // pred_fallthru
        _
    $region40: #{point_transformer_last.13} parent=5 // pred_fallthru
      _
  $region6: #{point_transformer_last.13} parent=0 // loop_footer
    %s13 = sadd.s32 1, %s9
  $region7: #{point_transformer_last.13} parent=0 // loop_footer_branch
    %8 = sbr.rel target = $region3
  $region8: #{point_transformer_last.13} parent=0 // loop_exit
    _

// kernel: point_transformer_last.12
$region0: #{point_transformer_last.12}
  #allocation0 [shape = 'u32[]', space=smem, size = 0x4, offset = 0x4, fixed_abs, tag = 'smem constant byte address 0x4 - core index']
  #allocation1 [shape = 'u32[144,128]{1,0:T(1,128)}', space=vmem, size = 0x12000, scoped, tag = 'internal scratch']
  %s0 = inlined_call_operand.vmem [shape: bf16[2,64,128], index: 0, kind: input, shape index: {}]
  %s1 = inlined_call_operand.vmem [shape: f32[64,1], index: 1, kind: input, shape index: {}]
  %s2 = inlined_call_operand.vmem [shape: f32[64,1], index: 2, kind: input, shape index: {}]
  %s3 = inlined_call_operand.vmem [shape: bf16[64,64], index: 3, kind: input, shape index: {}]
  %s4 = inlined_call_operand.vmem [shape: bf16[2,64,128], index: 4, kind: output, shape index: {0}]
  %s5 = inlined_call_operand.vmem [shape: f32[2,1,64,1], index: 5, kind: output, shape index: {1}]
  %s6 = inlined_call_operand.vmem [shape: f32[2,1,64,1], index: 6, kind: output, shape index: {2}]
  %7 = xla_tuple %s4, %s5, %s6
  %s8 = sld [smem:[#allocation0]]
  $region65: #{point_transformer_last.12} parent=0
    _
  %s10 = ssub.s32 1, %s8
  %s11 = scalar_select 0, %s10, %s8
  loop: start=0, step=1, limit=4
  $region2: #{point_transformer_last.12} parent=0 // loop_pre_header
    _
  $region3: #{point_transformer_last.12} parent=0 // loop_header
    %s13 = sphi 0, %s17
    %p14 = scmp.ge.s32.totalorder %s13, 4
    %s20 = sphi 0, %s32
    %s21 = sphi 0, %s28
    %s22 = sphi 0, %s20
    %s23 = sphi 0, %s21
    %s24 = sphi 0, %s22
    %s25 = sphi 0, %s23
    %s37 = sphi 0, %s39
    %s40 = sphi 0, %s37
    %s41 = sphi 0, %s40
    %s57 = sphi 0, %s41
    %s61 = sphi 0, %s61
    %s63 = sphi 0, %s61
    %s64 = sphi 0, %s63
    %s78 = sphi 0, %s64
    %s82 = sphi 0, %s82
    %s84 = sphi 0, %s82
    %s85 = sphi 0, %s84
    %s99 = sphi 0, %s85
    %s103 = sphi 0, %s103
    %s105 = sphi 0, %s103
    %s106 = sphi 0, %s105
    %s120 = sphi 0, %s106
    %s128 = sphi 0, %s130
    %s131 = sphi 0, %s128
    %s132 = sphi 0, %s131
    %s148 = sphi 0, %s132
    %s156 = sphi 0, %s158
    %s159 = sphi 0, %s156
    %s160 = sphi 0, %s159
    %s176 = sphi 0, %s160
    %s184 = sphi 0, %s186
    %s187 = sphi 0, %s184
    %s188 = sphi 0, %s187
    %s204 = sphi 0, %s188
  $region4: #{point_transformer_last.12} parent=0 // loop_header_branch
    %16 = sbr.rel (%p14) target = $region8
  $region5: #{point_transformer_last.12} parent=0 // loop_body
    %s18 = ssub.s32 %s13, 1
    %s19 = ssub.s32 %s13, 2
    %s26 = sadd.s32 1, %s21
    %p27 = scmp.ge.s32.totalorder %s26, 1
    %s28 = scalar_select %p27, 0, %s26
    %s29 = sadd.s32 1, %s20
    %s30 = scalar_select %p27, %s29, %s20
    %p31 = scmp.ge.s32.totalorder %s30, 2
    %s32 = scalar_select %p31, 0, %s30
    %s33 = ssub.s32 %s20, %s32
    %s34 = ssub.s32 %s21, %s28
    %s35 = sor.u32 %s33, %s34
    %p36 = scmp.eq.s32.totalorder %s35, 0
    %s38 = sadd.s32 %s37, 1
    %s39 = scalar_select %p36, %s37, %s38
    %p42 = pneg %p36
    %p43 = scmp.eq.s32.totalorder %s13, 1
    %p44 = por %p42, %p43
    %p45 = scmp.ne.s32.totalorder %s37, %s40
    %p46 = scmp.eq.s32.totalorder %s13, 0
    %p47 = por %p45, %p46
    %p48 = scmp.ne.s32.totalorder %s37, %s40
    %p49 = scmp.eq.s32.totalorder %s18, 1
    %p50 = por %p48, %p49
    %p51 = scmp.ne.s32.totalorder %s40, %s41
    %p52 = scmp.eq.s32.totalorder %s18, 0
    %p53 = por %p51, %p52
    %p54 = scmp.ne.s32.totalorder %s40, %s41
    %p55 = scmp.eq.s32.totalorder %s19, 1
    %p56 = por %p54, %p55
    %p58 = scmp.ne.s32.totalorder %s41, %s57
    %p59 = scmp.eq.s32.totalorder %s19, 0
    %p60 = por %p58, %p59
    %s62 = sadd.s32 %s61, 1
    %p65 = scmp.eq.s32.totalorder %s13, 1
    %p66 = scmp.ne.s32.totalorder %s61, %s63
    %p67 = scmp.eq.s32.totalorder %s13, 0
    %p68 = por %p66, %p67
    %p69 = scmp.ne.s32.totalorder %s61, %s63
    %p70 = scmp.eq.s32.totalorder %s18, 1
    %p71 = por %p69, %p70
    %p72 = scmp.ne.s32.totalorder %s63, %s64
    %p73 = scmp.eq.s32.totalorder %s18, 0
    %p74 = por %p72, %p73
    %p75 = scmp.ne.s32.totalorder %s63, %s64
    %p76 = scmp.eq.s32.totalorder %s19, 1
    %p77 = por %p75, %p76
    %p79 = scmp.ne.s32.totalorder %s64, %s78
    %p80 = scmp.eq.s32.totalorder %s19, 0
    %p81 = por %p79, %p80
    %s83 = sadd.s32 %s82, 1
    %p86 = scmp.eq.s32.totalorder %s13, 1
    %p87 = scmp.ne.s32.totalorder %s82, %s84
    %p88 = scmp.eq.s32.totalorder %s13, 0
    %p89 = por %p87, %p88
    %p90 = scmp.ne.s32.totalorder %s82, %s84
    %p91 = scmp.eq.s32.totalorder %s18, 1
    %p92 = por %p90, %p91
    %p93 = scmp.ne.s32.totalorder %s84, %s85
    %p94 = scmp.eq.s32.totalorder %s18, 0
    %p95 = por %p93, %p94
    %p96 = scmp.ne.s32.totalorder %s84, %s85
    %p97 = scmp.eq.s32.totalorder %s19, 1
    %p98 = por %p96, %p97
    %p100 = scmp.ne.s32.totalorder %s85, %s99
    %p101 = scmp.eq.s32.totalorder %s19, 0
    %p102 = por %p100, %p101
    %s104 = sadd.s32 %s103, 1
    %p107 = scmp.eq.s32.totalorder %s13, 1
    %p108 = scmp.ne.s32.totalorder %s103, %s105
    %p109 = scmp.eq.s32.totalorder %s13, 0
    %p110 = por %p108, %p109
    %p111 = scmp.ne.s32.totalorder %s103, %s105
    %p112 = scmp.eq.s32.totalorder %s18, 1
    %p113 = por %p111, %p112
    %p114 = scmp.ne.s32.totalorder %s105, %s106
    %p115 = scmp.eq.s32.totalorder %s18, 0
    %p116 = por %p114, %p115
    %p117 = scmp.ne.s32.totalorder %s105, %s106
    %p118 = scmp.eq.s32.totalorder %s19, 1
    %p119 = por %p117, %p118
    %p121 = scmp.ne.s32.totalorder %s106, %s120
    %p122 = scmp.eq.s32.totalorder %s19, 0
    %p123 = por %p121, %p122
    %s124 = ssub.s32 %s20, %s32
    %s125 = ssub.s32 %s21, %s28
    %s126 = sor.u32 %s124, %s125
    %p127 = scmp.eq.s32.totalorder %s126, 0
    %s129 = sadd.s32 %s128, 1
    %s130 = scalar_select %p127, %s128, %s129
    %p133 = pneg %p127
    %p134 = scmp.eq.s32.totalorder %s13, 1
    %p135 = por %p133, %p134
    %p136 = scmp.ne.s32.totalorder %s128, %s131
    %p137 = scmp.eq.s32.totalorder %s13, 0
    %p138 = por %p136, %p137
    %p139 = scmp.ne.s32.totalorder %s128, %s131
    %p140 = scmp.eq.s32.totalorder %s18, 1
    %p141 = por %p139, %p140
    %p142 = scmp.ne.s32.totalorder %s131, %s132
    %p143 = scmp.eq.s32.totalorder %s18, 0
    %p144 = por %p142, %p143
    %p145 = scmp.ne.s32.totalorder %s131, %s132
    %p146 = scmp.eq.s32.totalorder %s19, 1
    %p147 = por %p145, %p146
    %p149 = scmp.ne.s32.totalorder %s132, %s148
    %p150 = scmp.eq.s32.totalorder %s19, 0
    %p151 = por %p149, %p150
    %s152 = ssub.s32 %s20, %s32
    %s153 = ssub.s32 %s21, %s28
    %s154 = sor.u32 %s152, %s153
    %p155 = scmp.eq.s32.totalorder %s154, 0
    %s157 = sadd.s32 %s156, 1
    %s158 = scalar_select %p155, %s156, %s157
    %p161 = pneg %p155
    %p162 = scmp.eq.s32.totalorder %s13, 1
    %p163 = por %p161, %p162
    %p164 = scmp.ne.s32.totalorder %s156, %s159
    %p165 = scmp.eq.s32.totalorder %s13, 0
    %p166 = por %p164, %p165
    %p167 = scmp.ne.s32.totalorder %s156, %s159
    %p168 = scmp.eq.s32.totalorder %s18, 1
    %p169 = por %p167, %p168
    %p170 = scmp.ne.s32.totalorder %s159, %s160
    %p171 = scmp.eq.s32.totalorder %s18, 0
    %p172 = por %p170, %p171
    %p173 = scmp.ne.s32.totalorder %s159, %s160
    %p174 = scmp.eq.s32.totalorder %s19, 1
    %p175 = por %p173, %p174
    %p177 = scmp.ne.s32.totalorder %s160, %s176
    %p178 = scmp.eq.s32.totalorder %s19, 0
    %p179 = por %p177, %p178
    %s180 = ssub.s32 %s20, %s32
    %s181 = ssub.s32 %s21, %s28
    %s182 = sor.u32 %s180, %s181
    %p183 = scmp.eq.s32.totalorder %s182, 0
    %s185 = sadd.s32 %s184, 1
    %s186 = scalar_select %p183, %s184, %s185
    %p189 = pneg %p183
    %p190 = scmp.eq.s32.totalorder %s13, 1
    %p191 = por %p189, %p190
    %p192 = scmp.ne.s32.totalorder %s184, %s187
    %p193 = scmp.eq.s32.totalorder %s13, 0
    %p194 = por %p192, %p193
    %p195 = scmp.ne.s32.totalorder %s184, %s187
    %p196 = scmp.eq.s32.totalorder %s18, 1
    %p197 = por %p195, %p196
    %p198 = scmp.ne.s32.totalorder %s187, %s188
    %p199 = scmp.eq.s32.totalorder %s18, 0
    %p200 = por %p198, %p199
    %p201 = scmp.ne.s32.totalorder %s187, %s188
    %p202 = scmp.eq.s32.totalorder %s19, 1
    %p203 = por %p201, %p202
    %p205 = scmp.ne.s32.totalorder %s188, %s204
    %p206 = scmp.eq.s32.totalorder %s19, 0
    %p207 = por %p205, %p206
    %p208 = scmp.le.s32.totalorder 1, %s13
    %p209 = scmp.lt.s32.totalorder %s13, 3
    %p210 = pnand %p208, %p209
    %p211 = pneg %p210
    // Predicated region
    $region9: #{point_transformer_last.12} parent=5 // pred_check
      _
    $region10: #{point_transformer_last.12} parent=5 // pred_check_branch
      %213 = sbr.rel (%p210) target = $region12
    $region11: #{point_transformer_last.12} parent=5 // pred_region
      %s214 = ssub.s32 %s13, 1
      // Predicated region
      $region13: #{point_transformer_last.12} parent=11 // pred_check
        %p215 = pneg %p74
      $region14: #{point_transformer_last.12} parent=11 // pred_check_branch
        %217 = sbr.rel (%p215) target = $region16
      $region15: #{point_transformer_last.12} parent=11 // pred_region
        _
      $region16: #{point_transformer_last.12} parent=11 // pred_fallthru
        _
      // Predicated region
      $region17: #{point_transformer_last.12} parent=11 // pred_check
        %p218 = pneg %p95
      $region18: #{point_transformer_last.12} parent=11 // pred_check_branch
        %220 = sbr.rel (%p218) target = $region20
      $region19: #{point_transformer_last.12} parent=11 // pred_region
        _
      $region20: #{point_transformer_last.12} parent=11 // pred_fallthru
        _
      // Predicated region
      $region21: #{point_transformer_last.12} parent=11 // pred_check
        %p221 = pneg %p116
      $region22: #{point_transformer_last.12} parent=11 // pred_check_branch
        %223 = sbr.rel (%p221) target = $region24
      $region23: #{point_transformer_last.12} parent=11 // pred_region
        _
      $region24: #{point_transformer_last.12} parent=11 // pred_fallthru
        _
    $region12: #{point_transformer_last.12} parent=5 // pred_fallthru
      _
    %p224 = scmp.lt.s32.totalorder %s13, 2
    // Predicated region
    $region25: #{point_transformer_last.12} parent=5 // pred_check
      %p225 = pneg %p224
    $region26: #{point_transformer_last.12} parent=5 // pred_check_branch
      %227 = sbr.rel (%p225) target = $region28
    $region27: #{point_transformer_last.12} parent=5 // pred_region
      // Predicated region
      $region29: #{point_transformer_last.12} parent=27 // pred_check
        %p228 = pneg %p47
      $region30: #{point_transformer_last.12} parent=27 // pred_check_branch
        %230 = sbr.rel (%p228) target = $region32
      $region31: #{point_transformer_last.12} parent=27 // pred_region
        %p231 = scmp.lt.s32.totalorder %s20, 1
        %s232 = scalar_select %p231, %s20, 1
        %p233 = scmp.lt.s32.totalorder %s21, 0
        %s234 = scalar_select %p233, %s21, 0
        %s235 = smul.addr %s232, 8
        %s236 = sadd.s32 %s234, %s235
        %s237 = smul.addr %s236, 4
        %s238 = scalar_lea.vmem %s0, %s237
      $region32: #{point_transformer_last.12} parent=27 // pred_fallthru
        _
    $region28: #{point_transformer_last.12} parent=5 // pred_fallthru
      _
    %p239 = scmp.le.s32.totalorder 1, %s13
    %p240 = scmp.lt.s32.totalorder %s13, 3
    %p241 = pnand %p239, %p240
    %p242 = pneg %p241
    // Predicated region
    $region33: #{point_transformer_last.12} parent=5 // pred_check
      _
    $region34: #{point_transformer_last.12} parent=5 // pred_check_branch
      %244 = sbr.rel (%p241) target = $region36
    $region35: #{point_transformer_last.12} parent=5 // pred_region
      %s245 = ssub.s32 %s13, 1
      %p246 = scmp.lt.s32.totalorder %s22, 1
      %s247 = scalar_select %p246, %s22, 1
      %p248 = scmp.lt.s32.totalorder %s23, 0
      %s249 = scalar_select %p248, %s23, 0
      %s250 = smul.addr %s247, 8
      %s251 = sadd.s32 %s249, %s250
      %s252 = smul.addr %s251, 4
      %s253 = scalar_lea.vmem %s0, %s252
      %p254 = pneg %p53
      %p255 = pneg %p50
      %p256 = pneg %p74
      %p257 = pneg %p71
      %p258 = pneg %p95
      %p259 = pneg %p92
      %p260 = pneg %p116
      %p261 = pneg %p113
      %p262 = pneg %p144
      %p263 = pneg %p141
      %p264 = scmp.lt.s32.totalorder %s22, 1
      %s265 = scalar_select %p264, %s22, 1
      %p266 = scmp.lt.s32.totalorder %s23, 0
      %s267 = scalar_select %p266, %s23, 0
      %s268 = smul.addr %s265, 8
      %s269 = sadd.s32 %s267, %s268
      %s270 = smul.addr %s269, 4
      %s271 = scalar_lea.vmem %s4, %s270
      %p272 = pneg %p172
      %p273 = pneg %p169
      %p274 = scmp.lt.s32.totalorder %s22, 1
      %s275 = scalar_select %p274, %s22, 1
      %p276 = scmp.lt.s32.totalorder %s23, 0
      %s277 = scalar_select %p276, %s23, 0
      %s278 = smul.addr %s277, 8
      %s279 = smul.addr %s275, 8
      %s280 = sadd.s32 %s278, %s279
      %s281 = smul.addr %s280, 8
      %s282 = scalar_lea.vmem %s5, %s281
      %p283 = pneg %p200
      %p284 = pneg %p197
      %p285 = scmp.lt.s32.totalorder %s22, 1
      %s286 = scalar_select %p285, %s22, 1
      %p287 = scmp.lt.s32.totalorder %s23, 0
      %s288 = scalar_select %p287, %s23, 0
      %s289 = smul.addr %s288, 8
      %s290 = smul.addr %s286, 8
      %s291 = sadd.s32 %s289, %s290
      %s292 = smul.addr %s291, 8
      %s293 = scalar_lea.vmem %s6, %s292
      %p294 = scmp.lt.s32.totalorder %s22, 1
      %s295 = scalar_select %p294, %s22, 1
      %p296 = scmp.lt.s32.totalorder %s23, 0
      %s297 = scalar_select %p296, %s23, 0
      %s298 = smul.addr %s295, 8
      %s299 = sadd.s32 %s297, %s298
      %s300 = smul.addr %s299, 4
      %s301 = scalar_lea.vmem %s0, %s300
      %p302 = scmp.lt.s32.totalorder %s22, 1
      %s303 = scalar_select %p302, %s22, 1
      %p304 = scmp.lt.s32.totalorder %s23, 0
      %s305 = scalar_select %p304, %s23, 0
      %s306 = smul.addr %s303, 8
      %s307 = sadd.s32 %s305, %s306
      %s308 = smul.addr %s307, 4
      %s309 = scalar_lea.vmem %s4, %s308
      %p310 = scmp.lt.s32.totalorder %s22, 1
      %s311 = scalar_select %p310, %s22, 1
      %p312 = scmp.lt.s32.totalorder %s23, 0
      %s313 = scalar_select %p312, %s23, 0
      %s314 = smul.addr %s313, 8
      %s315 = smul.addr %s311, 8
      %s316 = sadd.s32 %s314, %s315
      %s317 = smul.addr %s316, 8
      %s318 = scalar_lea.vmem %s5, %s317
      %p319 = scmp.lt.s32.totalorder %s22, 1
      %s320 = scalar_select %p319, %s22, 1
      %p321 = scmp.lt.s32.totalorder %s23, 0
      %s322 = scalar_select %p321, %s23, 0
      %s323 = smul.addr %s322, 8
      %s324 = smul.addr %s320, 8
      %s325 = sadd.s32 %s323, %s324
      %s326 = smul.addr %s325, 8
      %s327 = scalar_lea.vmem %s6, %s326
      %v329 = vld [vmem:[%s301] sm:$0xf]
      %v330 = vld [vmem:[%s301 + $0x4] sm:$0xf]
      %v331 = vld [vmem:[%s301 + $0x8] sm:$0xf]
      %v332 = vld [vmem:[%s301 + $0xc] sm:$0xf]
      %v333 = vld [vmem:[%s301 + $0x10] sm:$0xf]
      %v334 = vld [vmem:[%s301 + $0x14] sm:$0xf]
      %v335 = vld [vmem:[%s301 + $0x18] sm:$0xf]
      %v336 = vld [vmem:[%s301 + $0x1c] sm:$0xf]
      %v337 = vunpack.c.l.bf16 %v329
      %v338 = vunpack.c.l.bf16 %v330
      %v339 = vunpack.c.l.bf16 %v331
      %v340 = vunpack.c.l.bf16 %v332
      %v341 = vunpack.c.l.bf16 %v333
      %v342 = vunpack.c.l.bf16 %v334
      %v343 = vunpack.c.l.bf16 %v335
      %v344 = vunpack.c.l.bf16 %v336
      %v345 = vld [vmem:[%s1] sm:$0xff]
      %v346 = vld [vmem:[%s1 + $0x8] sm:$0xff]
      %v347 = vld [vmem:[%s1 + $0x10] sm:$0xff]
      %v348 = vld [vmem:[%s1 + $0x18] sm:$0xff]
      %v349 = vld [vmem:[%s1 + $0x20] sm:$0xff]
      %v350 = vld [vmem:[%s1 + $0x28] sm:$0xff]
      %v351 = vld [vmem:[%s1 + $0x30] sm:$0xff]
      %v352 = vld [vmem:[%s1 + $0x38] sm:$0xff]
      %354 = vset.pattern.permute.xlu0 0
      %355 = vperm.xlu0 %354, %v345
      %v356 = vpop.permute.xlu0 %355
      %359 = vset.pattern.permute.xlu0 0
      %360 = vperm.xlu0 %359, %v346
      %v361 = vpop.permute.xlu0 %360
      %364 = vset.pattern.permute.xlu0 0
      %365 = vperm.xlu0 %364, %v347
      %v366 = vpop.permute.xlu0 %365
      %369 = vset.pattern.permute.xlu0 0
      %370 = vperm.xlu0 %369, %v348
      %v371 = vpop.permute.xlu0 %370
      %374 = vset.pattern.permute.xlu0 0
      %375 = vperm.xlu0 %374, %v349
      %v376 = vpop.permute.xlu0 %375
      %379 = vset.pattern.permute.xlu0 0
      %380 = vperm.xlu0 %379, %v350
      %v381 = vpop.permute.xlu0 %380
      %384 = vset.pattern.permute.xlu0 0
      %385 = vperm.xlu0 %384, %v351
      %v386 = vpop.permute.xlu0 %385
      %389 = vset.pattern.permute.xlu0 0
      %390 = vperm.xlu0 %389, %v352
      %v391 = vpop.permute.xlu0 %390
      %v393 = vmul.f32 %v337, %v356
      %v394 = vmul.f32 %v338, %v361
      %v395 = vmul.f32 %v339, %v366
      %v396 = vmul.f32 %v340, %v371
      %v397 = vmul.f32 %v341, %v376
      %v398 = vmul.f32 %v342, %v381
      %v399 = vmul.f32 %v343, %v386
      %v400 = vmul.f32 %v344, %v391
      %v401 = vld [vmem:[%s2] sm:$0xff]
      %v402 = vld [vmem:[%s2 + $0x8] sm:$0xff]
      %v403 = vld [vmem:[%s2 + $0x10] sm:$0xff]
      %v404 = vld [vmem:[%s2 + $0x18] sm:$0xff]
      %v405 = vld [vmem:[%s2 + $0x20] sm:$0xff]
      %v406 = vld [vmem:[%s2 + $0x28] sm:$0xff]
      %v407 = vld [vmem:[%s2 + $0x30] sm:$0xff]
      %v408 = vld [vmem:[%s2 + $0x38] sm:$0xff]
      %410 = vset.pattern.permute.xlu0 0
      %411 = vperm.xlu0 %410, %v401
      %v412 = vpop.permute.xlu0 %411
      %415 = vset.pattern.permute.xlu0 0
      %416 = vperm.xlu0 %415, %v402
      %v417 = vpop.permute.xlu0 %416
      %420 = vset.pattern.permute.xlu0 0
      %421 = vperm.xlu0 %420, %v403
      %v422 = vpop.permute.xlu0 %421
      %425 = vset.pattern.permute.xlu0 0
      %426 = vperm.xlu0 %425, %v404
      %v427 = vpop.permute.xlu0 %426
      %430 = vset.pattern.permute.xlu0 0
      %431 = vperm.xlu0 %430, %v405
      %v432 = vpop.permute.xlu0 %431
      %435 = vset.pattern.permute.xlu0 0
      %436 = vperm.xlu0 %435, %v406
      %v437 = vpop.permute.xlu0 %436
      %440 = vset.pattern.permute.xlu0 0
      %441 = vperm.xlu0 %440, %v407
      %v442 = vpop.permute.xlu0 %441
      %445 = vset.pattern.permute.xlu0 0
      %446 = vperm.xlu0 %445, %v408
      %v447 = vpop.permute.xlu0 %446
      %v449 = vadd.f32 %v393, %v412
      %v450 = vadd.f32 %v394, %v417
      %v451 = vadd.f32 %v395, %v422
      %v452 = vadd.f32 %v396, %v427
      %v453 = vadd.f32 %v397, %v432
      %v454 = vadd.f32 %v398, %v437
      %v455 = vadd.f32 %v399, %v442
      %v456 = vadd.f32 %v400, %v447
      %v457 = vmax.f32 %v449, 0.0
      %v458 = vmax.f32 %v450, 0.0
      %v459 = vmax.f32 %v451, 0.0
      %v460 = vmax.f32 %v452, 0.0
      %v461 = vmax.f32 %v453, 0.0
      %v462 = vmax.f32 %v454, 0.0
      %v463 = vmax.f32 %v455, 0.0
      %v464 = vmax.f32 %v456, 0.0
      %v465 = vld [vmem:[%s3] sm:$0xf]
      %v466 = vld [vmem:[%s3 + $0x4] sm:$0xf]
      %v467 = vld [vmem:[%s3 + $0x8] sm:$0xf]
      %v468 = vld [vmem:[%s3 + $0xc] sm:$0xf]
      %v469 = vld [vmem:[%s3 + $0x10] sm:$0xf]
      %v470 = vld [vmem:[%s3 + $0x14] sm:$0xf]
      %v471 = vld [vmem:[%s3 + $0x18] sm:$0xf]
      %v472 = vld [vmem:[%s3 + $0x1c] sm:$0xf]
      %v473 = vpack.c.bf16 %v458, %v457
      %v474 = vpack.c.bf16 %v460, %v459
      %v475 = vpack.c.bf16 %v462, %v461
      %v476 = vpack.c.bf16 %v464, %v463
      %v485 = vunpack.c.l.b16 %v465
      %v486 = vunpack.c.l.b16 %v466
      %v487 = vunpack.c.l.b16 %v467
      %v488 = vunpack.c.l.b16 %v468
      %v489 = vunpack.c.l.b16 %v469
      %v490 = vunpack.c.l.b16 %v470
      %v491 = vunpack.c.l.b16 %v471
      %v492 = vunpack.c.l.b16 %v472
      %v493 = vpack.c.b16 %v486, %v485
      %v494 = vpack.c.b16 %v488, %v487
      %v495 = vpack.c.b16 %v490, %v489
      %v496 = vpack.c.b16 %v492, %v491
      %vm497 = vcmask 523264
      %v499 = vsel %vm497, %v493, 0
      %v502 = vsel %vm497, %v494, 0
      %v505 = vsel %vm497, %v495, 0
      %v508 = vsel %vm497, %v496, 0
      %510 = vmatprep.subr.bf16.mxu0 0
      %511 = vmatpush1.bf16.msra.mxu0 %v473
      %512 = vmatprep.subr.bf16.mxu0 0
      %513 = vmatpush1.bf16.msra.mxu0 %v474
      %514 = vmatprep.subr.bf16.mxu0 0
      %515 = vmatpush1.bf16.msra.mxu0 %v475
      %516 = vmatprep.subr.bf16.mxu0 0
      %517 = vmatpush1.bf16.msra.mxu0 %v476
      %518 = vmatprep.subr.bf16.mxu0 0
      %519 = vmatpush1.bf16.msra.mxu0 0
      %520 = vmatprep.subr.bf16.mxu0 0
      %521 = vmatpush1.bf16.msra.mxu0 0
      %522 = vmatprep.subr.bf16.mxu0 0
      %523 = vmatpush1.bf16.msra.mxu0 0
      %524 = vmatprep.subr.bf16.mxu0 0
      %525 = vmatpush1.bf16.msra.mxu0 0
      %526 = vmatprep.subr.bf16.mxu0 0
      %527 = vmatpush1.bf16.msra.mxu0 0
      %528 = vmatprep.subr.bf16.mxu0 0
      %529 = vmatpush1.bf16.msra.mxu0 0
      %530 = vmatprep.subr.bf16.mxu0 0
      %531 = vmatpush1.bf16.msra.mxu0 0
      %532 = vmatprep.subr.bf16.mxu0 0
      %533 = vmatpush1.bf16.msra.mxu0 0
      %534 = vmatprep.subr.bf16.mxu0 0
      %535 = vmatpush1.bf16.msra.mxu0 0
      %536 = vmatprep.subr.bf16.mxu0 0
      %537 = vmatpush1.bf16.msra.mxu0 0
      %538 = vmatprep.subr.bf16.mxu0 0
      %539 = vmatpush1.bf16.msra.mxu0 0
      %540 = vmatprep.subr.bf16.mxu0 0
      %541 = vmatpush1.bf16.msra.mxu0 0
      %542 = vmatprep.mubr.bf16.mxu0 0
      %543 = vmatmul.mubr.bf16.gmra.mrb[0].mxu0 %v499
      %v544 = vpop.f32.mrb[0].mxu0
      %v545 = vadd.f32 0.0, %v544
      %v546 = vpop.f32.mrb[0].mxu0
      %v547 = vpop.f32.mrb[0].mxu0
      %v548 = vadd.f32 0.0, %v547
      %v549 = vpop.f32.mrb[0].mxu0
      %550 = vmatprep.mubr.bf16.mxu0 0
      %551 = vmatmul.mubr.bf16.gmra.mrb[0].mxu0 %v502
      %v552 = vpop.f32.mrb[0].mxu0
      %v553 = vadd.f32 0.0, %v552
      %v554 = vpop.f32.mrb[0].mxu0
      %v555 = vpop.f32.mrb[0].mxu0
      %v556 = vadd.f32 0.0, %v555
      %v557 = vpop.f32.mrb[0].mxu0
      %558 = vmatprep.mubr.bf16.mxu0 0
      %559 = vmatmul.mubr.bf16.gmra.mrb[0].mxu0 %v505
      %v560 = vpop.f32.mrb[0].mxu0
      %v561 = vadd.f32 0.0, %v560
      %v562 = vpop.f32.mrb[0].mxu0
      %v563 = vpop.f32.mrb[0].mxu0
      %v564 = vadd.f32 0.0, %v563
      %v565 = vpop.f32.mrb[0].mxu0
      %566 = vmatprep.mubr.bf16.mxu0 0
      %567 = vmatmul.mubr.bf16.gmra.mrb[0].mxu0 %v508
      %v568 = vpop.f32.mrb[0].mxu0
      %v569 = vadd.f32 0.0, %v568
      %v570 = vpop.f32.mrb[0].mxu0
      %v571 = vpop.f32.mrb[0].mxu0
      %v572 = vadd.f32 0.0, %v571
      %v573 = vpop.f32.mrb[0].mxu0
      %574 = vdwg.mxu0
      %v575 = vpack.c.bf16 %v548, %v545
      %v576 = vpack.c.bf16 %v556, %v553
      %v577 = vpack.c.bf16 %v564, %v561
      %v578 = vpack.c.bf16 %v572, %v569
      %v583 = vunpack.c.l.b16 %v575
      %v584 = vunpack.c.h.b16 %v575
      %v585 = vunpack.c.l.b16 %v576
      %v586 = vunpack.c.h.b16 %v576
      %v587 = vunpack.c.l.b16 %v577
      %v588 = vunpack.c.h.b16 %v577
      %v589 = vunpack.c.l.b16 %v578
      %v590 = vunpack.c.h.b16 %v578
      %v591 = vpack.c.b16 %v583, %v583
      %v592 = vpack.c.b16 %v584, %v584
      %v593 = vpack.c.b16 %v585, %v585
      %v594 = vpack.c.b16 %v586, %v586
      %v595 = vpack.c.b16 %v587, %v587
      %v596 = vpack.c.b16 %v588, %v588
      %v597 = vpack.c.b16 %v589, %v589
      %v598 = vpack.c.b16 %v590, %v590
      %607 = vst [vmem:[%s309] sm:$0xf] %v591
      %608 = vst [vmem:[%s309 + $0x4] sm:$0xf] %v592
      %609 = vst [vmem:[%s309 + $0x8] sm:$0xf] %v593
      %610 = vst [vmem:[%s309 + $0xc] sm:$0xf] %v594
      %611 = vst [vmem:[%s309 + $0x10] sm:$0xf] %v595
      %612 = vst [vmem:[%s309 + $0x14] sm:$0xf] %v596
      %613 = vst [vmem:[%s309 + $0x18] sm:$0xf] %v597
      %614 = vst [vmem:[%s309 + $0x1c] sm:$0xf] %v598
      %615 = vadd.xlane.f32.xlu0 %v545
      %v616 = vpop.xlane.xlu0 %615
      %617 = vadd.xlane.f32.xlu0 %v548
      %v618 = vpop.xlane.xlu0 %617
      %619 = vadd.xlane.f32.xlu0 %v553
      %v620 = vpop.xlane.xlu0 %619
      %621 = vadd.xlane.f32.xlu0 %v556
      %v622 = vpop.xlane.xlu0 %621
      %623 = vadd.xlane.f32.xlu0 %v561
      %v624 = vpop.xlane.xlu0 %623
      %625 = vadd.xlane.f32.xlu0 %v564
      %v626 = vpop.xlane.xlu0 %625
      %627 = vadd.xlane.f32.xlu0 %v569
      %v628 = vpop.xlane.xlu0 %627
      %629 = vadd.xlane.f32.xlu0 %v572
      %v630 = vpop.xlane.xlu0 %629
      %v631 = vmul.f32 %v616, 0.0078125
      %v632 = vmul.f32 %v618, 0.0078125
      %v633 = vmul.f32 %v620, 0.0078125
      %v634 = vmul.f32 %v622, 0.0078125
      %v635 = vmul.f32 %v624, 0.0078125
      %v636 = vmul.f32 %v626, 0.0078125
      %v637 = vmul.f32 %v628, 0.0078125
      %v638 = vmul.f32 %v630, 0.0078125
      %v639 = vsub.f32 %v545, %v631
      %v640 = vsub.f32 %v548, %v632
      %v641 = vsub.f32 %v553, %v633
      %v642 = vsub.f32 %v556, %v634
      %v643 = vsub.f32 %v561, %v635
      %v644 = vsub.f32 %v564, %v636
      %v645 = vsub.f32 %v569, %v637
      %v646 = vsub.f32 %v572, %v638
      %vm647 = vcmask 7168
      %648 = vst.msk [vmem:[%s318] sm:$0xff] %vm647, %v631
      %649 = vst.msk [vmem:[%s318 + $0x8] sm:$0xff] %vm647, %v632
      %650 = vst.msk [vmem:[%s318 + $0x10] sm:$0xff] %vm647, %v633
      %651 = vst.msk [vmem:[%s318 + $0x18] sm:$0xff] %vm647, %v634
      %652 = vst.msk [vmem:[%s318 + $0x20] sm:$0xff] %vm647, %v635
      %653 = vst.msk [vmem:[%s318 + $0x28] sm:$0xff] %vm647, %v636
      %654 = vst.msk [vmem:[%s318 + $0x30] sm:$0xff] %vm647, %v637
      %655 = vst.msk [vmem:[%s318 + $0x38] sm:$0xff] %vm647, %v638
      %v656 = vmul.f32 %v639, %v639
      %v657 = vmul.f32 %v640, %v640
      %v658 = vmul.f32 %v641, %v641
      %v659 = vmul.f32 %v642, %v642
      %v660 = vmul.f32 %v643, %v643
      %v661 = vmul.f32 %v644, %v644
      %v662 = vmul.f32 %v645, %v645
      %v663 = vmul.f32 %v646, %v646
      %664 = vadd.xlane.f32.xlu0 %v656
      %v665 = vpop.xlane.xlu0 %664
      %666 = vadd.xlane.f32.xlu0 %v657
      %v667 = vpop.xlane.xlu0 %666
      %668 = vadd.xlane.f32.xlu0 %v658
      %v669 = vpop.xlane.xlu0 %668
      %670 = vadd.xlane.f32.xlu0 %v659
      %v671 = vpop.xlane.xlu0 %670
      %672 = vadd.xlane.f32.xlu0 %v660
      %v673 = vpop.xlane.xlu0 %672
      %674 = vadd.xlane.f32.xlu0 %v661
      %v675 = vpop.xlane.xlu0 %674
      %676 = vadd.xlane.f32.xlu0 %v662
      %v677 = vpop.xlane.xlu0 %676
      %678 = vadd.xlane.f32.xlu0 %v663
      %v679 = vpop.xlane.xlu0 %678
      %680 = vst.msk [vmem:[%s327] sm:$0xff] %vm647, %v665
      %681 = vst.msk [vmem:[%s327 + $0x8] sm:$0xff] %vm647, %v667
      %682 = vst.msk [vmem:[%s327 + $0x10] sm:$0xff] %vm647, %v669
      %683 = vst.msk [vmem:[%s327 + $0x18] sm:$0xff] %vm647, %v671
      %684 = vst.msk [vmem:[%s327 + $0x20] sm:$0xff] %vm647, %v673
      %685 = vst.msk [vmem:[%s327 + $0x28] sm:$0xff] %vm647, %v675
      %686 = vst.msk [vmem:[%s327 + $0x30] sm:$0xff] %vm647, %v677
      %687 = vst.msk [vmem:[%s327 + $0x38] sm:$0xff] %vm647, %v679
      %p688 = scmp.lt.s32.totalorder %s22, 1
      %s689 = scalar_select %p688, %s22, 1
      %p690 = scmp.lt.s32.totalorder %s23, 0
      %s691 = scalar_select %p690, %s23, 0
      %s692 = smul.addr %s689, 8
      %s693 = sadd.s32 %s691, %s692
      %s694 = smul.addr %s693, 4
      %s695 = scalar_lea.vmem %s4, %s694
      %p696 = scmp.lt.s32.totalorder %s22, 1
      %s697 = scalar_select %p696, %s22, 1
      %p698 = scmp.lt.s32.totalorder %s23, 0
      %s699 = scalar_select %p698, %s23, 0
      %s700 = smul.addr %s699, 8
      %s701 = smul.addr %s697, 8
      %s702 = sadd.s32 %s700, %s701
      %s703 = smul.addr %s702, 8
      %s704 = scalar_lea.vmem %s5, %s703
      %p705 = scmp.lt.s32.totalorder %s22, 1
      %s706 = scalar_select %p705, %s22, 1
      %p707 = scmp.lt.s32.totalorder %s23, 0
      %s708 = scalar_select %p707, %s23, 0
      %s709 = smul.addr %s708, 8
      %s710 = smul.addr %s706, 8
      %s711 = sadd.s32 %s709, %s710
      %s712 = smul.addr %s711, 8
      %s713 = scalar_lea.vmem %s6, %s712
      // Predicated region
      $region37: #{point_transformer_last.12} parent=35 // pred_check
        %p714 = pneg %p141
      $region38: #{point_transformer_last.12} parent=35 // pred_check_branch
        %716 = sbr.rel (%p714) target = $region40
      $region39: #{point_transformer_last.12} parent=35 // pred_region
        _
      $region40: #{point_transformer_last.12} parent=35 // pred_fallthru
        _
      // Predicated region
      $region41: #{point_transformer_last.12} parent=35 // pred_check
        %p717 = pneg %p169
      $region42: #{point_transformer_last.12} parent=35 // pred_check_branch
        %719 = sbr.rel (%p717) target = $region44
      $region43: #{point_transformer_last.12} parent=35 // pred_region
        _
      $region44: #{point_transformer_last.12} parent=35 // pred_fallthru
        _
      // Predicated region
      $region45: #{point_transformer_last.12} parent=35 // pred_check
        %p720 = pneg %p197
      $region46: #{point_transformer_last.12} parent=35 // pred_check_branch
        %722 = sbr.rel (%p720) target = $region48
      $region47: #{point_transformer_last.12} parent=35 // pred_region
        _
      $region48: #{point_transformer_last.12} parent=35 // pred_fallthru
        _
    $region36: #{point_transformer_last.12} parent=5 // pred_fallthru
      _
    %p723 = scmp.le.s32.totalorder 2, %s13
    // Predicated region
    $region49: #{point_transformer_last.12} parent=5 // pred_check
      %p724 = pneg %p723
    $region50: #{point_transformer_last.12} parent=5 // pred_check_branch
      %726 = sbr.rel (%p724) target = $region52
    $region51: #{point_transformer_last.12} parent=5 // pred_region
      %s727 = ssub.s32 %s13, 2
      // Predicated region
      $region53: #{point_transformer_last.12} parent=51 // pred_check
        %p728 = pneg %p147
      $region54: #{point_transformer_last.12} parent=51 // pred_check_branch
        %730 = sbr.rel (%p728) target = $region56
      $region55: #{point_transformer_last.12} parent=51 // pred_region
        %p731 = scmp.lt.s32.totalorder %s24, 1
        %s732 = scalar_select %p731, %s24, 1
        %p733 = scmp.lt.s32.totalorder %s25, 0
        %s734 = scalar_select %p733, %s25, 0
        %s735 = smul.addr %s732, 8
        %s736 = sadd.s32 %s734, %s735
        %s737 = smul.addr %s736, 4
        %s738 = scalar_lea.vmem %s4, %s737
      $region56: #{point_transformer_last.12} parent=51 // pred_fallthru
        _
      // Predicated region
      $region57: #{point_transformer_last.12} parent=51 // pred_check
        %p739 = pneg %p175
      $region58: #{point_transformer_last.12} parent=51 // pred_check_branch
        %741 = sbr.rel (%p739) target = $region60
      $region59: #{point_transformer_last.12} parent=51 // pred_region
        %p742 = scmp.lt.s32.totalorder %s24, 1
        %s743 = scalar_select %p742, %s24, 1
        %p744 = scmp.lt.s32.totalorder %s25, 0
        %s745 = scalar_select %p744, %s25, 0
        %s746 = smul.addr %s745, 8
        %s747 = smul.addr %s743, 8
        %s748 = sadd.s32 %s746, %s747
        %s749 = smul.addr %s748, 8
        %s750 = scalar_lea.vmem %s5, %s749
      $region60: #{point_transformer_last.12} parent=51 // pred_fallthru
        _
      // Predicated region
      $region61: #{point_transformer_last.12} parent=51 // pred_check
        %p751 = pneg %p203
      $region62: #{point_transformer_last.12} parent=51 // pred_check_branch
        %753 = sbr.rel (%p751) target = $region64
      $region63: #{point_transformer_last.12} parent=51 // pred_region
        %p754 = scmp.lt.s32.totalorder %s24, 1
        %s755 = scalar_select %p754, %s24, 1
        %p756 = scmp.lt.s32.totalorder %s25, 0
        %s757 = scalar_select %p756, %s25, 0
        %s758 = smul.addr %s757, 8
        %s759 = smul.addr %s755, 8
        %s760 = sadd.s32 %s758, %s759
        %s761 = smul.addr %s760, 8
        %s762 = scalar_lea.vmem %s6, %s761
      $region64: #{point_transformer_last.12} parent=51 // pred_fallthru
        _
    $region52: #{point_transformer_last.12} parent=5 // pred_fallthru
      _
  $region6: #{point_transformer_last.12} parent=0 // loop_footer
    %s17 = sadd.s32 1, %s13
  $region7: #{point_transformer_last.12} parent=0 // loop_footer_branch
    %12 = sbr.rel target = $region3
  $region8: #{point_transformer_last.12} parent=0 // loop_exit
    _

// kernel: point_transformer_last.11
$region0: #{point_transformer_last.11}
  #allocation0 [shape = 'u32[]', space=smem, size = 0x4, offset = 0x4, fixed_abs, tag = 'smem constant byte address 0x4 - core index']
  #allocation1 [shape = 'u32[144,128]{1,0:T(1,128)}', space=vmem, size = 0x12000, scoped, tag = 'internal scratch']
  %s0 = inlined_call_operand.vmem [shape: f32[2,64,128], index: 0, kind: input, shape index: {}]
  %s1 = inlined_call_operand.vmem [shape: bf16[64,64], index: 1, kind: input, shape index: {}]
  %s2 = inlined_call_operand.vmem [shape: bf16[2,64,128], index: 2, kind: output, shape index: {0}]
  %s3 = inlined_call_operand.vmem [shape: f32[2,1,64,1], index: 3, kind: output, shape index: {1}]
  %s4 = inlined_call_operand.vmem [shape: f32[2,1,64,1], index: 4, kind: output, shape index: {2}]
  %5 = xla_tuple %s2, %s3, %s4
  %s6 = sld [smem:[#allocation0]]
  $region57: #{point_transformer_last.11} parent=0
    _
  %s8 = ssub.s32 1, %s6
  %s9 = scalar_select 0, %s8, %s6
  loop: start=0, step=1, limit=4
  $region2: #{point_transformer_last.11} parent=0 // loop_pre_header
    _
  $region3: #{point_transformer_last.11} parent=0 // loop_header
    %s11 = sphi 0, %s15
    %p12 = scmp.ge.s32.totalorder %s11, 4
    %s18 = sphi 0, %s30
    %s19 = sphi 0, %s26
    %s20 = sphi 0, %s18
    %s21 = sphi 0, %s19
    %s22 = sphi 0, %s20
    %s23 = sphi 0, %s21
    %s35 = sphi 0, %s37
    %s38 = sphi 0, %s35
    %s39 = sphi 0, %s38
    %s55 = sphi 0, %s39
    %s59 = sphi 0, %s59
    %s61 = sphi 0, %s59
    %s62 = sphi 0, %s61
    %s76 = sphi 0, %s62
    %s84 = sphi 0, %s86
    %s87 = sphi 0, %s84
    %s88 = sphi 0, %s87
    %s104 = sphi 0, %s88
    %s112 = sphi 0, %s114
    %s115 = sphi 0, %s112
    %s116 = sphi 0, %s115
    %s132 = sphi 0, %s116
    %s140 = sphi 0, %s142
    %s143 = sphi 0, %s140
    %s144 = sphi 0, %s143
    %s160 = sphi 0, %s144
  $region4: #{point_transformer_last.11} parent=0 // loop_header_branch
    %14 = sbr.rel (%p12) target = $region8
  $region5: #{point_transformer_last.11} parent=0 // loop_body
    %s16 = ssub.s32 %s11, 1
    %s17 = ssub.s32 %s11, 2
    %s24 = sadd.s32 1, %s19
    %p25 = scmp.ge.s32.totalorder %s24, 1
    %s26 = scalar_select %p25, 0, %s24
    %s27 = sadd.s32 1, %s18
    %s28 = scalar_select %p25, %s27, %s18
    %p29 = scmp.ge.s32.totalorder %s28, 2
    %s30 = scalar_select %p29, 0, %s28
    %s31 = ssub.s32 %s18, %s30
    %s32 = ssub.s32 %s19, %s26
    %s33 = sor.u32 %s31, %s32
    %p34 = scmp.eq.s32.totalorder %s33, 0
    %s36 = sadd.s32 %s35, 1
    %s37 = scalar_select %p34, %s35, %s36
    %p40 = pneg %p34
    %p41 = scmp.eq.s32.totalorder %s11, 1
    %p42 = por %p40, %p41
    %p43 = scmp.ne.s32.totalorder %s35, %s38
    %p44 = scmp.eq.s32.totalorder %s11, 0
    %p45 = por %p43, %p44
    %p46 = scmp.ne.s32.totalorder %s35, %s38
    %p47 = scmp.eq.s32.totalorder %s16, 1
    %p48 = por %p46, %p47
    %p49 = scmp.ne.s32.totalorder %s38, %s39
    %p50 = scmp.eq.s32.totalorder %s16, 0
    %p51 = por %p49, %p50
    %p52 = scmp.ne.s32.totalorder %s38, %s39
    %p53 = scmp.eq.s32.totalorder %s17, 1
    %p54 = por %p52, %p53
    %p56 = scmp.ne.s32.totalorder %s39, %s55
    %p57 = scmp.eq.s32.totalorder %s17, 0
    %p58 = por %p56, %p57
    %s60 = sadd.s32 %s59, 1
    %p63 = scmp.eq.s32.totalorder %s11, 1
    %p64 = scmp.ne.s32.totalorder %s59, %s61
    %p65 = scmp.eq.s32.totalorder %s11, 0
    %p66 = por %p64, %p65
    %p67 = scmp.ne.s32.totalorder %s59, %s61
    %p68 = scmp.eq.s32.totalorder %s16, 1
    %p69 = por %p67, %p68
    %p70 = scmp.ne.s32.totalorder %s61, %s62
    %p71 = scmp.eq.s32.totalorder %s16, 0
    %p72 = por %p70, %p71
    %p73 = scmp.ne.s32.totalorder %s61, %s62
    %p74 = scmp.eq.s32.totalorder %s17, 1
    %p75 = por %p73, %p74
    %p77 = scmp.ne.s32.totalorder %s62, %s76
    %p78 = scmp.eq.s32.totalorder %s17, 0
    %p79 = por %p77, %p78
    %s80 = ssub.s32 %s18, %s30
    %s81 = ssub.s32 %s19, %s26
    %s82 = sor.u32 %s80, %s81
    %p83 = scmp.eq.s32.totalorder %s82, 0
    %s85 = sadd.s32 %s84, 1
    %s86 = scalar_select %p83, %s84, %s85
    %p89 = pneg %p83
    %p90 = scmp.eq.s32.totalorder %s11, 1
    %p91 = por %p89, %p90
    %p92 = scmp.ne.s32.totalorder %s84, %s87
    %p93 = scmp.eq.s32.totalorder %s11, 0
    %p94 = por %p92, %p93
    %p95 = scmp.ne.s32.totalorder %s84, %s87
    %p96 = scmp.eq.s32.totalorder %s16, 1
    %p97 = por %p95, %p96
    %p98 = scmp.ne.s32.totalorder %s87, %s88
    %p99 = scmp.eq.s32.totalorder %s16, 0
    %p100 = por %p98, %p99
    %p101 = scmp.ne.s32.totalorder %s87, %s88
    %p102 = scmp.eq.s32.totalorder %s17, 1
    %p103 = por %p101, %p102
    %p105 = scmp.ne.s32.totalorder %s88, %s104
    %p106 = scmp.eq.s32.totalorder %s17, 0
    %p107 = por %p105, %p106
    %s108 = ssub.s32 %s18, %s30
    %s109 = ssub.s32 %s19, %s26
    %s110 = sor.u32 %s108, %s109
    %p111 = scmp.eq.s32.totalorder %s110, 0
    %s113 = sadd.s32 %s112, 1
    %s114 = scalar_select %p111, %s112, %s113
    %p117 = pneg %p111
    %p118 = scmp.eq.s32.totalorder %s11, 1
    %p119 = por %p117, %p118
    %p120 = scmp.ne.s32.totalorder %s112, %s115
    %p121 = scmp.eq.s32.totalorder %s11, 0
    %p122 = por %p120, %p121
    %p123 = scmp.ne.s32.totalorder %s112, %s115
    %p124 = scmp.eq.s32.totalorder %s16, 1
    %p125 = por %p123, %p124
    %p126 = scmp.ne.s32.totalorder %s115, %s116
    %p127 = scmp.eq.s32.totalorder %s16, 0
    %p128 = por %p126, %p127
    %p129 = scmp.ne.s32.totalorder %s115, %s116
    %p130 = scmp.eq.s32.totalorder %s17, 1
    %p131 = por %p129, %p130
    %p133 = scmp.ne.s32.totalorder %s116, %s132
    %p134 = scmp.eq.s32.totalorder %s17, 0
    %p135 = por %p133, %p134
    %s136 = ssub.s32 %s18, %s30
    %s137 = ssub.s32 %s19, %s26
    %s138 = sor.u32 %s136, %s137
    %p139 = scmp.eq.s32.totalorder %s138, 0
    %s141 = sadd.s32 %s140, 1
    %s142 = scalar_select %p139, %s140, %s141
    %p145 = pneg %p139
    %p146 = scmp.eq.s32.totalorder %s11, 1
    %p147 = por %p145, %p146
    %p148 = scmp.ne.s32.totalorder %s140, %s143
    %p149 = scmp.eq.s32.totalorder %s11, 0
    %p150 = por %p148, %p149
    %p151 = scmp.ne.s32.totalorder %s140, %s143
    %p152 = scmp.eq.s32.totalorder %s16, 1
    %p153 = por %p151, %p152
    %p154 = scmp.ne.s32.totalorder %s143, %s144
    %p155 = scmp.eq.s32.totalorder %s16, 0
    %p156 = por %p154, %p155
    %p157 = scmp.ne.s32.totalorder %s143, %s144
    %p158 = scmp.eq.s32.totalorder %s17, 1
    %p159 = por %p157, %p158
    %p161 = scmp.ne.s32.totalorder %s144, %s160
    %p162 = scmp.eq.s32.totalorder %s17, 0
    %p163 = por %p161, %p162
    %p164 = scmp.le.s32.totalorder 1, %s11
    %p165 = scmp.lt.s32.totalorder %s11, 3
    %p166 = pnand %p164, %p165
    %p167 = pneg %p166
    // Predicated region
    $region9: #{point_transformer_last.11} parent=5 // pred_check
      _
    $region10: #{point_transformer_last.11} parent=5 // pred_check_branch
      %169 = sbr.rel (%p166) target = $region12
    $region11: #{point_transformer_last.11} parent=5 // pred_region
      %s170 = ssub.s32 %s11, 1
      // Predicated region
      $region13: #{point_transformer_last.11} parent=11 // pred_check
        %p171 = pneg %p72
      $region14: #{point_transformer_last.11} parent=11 // pred_check_branch
        %173 = sbr.rel (%p171) target = $region16
      $region15: #{point_transformer_last.11} parent=11 // pred_region
        _
      $region16: #{point_transformer_last.11} parent=11 // pred_fallthru
        _
    $region12: #{point_transformer_last.11} parent=5 // pred_fallthru
      _
    %p174 = scmp.lt.s32.totalorder %s11, 2
    // Predicated region
    $region17: #{point_transformer_last.11} parent=5 // pred_check
      %p175 = pneg %p174
    $region18: #{point_transformer_last.11} parent=5 // pred_check_branch
      %177 = sbr.rel (%p175) target = $region20
    $region19: #{point_transformer_last.11} parent=5 // pred_region
      // Predicated region
      $region21: #{point_transformer_last.11} parent=19 // pred_check
        %p178 = pneg %p45
      $region22: #{point_transformer_last.11} parent=19 // pred_check_branch
        %180 = sbr.rel (%p178) target = $region24
      $region23: #{point_transformer_last.11} parent=19 // pred_region
        %p181 = scmp.lt.s32.totalorder %s18, 1
        %s182 = scalar_select %p181, %s18, 1
        %p183 = scmp.lt.s32.totalorder %s19, 0
        %s184 = scalar_select %p183, %s19, 0
        %s185 = smul.addr %s182, 8
        %s186 = sadd.s32 %s184, %s185
        %s187 = smul.addr %s186, 8
        %s188 = scalar_lea.vmem %s0, %s187
      $region24: #{point_transformer_last.11} parent=19 // pred_fallthru
        _
    $region20: #{point_transformer_last.11} parent=5 // pred_fallthru
      _
    %p189 = scmp.le.s32.totalorder 1, %s11
    %p190 = scmp.lt.s32.totalorder %s11, 3
    %p191 = pnand %p189, %p190
    %p192 = pneg %p191
    // Predicated region
    $region25: #{point_transformer_last.11} parent=5 // pred_check
      _
    $region26: #{point_transformer_last.11} parent=5 // pred_check_branch
      %194 = sbr.rel (%p191) target = $region28
    $region27: #{point_transformer_last.11} parent=5 // pred_region
      %s195 = ssub.s32 %s11, 1
      %p196 = scmp.lt.s32.totalorder %s20, 1
      %s197 = scalar_select %p196, %s20, 1
      %p198 = scmp.lt.s32.totalorder %s21, 0
      %s199 = scalar_select %p198, %s21, 0
      %s200 = smul.addr %s197, 8
      %s201 = sadd.s32 %s199, %s200
      %s202 = smul.addr %s201, 8
      %s203 = scalar_lea.vmem %s0, %s202
      %p204 = pneg %p51
      %p205 = pneg %p48
      %p206 = pneg %p72
      %p207 = pneg %p69
      %p208 = pneg %p100
      %p209 = pneg %p97
      %p210 = scmp.lt.s32.totalorder %s20, 1
      %s211 = scalar_select %p210, %s20, 1
      %p212 = scmp.lt.s32.totalorder %s21, 0
      %s213 = scalar_select %p212, %s21, 0
      %s214 = smul.addr %s211, 8
      %s215 = sadd.s32 %s213, %s214
      %s216 = smul.addr %s215, 4
      %s217 = scalar_lea.vmem %s2, %s216
      %p218 = pneg %p128
      %p219 = pneg %p125
      %p220 = scmp.lt.s32.totalorder %s20, 1
      %s221 = scalar_select %p220, %s20, 1
      %p222 = scmp.lt.s32.totalorder %s21, 0
      %s223 = scalar_select %p222, %s21, 0
      %s224 = smul.addr %s223, 8
      %s225 = smul.addr %s221, 8
      %s226 = sadd.s32 %s224, %s225
      %s227 = smul.addr %s226, 8
      %s228 = scalar_lea.vmem %s3, %s227
      %p229 = pneg %p156
      %p230 = pneg %p153
      %p231 = scmp.lt.s32.totalorder %s20, 1
      %s232 = scalar_select %p231, %s20, 1
      %p233 = scmp.lt.s32.totalorder %s21, 0
      %s234 = scalar_select %p233, %s21, 0
      %s235 = smul.addr %s234, 8
      %s236 = smul.addr %s232, 8
      %s237 = sadd.s32 %s235, %s236
      %s238 = smul.addr %s237, 8
      %s239 = scalar_lea.vmem %s4, %s238
      %p240 = scmp.lt.s32.totalorder %s20, 1
      %s241 = scalar_select %p240, %s20, 1
      %p242 = scmp.lt.s32.totalorder %s21, 0
      %s243 = scalar_select %p242, %s21, 0
      %s244 = smul.addr %s241, 8
      %s245 = sadd.s32 %s243, %s244
      %s246 = smul.addr %s245, 8
      %s247 = scalar_lea.vmem %s0, %s246
      %p248 = scmp.lt.s32.totalorder %s20, 1
      %s249 = scalar_select %p248, %s20, 1
      %p250 = scmp.lt.s32.totalorder %s21, 0
      %s251 = scalar_select %p250, %s21, 0
      %s252 = smul.addr %s249, 8
      %s253 = sadd.s32 %s251, %s252
      %s254 = smul.addr %s253, 4
      %s255 = scalar_lea.vmem %s2, %s254
      %p256 = scmp.lt.s32.totalorder %s20, 1
      %s257 = scalar_select %p256, %s20, 1
      %p258 = scmp.lt.s32.totalorder %s21, 0
      %s259 = scalar_select %p258, %s21, 0
      %s260 = smul.addr %s259, 8
      %s261 = smul.addr %s257, 8
      %s262 = sadd.s32 %s260, %s261
      %s263 = smul.addr %s262, 8
      %s264 = scalar_lea.vmem %s3, %s263
      %p265 = scmp.lt.s32.totalorder %s20, 1
      %s266 = scalar_select %p265, %s20, 1
      %p267 = scmp.lt.s32.totalorder %s21, 0
      %s268 = scalar_select %p267, %s21, 0
      %s269 = smul.addr %s268, 8
      %s270 = smul.addr %s266, 8
      %s271 = sadd.s32 %s269, %s270
      %s272 = smul.addr %s271, 8
      %s273 = scalar_lea.vmem %s4, %s272
      %v275 = vld [vmem:[%s247] sm:$0xff]
      %v276 = vld [vmem:[%s247 + $0x8] sm:$0xff]
      %v277 = vld [vmem:[%s247 + $0x10] sm:$0xff]
      %v278 = vld [vmem:[%s247 + $0x18] sm:$0xff]
      %v279 = vld [vmem:[%s247 + $0x20] sm:$0xff]
      %v280 = vld [vmem:[%s247 + $0x28] sm:$0xff]
      %v281 = vld [vmem:[%s247 + $0x30] sm:$0xff]
      %v282 = vld [vmem:[%s247 + $0x38] sm:$0xff]
      %v283 = vpack.c.bf16 %v276, %v275
      %v284 = vpack.c.bf16 %v278, %v277
      %v285 = vpack.c.bf16 %v280, %v279
      %v286 = vpack.c.bf16 %v282, %v281
      %v287 = vld [vmem:[%s1] sm:$0xf]
      %v288 = vld [vmem:[%s1 + $0x4] sm:$0xf]
      %v289 = vld [vmem:[%s1 + $0x8] sm:$0xf]
      %v290 = vld [vmem:[%s1 + $0xc] sm:$0xf]
      %v291 = vld [vmem:[%s1 + $0x10] sm:$0xf]
      %v292 = vld [vmem:[%s1 + $0x14] sm:$0xf]
      %v293 = vld [vmem:[%s1 + $0x18] sm:$0xf]
      %v294 = vld [vmem:[%s1 + $0x1c] sm:$0xf]
      %v303 = vunpack.c.l.b16 %v287
      %v304 = vunpack.c.l.b16 %v288
      %v305 = vunpack.c.l.b16 %v289
      %v306 = vunpack.c.l.b16 %v290
      %v307 = vunpack.c.l.b16 %v291
      %v308 = vunpack.c.l.b16 %v292
      %v309 = vunpack.c.l.b16 %v293
      %v310 = vunpack.c.l.b16 %v294
      %v311 = vpack.c.b16 %v304, %v303
      %v312 = vpack.c.b16 %v306, %v305
      %v313 = vpack.c.b16 %v308, %v307
      %v314 = vpack.c.b16 %v310, %v309
      %vm315 = vcmask 523264
      %v317 = vsel %vm315, %v311, 0
      %v320 = vsel %vm315, %v312, 0
      %v323 = vsel %vm315, %v313, 0
      %v326 = vsel %vm315, %v314, 0
      %328 = vmatprep.subr.bf16.mxu0 0
      %329 = vmatpush1.bf16.msra.mxu0 %v283
      %330 = vmatprep.subr.bf16.mxu0 0
      %331 = vmatpush1.bf16.msra.mxu0 %v284
      %332 = vmatprep.subr.bf16.mxu0 0
      %333 = vmatpush1.bf16.msra.mxu0 %v285
      %334 = vmatprep.subr.bf16.mxu0 0
      %335 = vmatpush1.bf16.msra.mxu0 %v286
      %336 = vmatprep.subr.bf16.mxu0 0
      %337 = vmatpush1.bf16.msra.mxu0 0
      %338 = vmatprep.subr.bf16.mxu0 0
      %339 = vmatpush1.bf16.msra.mxu0 0
      %340 = vmatprep.subr.bf16.mxu0 0
      %341 = vmatpush1.bf16.msra.mxu0 0
      %342 = vmatprep.subr.bf16.mxu0 0
      %343 = vmatpush1.bf16.msra.mxu0 0
      %344 = vmatprep.subr.bf16.mxu0 0
      %345 = vmatpush1.bf16.msra.mxu0 0
      %346 = vmatprep.subr.bf16.mxu0 0
      %347 = vmatpush1.bf16.msra.mxu0 0
      %348 = vmatprep.subr.bf16.mxu0 0
      %349 = vmatpush1.bf16.msra.mxu0 0
      %350 = vmatprep.subr.bf16.mxu0 0
      %351 = vmatpush1.bf16.msra.mxu0 0
      %352 = vmatprep.subr.bf16.mxu0 0
      %353 = vmatpush1.bf16.msra.mxu0 0
      %354 = vmatprep.subr.bf16.mxu0 0
      %355 = vmatpush1.bf16.msra.mxu0 0
      %356 = vmatprep.subr.bf16.mxu0 0
      %357 = vmatpush1.bf16.msra.mxu0 0
      %358 = vmatprep.subr.bf16.mxu0 0
      %359 = vmatpush1.bf16.msra.mxu0 0
      %360 = vmatprep.mubr.bf16.mxu0 0
      %361 = vmatmul.mubr.bf16.gmra.mrb[0].mxu0 %v317
      %v362 = vpop.f32.mrb[0].mxu0
      %v363 = vadd.f32 0.0, %v362
      %v364 = vpop.f32.mrb[0].mxu0
      %v365 = vpop.f32.mrb[0].mxu0
      %v366 = vadd.f32 0.0, %v365
      %v367 = vpop.f32.mrb[0].mxu0
      %368 = vmatprep.mubr.bf16.mxu0 0
      %369 = vmatmul.mubr.bf16.gmra.mrb[0].mxu0 %v320
      %v370 = vpop.f32.mrb[0].mxu0
      %v371 = vadd.f32 0.0, %v370
      %v372 = vpop.f32.mrb[0].mxu0
      %v373 = vpop.f32.mrb[0].mxu0
      %v374 = vadd.f32 0.0, %v373
      %v375 = vpop.f32.mrb[0].mxu0
      %376 = vmatprep.mubr.bf16.mxu0 0
      %377 = vmatmul.mubr.bf16.gmra.mrb[0].mxu0 %v323
      %v378 = vpop.f32.mrb[0].mxu0
      %v379 = vadd.f32 0.0, %v378
      %v380 = vpop.f32.mrb[0].mxu0
      %v381 = vpop.f32.mrb[0].mxu0
      %v382 = vadd.f32 0.0, %v381
      %v383 = vpop.f32.mrb[0].mxu0
      %384 = vmatprep.mubr.bf16.mxu0 0
      %385 = vmatmul.mubr.bf16.gmra.mrb[0].mxu0 %v326
      %v386 = vpop.f32.mrb[0].mxu0
      %v387 = vadd.f32 0.0, %v386
      %v388 = vpop.f32.mrb[0].mxu0
      %v389 = vpop.f32.mrb[0].mxu0
      %v390 = vadd.f32 0.0, %v389
      %v391 = vpop.f32.mrb[0].mxu0
      %392 = vdwg.mxu0
      %v393 = vpack.c.bf16 %v366, %v363
      %v394 = vpack.c.bf16 %v374, %v371
      %v395 = vpack.c.bf16 %v382, %v379
      %v396 = vpack.c.bf16 %v390, %v387
      %v401 = vunpack.c.l.b16 %v393
      %v402 = vunpack.c.h.b16 %v393
      %v403 = vunpack.c.l.b16 %v394
      %v404 = vunpack.c.h.b16 %v394
      %v405 = vunpack.c.l.b16 %v395
      %v406 = vunpack.c.h.b16 %v395
      %v407 = vunpack.c.l.b16 %v396
      %v408 = vunpack.c.h.b16 %v396
      %v409 = vpack.c.b16 %v401, %v401
      %v410 = vpack.c.b16 %v402, %v402
      %v411 = vpack.c.b16 %v403, %v403
      %v412 = vpack.c.b16 %v404, %v404
      %v413 = vpack.c.b16 %v405, %v405
      %v414 = vpack.c.b16 %v406, %v406
      %v415 = vpack.c.b16 %v407, %v407
      %v416 = vpack.c.b16 %v408, %v408
      %425 = vst [vmem:[%s255] sm:$0xf] %v409
      %426 = vst [vmem:[%s255 + $0x4] sm:$0xf] %v410
      %427 = vst [vmem:[%s255 + $0x8] sm:$0xf] %v411
      %428 = vst [vmem:[%s255 + $0xc] sm:$0xf] %v412
      %429 = vst [vmem:[%s255 + $0x10] sm:$0xf] %v413
      %430 = vst [vmem:[%s255 + $0x14] sm:$0xf] %v414
      %431 = vst [vmem:[%s255 + $0x18] sm:$0xf] %v415
      %432 = vst [vmem:[%s255 + $0x1c] sm:$0xf] %v416
      %433 = vadd.xlane.f32.xlu0 %v363
      %v434 = vpop.xlane.xlu0 %433
      %435 = vadd.xlane.f32.xlu0 %v366
      %v436 = vpop.xlane.xlu0 %435
      %437 = vadd.xlane.f32.xlu0 %v371
      %v438 = vpop.xlane.xlu0 %437
      %439 = vadd.xlane.f32.xlu0 %v374
      %v440 = vpop.xlane.xlu0 %439
      %441 = vadd.xlane.f32.xlu0 %v379
      %v442 = vpop.xlane.xlu0 %441
      %443 = vadd.xlane.f32.xlu0 %v382
      %v444 = vpop.xlane.xlu0 %443
      %445 = vadd.xlane.f32.xlu0 %v387
      %v446 = vpop.xlane.xlu0 %445
      %447 = vadd.xlane.f32.xlu0 %v390
      %v448 = vpop.xlane.xlu0 %447
      %v449 = vmul.f32 %v434, 0.0078125
      %v450 = vmul.f32 %v436, 0.0078125
      %v451 = vmul.f32 %v438, 0.0078125
      %v452 = vmul.f32 %v440, 0.0078125
      %v453 = vmul.f32 %v442, 0.0078125
      %v454 = vmul.f32 %v444, 0.0078125
      %v455 = vmul.f32 %v446, 0.0078125
      %v456 = vmul.f32 %v448, 0.0078125
      %v457 = vsub.f32 %v363, %v449
      %v458 = vsub.f32 %v366, %v450
      %v459 = vsub.f32 %v371, %v451
      %v460 = vsub.f32 %v374, %v452
      %v461 = vsub.f32 %v379, %v453
      %v462 = vsub.f32 %v382, %v454
      %v463 = vsub.f32 %v387, %v455
      %v464 = vsub.f32 %v390, %v456
      %vm465 = vcmask 7168
      %466 = vst.msk [vmem:[%s264] sm:$0xff] %vm465, %v449
      %467 = vst.msk [vmem:[%s264 + $0x8] sm:$0xff] %vm465, %v450
      %468 = vst.msk [vmem:[%s264 + $0x10] sm:$0xff] %vm465, %v451
      %469 = vst.msk [vmem:[%s264 + $0x18] sm:$0xff] %vm465, %v452
      %470 = vst.msk [vmem:[%s264 + $0x20] sm:$0xff] %vm465, %v453
      %471 = vst.msk [vmem:[%s264 + $0x28] sm:$0xff] %vm465, %v454
      %472 = vst.msk [vmem:[%s264 + $0x30] sm:$0xff] %vm465, %v455
      %473 = vst.msk [vmem:[%s264 + $0x38] sm:$0xff] %vm465, %v456
      %v474 = vmul.f32 %v457, %v457
      %v475 = vmul.f32 %v458, %v458
      %v476 = vmul.f32 %v459, %v459
      %v477 = vmul.f32 %v460, %v460
      %v478 = vmul.f32 %v461, %v461
      %v479 = vmul.f32 %v462, %v462
      %v480 = vmul.f32 %v463, %v463
      %v481 = vmul.f32 %v464, %v464
      %482 = vadd.xlane.f32.xlu0 %v474
      %v483 = vpop.xlane.xlu0 %482
      %484 = vadd.xlane.f32.xlu0 %v475
      %v485 = vpop.xlane.xlu0 %484
      %486 = vadd.xlane.f32.xlu0 %v476
      %v487 = vpop.xlane.xlu0 %486
      %488 = vadd.xlane.f32.xlu0 %v477
      %v489 = vpop.xlane.xlu0 %488
      %490 = vadd.xlane.f32.xlu0 %v478
      %v491 = vpop.xlane.xlu0 %490
      %492 = vadd.xlane.f32.xlu0 %v479
      %v493 = vpop.xlane.xlu0 %492
      %494 = vadd.xlane.f32.xlu0 %v480
      %v495 = vpop.xlane.xlu0 %494
      %496 = vadd.xlane.f32.xlu0 %v481
      %v497 = vpop.xlane.xlu0 %496
      %498 = vst.msk [vmem:[%s273] sm:$0xff] %vm465, %v483
      %499 = vst.msk [vmem:[%s273 + $0x8] sm:$0xff] %vm465, %v485
      %500 = vst.msk [vmem:[%s273 + $0x10] sm:$0xff] %vm465, %v487
      %501 = vst.msk [vmem:[%s273 + $0x18] sm:$0xff] %vm465, %v489
      %502 = vst.msk [vmem:[%s273 + $0x20] sm:$0xff] %vm465, %v491
      %503 = vst.msk [vmem:[%s273 + $0x28] sm:$0xff] %vm465, %v493
      %504 = vst.msk [vmem:[%s273 + $0x30] sm:$0xff] %vm465, %v495
      %505 = vst.msk [vmem:[%s273 + $0x38] sm:$0xff] %vm465, %v497
      %p506 = scmp.lt.s32.totalorder %s20, 1
      %s507 = scalar_select %p506, %s20, 1
      %p508 = scmp.lt.s32.totalorder %s21, 0
      %s509 = scalar_select %p508, %s21, 0
      %s510 = smul.addr %s507, 8
      %s511 = sadd.s32 %s509, %s510
      %s512 = smul.addr %s511, 4
      %s513 = scalar_lea.vmem %s2, %s512
      %p514 = scmp.lt.s32.totalorder %s20, 1
      %s515 = scalar_select %p514, %s20, 1
      %p516 = scmp.lt.s32.totalorder %s21, 0
      %s517 = scalar_select %p516, %s21, 0
      %s518 = smul.addr %s517, 8
      %s519 = smul.addr %s515, 8
      %s520 = sadd.s32 %s518, %s519
      %s521 = smul.addr %s520, 8
      %s522 = scalar_lea.vmem %s3, %s521
      %p523 = scmp.lt.s32.totalorder %s20, 1
      %s524 = scalar_select %p523, %s20, 1
      %p525 = scmp.lt.s32.totalorder %s21, 0
      %s526 = scalar_select %p525, %s21, 0
      %s527 = smul.addr %s526, 8
      %s528 = smul.addr %s524, 8
      %s529 = sadd.s32 %s527, %s528
      %s530 = smul.addr %s529, 8
      %s531 = scalar_lea.vmem %s4, %s530
      // Predicated region
      $region29: #{point_transformer_last.11} parent=27 // pred_check
        %p532 = pneg %p97
      $region30: #{point_transformer_last.11} parent=27 // pred_check_branch
        %534 = sbr.rel (%p532) target = $region32
      $region31: #{point_transformer_last.11} parent=27 // pred_region
        _
      $region32: #{point_transformer_last.11} parent=27 // pred_fallthru
        _
      // Predicated region
      $region33: #{point_transformer_last.11} parent=27 // pred_check
        %p535 = pneg %p125
      $region34: #{point_transformer_last.11} parent=27 // pred_check_branch
        %537 = sbr.rel (%p535) target = $region36
      $region35: #{point_transformer_last.11} parent=27 // pred_region
        _
      $region36: #{point_transformer_last.11} parent=27 // pred_fallthru
        _
      // Predicated region
      $region37: #{point_transformer_last.11} parent=27 // pred_check
        %p538 = pneg %p153
      $region38: #{point_transformer_last.11} parent=27 // pred_check_branch
        %540 = sbr.rel (%p538) target = $region40
      $region39: #{point_transformer_last.11} parent=27 // pred_region
        _
      $region40: #{point_transformer_last.11} parent=27 // pred_fallthru
        _
    $region28: #{point_transformer_last.11} parent=5 // pred_fallthru
      _
    %p541 = scmp.le.s32.totalorder 2, %s11
    // Predicated region
    $region41: #{point_transformer_last.11} parent=5 // pred_check
      %p542 = pneg %p541
    $region42: #{point_transformer_last.11} parent=5 // pred_check_branch
      %544 = sbr.rel (%p542) target = $region44
    $region43: #{point_transformer_last.11} parent=5 // pred_region
      %s545 = ssub.s32 %s11, 2
      // Predicated region
      $region45: #{point_transformer_last.11} parent=43 // pred_check
        %p546 = pneg %p103
      $region46: #{point_transformer_last.11} parent=43 // pred_check_branch
        %548 = sbr.rel (%p546) target = $region48
      $region47: #{point_transformer_last.11} parent=43 // pred_region
        %p549 = scmp.lt.s32.totalorder %s22, 1
        %s550 = scalar_select %p549, %s22, 1
        %p551 = scmp.lt.s32.totalorder %s23, 0
        %s552 = scalar_select %p551, %s23, 0
        %s553 = smul.addr %s550, 8
        %s554 = sadd.s32 %s552, %s553
        %s555 = smul.addr %s554, 4
        %s556 = scalar_lea.vmem %s2, %s555
      $region48: #{point_transformer_last.11} parent=43 // pred_fallthru
        _
      // Predicated region
      $region49: #{point_transformer_last.11} parent=43 // pred_check
        %p557 = pneg %p131
      $region50: #{point_transformer_last.11} parent=43 // pred_check_branch
        %559 = sbr.rel (%p557) target = $region52
      $region51: #{point_transformer_last.11} parent=43 // pred_region
        %p560 = scmp.lt.s32.totalorder %s22, 1
        %s561 = scalar_select %p560, %s22, 1
        %p562 = scmp.lt.s32.totalorder %s23, 0
        %s563 = scalar_select %p562, %s23, 0
        %s564 = smul.addr %s563, 8
        %s565 = smul.addr %s561, 8
        %s566 = sadd.s32 %s564, %s565
        %s567 = smul.addr %s566, 8
        %s568 = scalar_lea.vmem %s3, %s567
      $region52: #{point_transformer_last.11} parent=43 // pred_fallthru
        _
      // Predicated region
      $region53: #{point_transformer_last.11} parent=43 // pred_check
        %p569 = pneg %p159
      $region54: #{point_transformer_last.11} parent=43 // pred_check_branch
        %571 = sbr.rel (%p569) target = $region56
      $region55: #{point_transformer_last.11} parent=43 // pred_region
        %p572 = scmp.lt.s32.totalorder %s22, 1
        %s573 = scalar_select %p572, %s22, 1
        %p574 = scmp.lt.s32.totalorder %s23, 0
        %s575 = scalar_select %p574, %s23, 0
        %s576 = smul.addr %s575, 8
        %s577 = smul.addr %s573, 8
        %s578 = sadd.s32 %s576, %s577
        %s579 = smul.addr %s578, 8
        %s580 = scalar_lea.vmem %s4, %s579
      $region56: #{point_transformer_last.11} parent=43 // pred_fallthru
        _
    $region44: #{point_transformer_last.11} parent=5 // pred_fallthru
      _
  $region6: #{point_transformer_last.11} parent=0 // loop_footer
    %s15 = sadd.s32 1, %s11
  $region7: #{point_transformer_last.11} parent=0 // loop_footer_branch
    %10 = sbr.rel target = $region3
  $region8: #{point_transformer_last.11} parent=0 // loop_exit
    _

// kernel: point_transformer_last.14
$region0: #{point_transformer_last.14}
  #allocation0 [shape = 'u32[]', space=smem, size = 0x4, offset = 0x4, fixed_abs, tag = 'smem constant byte address 0x4 - core index']
  #allocation1 [shape = 'u32[144,128]{1,0:T(1,128)}', space=vmem, size = 0x12000, scoped, tag = 'internal scratch']
  #allocation2 [shape = 'bf16[16,128]{1,0:T(16,128)(2,1)}', space=vmem, size = 0x1000, scoped, tag = 'scratch operand']
  #allocation3 [shape = 'f32[64,128]{1,0:T(8,128)}', space=vmem, size = 0x8000, scoped, tag = 'scratch operand']
  #allocation4 [shape = 'f32[1,128]{1,0:T(1,128)}', space=vmem, size = 0x200, scoped, tag = 'scratch operand']
  %s0 = inlined_call_operand.vmem [shape: f32[2,64,128], index: 0, kind: input, shape index: {}, may-alias: {0,1}]
  %s1 = inlined_call_operand.vmem [shape: f32[2,64,128], index: 1, kind: input, shape index: {}, may-alias: {0,1}]
  %s2 = inlined_call_operand.vmem [shape: bf16[16,64], index: 2, kind: input, shape index: {}]
  %s3 = inlined_call_operand.vmem [shape: bf16[64,64], index: 3, kind: input, shape index: {}]
  %s4 = inlined_call_operand.vmem [shape: f32[64,1], index: 4, kind: input, shape index: {}]
  %s5 = inlined_call_operand.vmem [shape: bf16[64,64], index: 5, kind: input, shape index: {}]
  %s6 = inlined_call_operand.vmem [shape: f32[64,1], index: 6, kind: input, shape index: {}]
  %s7 = inlined_call_operand.vmem [shape: bf16[2,64,128], index: 7, kind: output, shape index: {0}]
  %s8 = inlined_call_operand.vmem [shape: f32[2,64,1], index: 8, kind: output, shape index: {1}]
  %s9 = inlined_call_operand.vmem [shape: f32[2,64,1], index: 9, kind: output, shape index: {2}]
  %10 = xla_tuple %s7, %s8, %s9
  %s11 = sld [smem:[#allocation0]]
  $region85: #{point_transformer_last.14} parent=0
    _
  %s13 = ssub.s32 1, %s11
  %s14 = scalar_select 0, %s13, %s11
  loop: start=0, step=1, limit=4
  $region2: #{point_transformer_last.14} parent=0 // loop_pre_header
    _
  $region3: #{point_transformer_last.14} parent=0 // loop_header
    %s16 = sphi 0, %s20
    %p17 = scmp.ge.s32.totalorder %s16, 4
    %s23 = sphi 0, %s35
    %s24 = sphi 0, %s31
    %s25 = sphi 0, %s23
    %s26 = sphi 0, %s24
    %s27 = sphi 0, %s25
    %s28 = sphi 0, %s26
    %s38 = sphi 0, %s40
    %s41 = sphi 0, %s38
    %s42 = sphi 0, %s41
    %s58 = sphi 0, %s42
    %s66 = sphi 0, %s68
    %s69 = sphi 0, %s66
    %s70 = sphi 0, %s69
    %s86 = sphi 0, %s70
    %s90 = sphi 0, %s90
    %s92 = sphi 0, %s90
    %s93 = sphi 0, %s92
    %s107 = sphi 0, %s93
    %s111 = sphi 0, %s111
    %s113 = sphi 0, %s111
    %s114 = sphi 0, %s113
    %s128 = sphi 0, %s114
    %s132 = sphi 0, %s132
    %s134 = sphi 0, %s132
    %s135 = sphi 0, %s134
    %s149 = sphi 0, %s135
    %s153 = sphi 0, %s153
    %s155 = sphi 0, %s153
    %s156 = sphi 0, %s155
    %s170 = sphi 0, %s156
    %s174 = sphi 0, %s174
    %s176 = sphi 0, %s174
    %s177 = sphi 0, %s176
    %s191 = sphi 0, %s177
    %s197 = sphi 0, %s199
    %s200 = sphi 0, %s197
    %s201 = sphi 0, %s200
    %s217 = sphi 0, %s201
    %s223 = sphi 0, %s225
    %s226 = sphi 0, %s223
    %s227 = sphi 0, %s226
    %s243 = sphi 0, %s227
    %s249 = sphi 0, %s251
    %s252 = sphi 0, %s249
    %s253 = sphi 0, %s252
    %s269 = sphi 0, %s253
  $region4: #{point_transformer_last.14} parent=0 // loop_header_branch
    %19 = sbr.rel (%p17) target = $region8
  $region5: #{point_transformer_last.14} parent=0 // loop_body
    %s21 = ssub.s32 %s16, 1
    %s22 = ssub.s32 %s16, 2
    %s29 = sadd.s32 1, %s24
    %p30 = scmp.ge.s32.totalorder %s29, 1
    %s31 = scalar_select %p30, 0, %s29
    %s32 = sadd.s32 1, %s23
    %s33 = scalar_select %p30, %s32, %s23
    %p34 = scmp.ge.s32.totalorder %s33, 2
    %s35 = scalar_select %p34, 0, %s33
    %s36 = ssub.s32 %s23, %s35
    %p37 = scmp.eq.s32.totalorder %s36, 0
    %s39 = sadd.s32 %s38, 1
    %s40 = scalar_select %p37, %s38, %s39
    %p43 = pneg %p37
    %p44 = scmp.eq.s32.totalorder %s16, 1
    %p45 = por %p43, %p44
    %p46 = scmp.ne.s32.totalorder %s38, %s41
    %p47 = scmp.eq.s32.totalorder %s16, 0
    %p48 = por %p46, %p47
    %p49 = scmp.ne.s32.totalorder %s38, %s41
    %p50 = scmp.eq.s32.totalorder %s21, 1
    %p51 = por %p49, %p50
    %p52 = scmp.ne.s32.totalorder %s41, %s42
    %p53 = scmp.eq.s32.totalorder %s21, 0
    %p54 = por %p52, %p53
    %p55 = scmp.ne.s32.totalorder %s41, %s42
    %p56 = scmp.eq.s32.totalorder %s22, 1
    %p57 = por %p55, %p56
    %p59 = scmp.ne.s32.totalorder %s42, %s58
    %p60 = scmp.eq.s32.totalorder %s22, 0
    %p61 = por %p59, %p60
    %s62 = ssub.s32 %s23, %s35
    %s63 = ssub.s32 %s24, %s31
    %s64 = sor.u32 %s62, %s63
    %p65 = scmp.eq.s32.totalorder %s64, 0
    %s67 = sadd.s32 %s66, 1
    %s68 = scalar_select %p65, %s66, %s67
    %p71 = pneg %p65
    %p72 = scmp.eq.s32.totalorder %s16, 1
    %p73 = por %p71, %p72
    %p74 = scmp.ne.s32.totalorder %s66, %s69
    %p75 = scmp.eq.s32.totalorder %s16, 0
    %p76 = por %p74, %p75
    %p77 = scmp.ne.s32.totalorder %s66, %s69
    %p78 = scmp.eq.s32.totalorder %s21, 1
    %p79 = por %p77, %p78
    %p80 = scmp.ne.s32.totalorder %s69, %s70
    %p81 = scmp.eq.s32.totalorder %s21, 0
    %p82 = por %p80, %p81
    %p83 = scmp.ne.s32.totalorder %s69, %s70
    %p84 = scmp.eq.s32.totalorder %s22, 1
    %p85 = por %p83, %p84
    %p87 = scmp.ne.s32.totalorder %s70, %s86
    %p88 = scmp.eq.s32.totalorder %s22, 0
    %p89 = por %p87, %p88
    %s91 = sadd.s32 %s90, 1
    %p94 = scmp.eq.s32.totalorder %s16, 1
    %p95 = scmp.ne.s32.totalorder %s90, %s92
    %p96 = scmp.eq.s32.totalorder %s16, 0
    %p97 = por %p95, %p96
    %p98 = scmp.ne.s32.totalorder %s90, %s92
    %p99 = scmp.eq.s32.totalorder %s21, 1
    %p100 = por %p98, %p99
    %p101 = scmp.ne.s32.totalorder %s92, %s93
    %p102 = scmp.eq.s32.totalorder %s21, 0
    %p103 = por %p101, %p102
    %p104 = scmp.ne.s32.totalorder %s92, %s93
    %p105 = scmp.eq.s32.totalorder %s22, 1
    %p106 = por %p104, %p105
    %p108 = scmp.ne.s32.totalorder %s93, %s107
    %p109 = scmp.eq.s32.totalorder %s22, 0
    %p110 = por %p108, %p109
    %s112 = sadd.s32 %s111, 1
    %p115 = scmp.eq.s32.totalorder %s16, 1
    %p116 = scmp.ne.s32.totalorder %s111, %s113
    %p117 = scmp.eq.s32.totalorder %s16, 0
    %p118 = por %p116, %p117
    %p119 = scmp.ne.s32.totalorder %s111, %s113
    %p120 = scmp.eq.s32.totalorder %s21, 1
    %p121 = por %p119, %p120
    %p122 = scmp.ne.s32.totalorder %s113, %s114
    %p123 = scmp.eq.s32.totalorder %s21, 0
    %p124 = por %p122, %p123
    %p125 = scmp.ne.s32.totalorder %s113, %s114
    %p126 = scmp.eq.s32.totalorder %s22, 1
    %p127 = por %p125, %p126
    %p129 = scmp.ne.s32.totalorder %s114, %s128
    %p130 = scmp.eq.s32.totalorder %s22, 0
    %p131 = por %p129, %p130
    %s133 = sadd.s32 %s132, 1
    %p136 = scmp.eq.s32.totalorder %s16, 1
    %p137 = scmp.ne.s32.totalorder %s132, %s134
    %p138 = scmp.eq.s32.totalorder %s16, 0
    %p139 = por %p137, %p138
    %p140 = scmp.ne.s32.totalorder %s132, %s134
    %p141 = scmp.eq.s32.totalorder %s21, 1
    %p142 = por %p140, %p141
    %p143 = scmp.ne.s32.totalorder %s134, %s135
    %p144 = scmp.eq.s32.totalorder %s21, 0
    %p145 = por %p143, %p144
    %p146 = scmp.ne.s32.totalorder %s134, %s135
    %p147 = scmp.eq.s32.totalorder %s22, 1
    %p148 = por %p146, %p147
    %p150 = scmp.ne.s32.totalorder %s135, %s149
    %p151 = scmp.eq.s32.totalorder %s22, 0
    %p152 = por %p150, %p151
    %s154 = sadd.s32 %s153, 1
    %p157 = scmp.eq.s32.totalorder %s16, 1
    %p158 = scmp.ne.s32.totalorder %s153, %s155
    %p159 = scmp.eq.s32.totalorder %s16, 0
    %p160 = por %p158, %p159
    %p161 = scmp.ne.s32.totalorder %s153, %s155
    %p162 = scmp.eq.s32.totalorder %s21, 1
    %p163 = por %p161, %p162
    %p164 = scmp.ne.s32.totalorder %s155, %s156
    %p165 = scmp.eq.s32.totalorder %s21, 0
    %p166 = por %p164, %p165
    %p167 = scmp.ne.s32.totalorder %s155, %s156
    %p168 = scmp.eq.s32.totalorder %s22, 1
    %p169 = por %p167, %p168
    %p171 = scmp.ne.s32.totalorder %s156, %s170
    %p172 = scmp.eq.s32.totalorder %s22, 0
    %p173 = por %p171, %p172
    %s175 = sadd.s32 %s174, 1
    %p178 = scmp.eq.s32.totalorder %s16, 1
    %p179 = scmp.ne.s32.totalorder %s174, %s176
    %p180 = scmp.eq.s32.totalorder %s16, 0
    %p181 = por %p179, %p180
    %p182 = scmp.ne.s32.totalorder %s174, %s176
    %p183 = scmp.eq.s32.totalorder %s21, 1
    %p184 = por %p182, %p183
    %p185 = scmp.ne.s32.totalorder %s176, %s177
    %p186 = scmp.eq.s32.totalorder %s21, 0
    %p187 = por %p185, %p186
    %p188 = scmp.ne.s32.totalorder %s176, %s177
    %p189 = scmp.eq.s32.totalorder %s22, 1
    %p190 = por %p188, %p189
    %p192 = scmp.ne.s32.totalorder %s177, %s191
    %p193 = scmp.eq.s32.totalorder %s22, 0
    %p194 = por %p192, %p193
    %s195 = ssub.s32 %s23, %s35
    %p196 = scmp.eq.s32.totalorder %s195, 0
    %s198 = sadd.s32 %s197, 1
    %s199 = scalar_select %p196, %s197, %s198
    %p202 = pneg %p196
    %p203 = scmp.eq.s32.totalorder %s16, 1
    %p204 = por %p202, %p203
    %p205 = scmp.ne.s32.totalorder %s197, %s200
    %p206 = scmp.eq.s32.totalorder %s16, 0
    %p207 = por %p205, %p206
    %p208 = scmp.ne.s32.totalorder %s197, %s200
    %p209 = scmp.eq.s32.totalorder %s21, 1
    %p210 = por %p208, %p209
    %p211 = scmp.ne.s32.totalorder %s200, %s201
    %p212 = scmp.eq.s32.totalorder %s21, 0
    %p213 = por %p211, %p212
    %p214 = scmp.ne.s32.totalorder %s200, %s201
    %p215 = scmp.eq.s32.totalorder %s22, 1
    %p216 = por %p214, %p215
    %p218 = scmp.ne.s32.totalorder %s201, %s217
    %p219 = scmp.eq.s32.totalorder %s22, 0
    %p220 = por %p218, %p219
    %s221 = ssub.s32 %s23, %s35
    %p222 = scmp.eq.s32.totalorder %s221, 0
    %s224 = sadd.s32 %s223, 1
    %s225 = scalar_select %p222, %s223, %s224
    %p228 = pneg %p222
    %p229 = scmp.eq.s32.totalorder %s16, 1
    %p230 = por %p228, %p229
    %p231 = scmp.ne.s32.totalorder %s223, %s226
    %p232 = scmp.eq.s32.totalorder %s16, 0
    %p233 = por %p231, %p232
    %p234 = scmp.ne.s32.totalorder %s223, %s226
    %p235 = scmp.eq.s32.totalorder %s21, 1
    %p236 = por %p234, %p235
    %p237 = scmp.ne.s32.totalorder %s226, %s227
    %p238 = scmp.eq.s32.totalorder %s21, 0
    %p239 = por %p237, %p238
    %p240 = scmp.ne.s32.totalorder %s226, %s227
    %p241 = scmp.eq.s32.totalorder %s22, 1
    %p242 = por %p240, %p241
    %p244 = scmp.ne.s32.totalorder %s227, %s243
    %p245 = scmp.eq.s32.totalorder %s22, 0
    %p246 = por %p244, %p245
    %s247 = ssub.s32 %s23, %s35
    %p248 = scmp.eq.s32.totalorder %s247, 0
    %s250 = sadd.s32 %s249, 1
    %s251 = scalar_select %p248, %s249, %s250
    %p254 = pneg %p248
    %p255 = scmp.eq.s32.totalorder %s16, 1
    %p256 = por %p254, %p255
    %p257 = scmp.ne.s32.totalorder %s249, %s252
    %p258 = scmp.eq.s32.totalorder %s16, 0
    %p259 = por %p257, %p258
    %p260 = scmp.ne.s32.totalorder %s249, %s252
    %p261 = scmp.eq.s32.totalorder %s21, 1
    %p262 = por %p260, %p261
    %p263 = scmp.ne.s32.totalorder %s252, %s253
    %p264 = scmp.eq.s32.totalorder %s21, 0
    %p265 = por %p263, %p264
    %p266 = scmp.ne.s32.totalorder %s252, %s253
    %p267 = scmp.eq.s32.totalorder %s22, 1
    %p268 = por %p266, %p267
    %p270 = scmp.ne.s32.totalorder %s253, %s269
    %p271 = scmp.eq.s32.totalorder %s22, 0
    %p272 = por %p270, %p271
    %p273 = scmp.le.s32.totalorder 1, %s16
    %p274 = scmp.lt.s32.totalorder %s16, 3
    %p275 = pnand %p273, %p274
    %p276 = pneg %p275
    // Predicated region
    $region9: #{point_transformer_last.14} parent=5 // pred_check
      _
    $region10: #{point_transformer_last.14} parent=5 // pred_check_branch
      %278 = sbr.rel (%p275) target = $region12
    $region11: #{point_transformer_last.14} parent=5 // pred_region
      %s279 = ssub.s32 %s16, 1
      // Predicated region
      $region13: #{point_transformer_last.14} parent=11 // pred_check
        %p280 = pneg %p103
      $region14: #{point_transformer_last.14} parent=11 // pred_check_branch
        %282 = sbr.rel (%p280) target = $region16
      $region15: #{point_transformer_last.14} parent=11 // pred_region
        _
      $region16: #{point_transformer_last.14} parent=11 // pred_fallthru
        _
      // Predicated region
      $region17: #{point_transformer_last.14} parent=11 // pred_check
        %p283 = pneg %p124
      $region18: #{point_transformer_last.14} parent=11 // pred_check_branch
        %285 = sbr.rel (%p283) target = $region20
      $region19: #{point_transformer_last.14} parent=11 // pred_region
        _
      $region20: #{point_transformer_last.14} parent=11 // pred_fallthru
        _
      // Predicated region
      $region21: #{point_transformer_last.14} parent=11 // pred_check
        %p286 = pneg %p145
      $region22: #{point_transformer_last.14} parent=11 // pred_check_branch
        %288 = sbr.rel (%p286) target = $region24
      $region23: #{point_transformer_last.14} parent=11 // pred_region
        _
      $region24: #{point_transformer_last.14} parent=11 // pred_fallthru
        _
      // Predicated region
      $region25: #{point_transformer_last.14} parent=11 // pred_check
        %p289 = pneg %p166
      $region26: #{point_transformer_last.14} parent=11 // pred_check_branch
        %291 = sbr.rel (%p289) target = $region28
      $region27: #{point_transformer_last.14} parent=11 // pred_region
        _
      $region28: #{point_transformer_last.14} parent=11 // pred_fallthru
        _
      // Predicated region
      $region29: #{point_transformer_last.14} parent=11 // pred_check
        %p292 = pneg %p187
      $region30: #{point_transformer_last.14} parent=11 // pred_check_branch
        %294 = sbr.rel (%p292) target = $region32
      $region31: #{point_transformer_last.14} parent=11 // pred_region
        _
      $region32: #{point_transformer_last.14} parent=11 // pred_fallthru
        _
    $region12: #{point_transformer_last.14} parent=5 // pred_fallthru
      _
    %p295 = scmp.lt.s32.totalorder %s16, 2
    // Predicated region
    $region33: #{point_transformer_last.14} parent=5 // pred_check
      %p296 = pneg %p295
    $region34: #{point_transformer_last.14} parent=5 // pred_check_branch
      %298 = sbr.rel (%p296) target = $region36
    $region35: #{point_transformer_last.14} parent=5 // pred_region
      // Predicated region
      $region37: #{point_transformer_last.14} parent=35 // pred_check
        %p299 = pneg %p48
      $region38: #{point_transformer_last.14} parent=35 // pred_check_branch
        %301 = sbr.rel (%p299) target = $region40
      $region39: #{point_transformer_last.14} parent=35 // pred_region
        %p302 = scmp.lt.s32.totalorder %s23, 1
        %s303 = scalar_select %p302, %s23, 1
        %s304 = smul.addr %s303, 8
        %s305 = smul.addr %s304, 8
        %s306 = scalar_lea.vmem %s0, %s305
      $region40: #{point_transformer_last.14} parent=35 // pred_fallthru
        _
      // Predicated region
      $region41: #{point_transformer_last.14} parent=35 // pred_check
        %p307 = pneg %p76
      $region42: #{point_transformer_last.14} parent=35 // pred_check_branch
        %309 = sbr.rel (%p307) target = $region44
      $region43: #{point_transformer_last.14} parent=35 // pred_region
        %p310 = scmp.lt.s32.totalorder %s23, 1
        %s311 = scalar_select %p310, %s23, 1
        %p312 = scmp.lt.s32.totalorder %s24, 0
        %s313 = scalar_select %p312, %s24, 0
        %s314 = smul.addr %s311, 8
        %s315 = sadd.s32 %s313, %s314
        %s316 = smul.addr %s315, 8
        %s317 = scalar_lea.vmem %s1, %s316
      $region44: #{point_transformer_last.14} parent=35 // pred_fallthru
        _
    $region36: #{point_transformer_last.14} parent=5 // pred_fallthru
      _
    %p318 = scmp.le.s32.totalorder 1, %s16
    %p319 = scmp.lt.s32.totalorder %s16, 3
    %p320 = pnand %p318, %p319
    %p321 = pneg %p320
    // Predicated region
    $region45: #{point_transformer_last.14} parent=5 // pred_check
      _
    $region46: #{point_transformer_last.14} parent=5 // pred_check_branch
      %323 = sbr.rel (%p320) target = $region48
    $region47: #{point_transformer_last.14} parent=5 // pred_region
      %s324 = ssub.s32 %s16, 1
      %p325 = scmp.lt.s32.totalorder %s25, 1
      %s326 = scalar_select %p325, %s25, 1
      %s327 = smul.addr %s326, 8
      %s328 = smul.addr %s327, 8
      %s329 = scalar_lea.vmem %s0, %s328
      %p330 = pneg %p54
      %p331 = pneg %p51
      %p332 = scmp.lt.s32.totalorder %s25, 1
      %s333 = scalar_select %p332, %s25, 1
      %p334 = scmp.lt.s32.totalorder %s26, 0
      %s335 = scalar_select %p334, %s26, 0
      %s336 = smul.addr %s333, 8
      %s337 = sadd.s32 %s335, %s336
      %s338 = smul.addr %s337, 8
      %s339 = scalar_lea.vmem %s1, %s338
      %p340 = pneg %p82
      %p341 = pneg %p79
      %p342 = pneg %p103
      %p343 = pneg %p100
      %p344 = pneg %p124
      %p345 = pneg %p121
      %p346 = pneg %p145
      %p347 = pneg %p142
      %p348 = pneg %p166
      %p349 = pneg %p163
      %p350 = pneg %p187
      %p351 = pneg %p184
      %p352 = pneg %p213
      %p353 = pneg %p210
      %p354 = scmp.lt.s32.totalorder %s25, 1
      %s355 = scalar_select %p354, %s25, 1
      %s356 = smul.addr %s355, 8
      %s357 = smul.addr %s356, 4
      %s358 = scalar_lea.vmem %s7, %s357
      %p359 = pneg %p239
      %p360 = pneg %p236
      %p361 = scmp.lt.s32.totalorder %s25, 1
      %s362 = scalar_select %p361, %s25, 1
      %s363 = smul.addr %s362, 8
      %s364 = smul.addr %s363, 8
      %s365 = scalar_lea.vmem %s8, %s364
      %p366 = pneg %p265
      %p367 = pneg %p262
      %p368 = scmp.lt.s32.totalorder %s25, 1
      %s369 = scalar_select %p368, %s25, 1
      %s370 = smul.addr %s369, 8
      %s371 = smul.addr %s370, 8
      %s372 = scalar_lea.vmem %s9, %s371
      %p373 = scmp.lt.s32.totalorder %s25, 1
      %s374 = scalar_select %p373, %s25, 1
      %s375 = smul.addr %s374, 8
      %s376 = smul.addr %s375, 8
      %s377 = scalar_lea.vmem %s0, %s376
      %p378 = scmp.lt.s32.totalorder %s25, 1
      %s379 = scalar_select %p378, %s25, 1
      %p380 = scmp.lt.s32.totalorder %s26, 0
      %s381 = scalar_select %p380, %s26, 0
      %s382 = smul.addr %s379, 8
      %s383 = sadd.s32 %s381, %s382
      %s384 = smul.addr %s383, 8
      %s385 = scalar_lea.vmem %s1, %s384
      %p386 = scmp.lt.s32.totalorder %s25, 1
      %s387 = scalar_select %p386, %s25, 1
      %s388 = smul.addr %s387, 8
      %s389 = smul.addr %s388, 4
      %s390 = scalar_lea.vmem %s7, %s389
      %p391 = scmp.lt.s32.totalorder %s25, 1
      %s392 = scalar_select %p391, %s25, 1
      %s393 = smul.addr %s392, 8
      %s394 = smul.addr %s393, 8
      %s395 = scalar_lea.vmem %s8, %s394
      %p396 = scmp.lt.s32.totalorder %s25, 1
      %s397 = scalar_select %p396, %s25, 1
      %s398 = smul.addr %s397, 8
      %s399 = smul.addr %s398, 8
      %s400 = scalar_lea.vmem %s9, %s399
      %p402 = scmp.eq.s32.totalorder %s26, 0
      // Predicated region
      $region49: #{point_transformer_last.14} parent=47 // pred_check
        %p403 = pneg %p402
      $region50: #{point_transformer_last.14} parent=47 // pred_check_branch
        %405 = sbr.rel (%p403) target = $region52
      $region51: #{point_transformer_last.14} parent=47 // pred_region
        %406 = vst [vmem:[#allocation3] sm:$0xff] 0.0
        %407 = vst [vmem:[#allocation3 + $0x8] sm:$0xff] 0.0
        %408 = vst [vmem:[#allocation3 + $0x10] sm:$0xff] 0.0
        %409 = vst [vmem:[#allocation3 + $0x18] sm:$0xff] 0.0
        %410 = vst [vmem:[#allocation3 + $0x20] sm:$0xff] 0.0
        %411 = vst [vmem:[#allocation3 + $0x28] sm:$0xff] 0.0
        %412 = vst [vmem:[#allocation3 + $0x30] sm:$0xff] 0.0
        %413 = vst [vmem:[#allocation3 + $0x38] sm:$0xff] 0.0
        %414 = vst [vmem:[#allocation4] sm:$0x1] 0.0
        %v415 = vld [vmem:[%s2] sm:$0xf]
        %v416 = vld [vmem:[%s2 + $0x4] sm:$0xf]
        %v417 = vld [vmem:[%s377] sm:$0xff]
        %v418 = vld [vmem:[%s377 + $0x8] sm:$0xff]
        %v419 = vld [vmem:[%s377 + $0x10] sm:$0xff]
        %v420 = vld [vmem:[%s377 + $0x18] sm:$0xff]
        %v421 = vld [vmem:[%s377 + $0x20] sm:$0xff]
        %v422 = vld [vmem:[%s377 + $0x28] sm:$0xff]
        %v423 = vld [vmem:[%s377 + $0x30] sm:$0xff]
        %v424 = vld [vmem:[%s377 + $0x38] sm:$0xff]
        %v425 = vpack.c.bf16 %v418, %v417
        %v426 = vpack.c.bf16 %v420, %v419
        %v427 = vpack.c.bf16 %v422, %v421
        %v428 = vpack.c.bf16 %v424, %v423
        %v431 = vunpack.c.l.b16 %v415
        %v432 = vunpack.c.l.b16 %v416
        %v433 = vpack.c.b16 %v432, %v431
        %vm434 = vcmask 523264
        %v436 = vsel %vm434, %v433, 0
        %438 = vmatprep.subr.bf16.mxu0 0
        %439 = vmatpush1.bf16.msra.mxu0 %v425
        %440 = vmatprep.subr.bf16.mxu0 0
        %441 = vmatpush1.bf16.msra.mxu0 %v426
        %442 = vmatprep.subr.bf16.mxu0 0
        %443 = vmatpush1.bf16.msra.mxu0 %v427
        %444 = vmatprep.subr.bf16.mxu0 0
        %445 = vmatpush1.bf16.msra.mxu0 %v428
        %446 = vmatprep.subr.bf16.mxu0 0
        %447 = vmatpush1.bf16.msra.mxu0 0
        %448 = vmatprep.subr.bf16.mxu0 0
        %449 = vmatpush1.bf16.msra.mxu0 0
        %450 = vmatprep.subr.bf16.mxu0 0
        %451 = vmatpush1.bf16.msra.mxu0 0
        %452 = vmatprep.subr.bf16.mxu0 0
        %453 = vmatpush1.bf16.msra.mxu0 0
        %454 = vmatprep.subr.bf16.mxu0 0
        %455 = vmatpush1.bf16.msra.mxu0 0
        %456 = vmatprep.subr.bf16.mxu0 0
        %457 = vmatpush1.bf16.msra.mxu0 0
        %458 = vmatprep.subr.bf16.mxu0 0
        %459 = vmatpush1.bf16.msra.mxu0 0
        %460 = vmatprep.subr.bf16.mxu0 0
        %461 = vmatpush1.bf16.msra.mxu0 0
        %462 = vmatprep.subr.bf16.mxu0 0
        %463 = vmatpush1.bf16.msra.mxu0 0
        %464 = vmatprep.subr.bf16.mxu0 0
        %465 = vmatpush1.bf16.msra.mxu0 0
        %466 = vmatprep.subr.bf16.mxu0 0
        %467 = vmatpush1.bf16.msra.mxu0 0
        %468 = vmatprep.subr.bf16.mxu0 0
        %469 = vmatpush1.bf16.msra.mxu0 0
        %470 = vmatprep.mubr.bf16.mxu0 0
        %471 = vmatmul.mubr.bf16.gmra.mrb[0].mxu0 %v436
        %v472 = vpop.f32.mrb[0].mxu0
        %v473 = vadd.f32 0.0, %v472
        %v474 = vpop.f32.mrb[0].mxu0
        %v475 = vpop.f32.mrb[0].mxu0
        %v476 = vadd.f32 0.0, %v475
        %v477 = vpop.f32.mrb[0].mxu0
        %478 = vdwg.mxu0
        %v479 = vpack.c.bf16 %v476, %v473
        %480 = vst [vmem:[#allocation2] sm:$0xff] %v479
      $region52: #{point_transformer_last.14} parent=47 // pred_fallthru
        _
      %v481 = vld [vmem:[%s385] sm:$0xff]
      %v482 = vld [vmem:[%s385 + $0x8] sm:$0xff]
      %v483 = vld [vmem:[%s385 + $0x10] sm:$0xff]
      %v484 = vld [vmem:[%s385 + $0x18] sm:$0xff]
      %v485 = vld [vmem:[%s385 + $0x20] sm:$0xff]
      %v486 = vld [vmem:[%s385 + $0x28] sm:$0xff]
      %v487 = vld [vmem:[%s385 + $0x30] sm:$0xff]
      %v488 = vld [vmem:[%s385 + $0x38] sm:$0xff]
      %v489 = vpack.c.bf16 %v482, %v481
      %v490 = vpack.c.bf16 %v484, %v483
      %v491 = vpack.c.bf16 %v486, %v485
      %v492 = vpack.c.bf16 %v488, %v487
      %v493 = vld [vmem:[%s2] sm:$0xf]
      %v494 = vld [vmem:[%s2 + $0x4] sm:$0xf]
      %v497 = vunpack.c.l.b16 %v493
      %v498 = vunpack.c.l.b16 %v494
      %v499 = vpack.c.b16 %v498, %v497
      %vm500 = vcmask 523264
      %v502 = vsel %vm500, %v499, 0
      %504 = vmatprep.subr.bf16.mxu0 0
      %505 = vmatpush1.bf16.msra.mxu0 %v489
      %506 = vmatprep.subr.bf16.mxu0 0
      %507 = vmatpush1.bf16.msra.mxu0 %v490
      %508 = vmatprep.subr.bf16.mxu0 0
      %509 = vmatpush1.bf16.msra.mxu0 %v491
      %510 = vmatprep.subr.bf16.mxu0 0
      %511 = vmatpush1.bf16.msra.mxu0 %v492
      %512 = vmatprep.subr.bf16.mxu0 0
      %513 = vmatpush1.bf16.msra.mxu0 0
      %514 = vmatprep.subr.bf16.mxu0 0
      %515 = vmatpush1.bf16.msra.mxu0 0
      %516 = vmatprep.subr.bf16.mxu0 0
      %517 = vmatpush1.bf16.msra.mxu0 0
      %518 = vmatprep.subr.bf16.mxu0 0
      %519 = vmatpush1.bf16.msra.mxu0 0
      %520 = vmatprep.subr.bf16.mxu0 0
      %521 = vmatpush1.bf16.msra.mxu0 0
      %522 = vmatprep.subr.bf16.mxu0 0
      %523 = vmatpush1.bf16.msra.mxu0 0
      %524 = vmatprep.subr.bf16.mxu0 0
      %525 = vmatpush1.bf16.msra.mxu0 0
      %526 = vmatprep.subr.bf16.mxu0 0
      %527 = vmatpush1.bf16.msra.mxu0 0
      %528 = vmatprep.subr.bf16.mxu0 0
      %529 = vmatpush1.bf16.msra.mxu0 0
      %530 = vmatprep.subr.bf16.mxu0 0
      %531 = vmatpush1.bf16.msra.mxu0 0
      %532 = vmatprep.subr.bf16.mxu0 0
      %533 = vmatpush1.bf16.msra.mxu0 0
      %534 = vmatprep.subr.bf16.mxu0 0
      %535 = vmatpush1.bf16.msra.mxu0 0
      %536 = vmatprep.mubr.bf16.mxu0 0
      %537 = vmatmul.mubr.bf16.gmra.mrb[0].mxu0 %v502
      %v538 = vpop.f32.mrb[0].mxu0
      %v539 = vadd.f32 0.0, %v538
      %v540 = vpop.f32.mrb[0].mxu0
      %v541 = vpop.f32.mrb[0].mxu0
      %v542 = vadd.f32 0.0, %v541
      %v543 = vpop.f32.mrb[0].mxu0
      %544 = vdwg.mxu0
      %v545 = vpack.c.bf16 %v542, %v539
      %v546 = vld [vmem:[#allocation2] sm:$0xff]
      %547 = vxpose.xlu0.c.b16.start [1/8] %v545, 128
      %548 = vxpose.xlu0.c.b16.cont [2/8] 0, 128
      %549 = vxpose.xlu0.c.b16.cont [3/8] 0, 128
      %550 = vxpose.xlu0.c.b16.cont [4/8] 0, 128
      %551 = vxpose.xlu0.c.b16.cont [5/8] 0, 128
      %552 = vxpose.xlu0.c.b16.cont [6/8] 0, 128
      %553 = vxpose.xlu0.c.b16.cont [7/8] 0, 128
      %554 = vxpose.xlu0.c.b16.end [8/8] 0, 128
      %v555 = vpop.trf.xlu0
      %v556 = vpop.trf.xlu0
      %v557 = vpop.trf.xlu0
      %v558 = vpop.trf.xlu0
      %v559 = vpop.trf.xlu0
      %v560 = vpop.trf.xlu0
      %v561 = vpop.trf.xlu0
      %v562 = vpop.trf.xlu0
      %vm563 = vcmask 130048
      %v565 = vsel %vm563, %v555, 0
      %v568 = vsel %vm563, %v556, 0
      %v571 = vsel %vm563, %v557, 0
      %v574 = vsel %vm563, %v558, 0
      %v577 = vsel %vm563, %v559, 0
      %v580 = vsel %vm563, %v560, 0
      %v583 = vsel %vm563, %v561, 0
      %v586 = vsel %vm563, %v562, 0
      %588 = vmatprep.subr.bf16.mxu0 0
      %589 = vmatpush1.bf16.msra.mxu0 %v546
      %590 = vmatprep.subr.bf16.mxu0 0
      %591 = vmatpush1.bf16.msra.mxu0 0
      %592 = vmatprep.subr.bf16.mxu0 0
      %593 = vmatpush1.bf16.msra.mxu0 0
      %594 = vmatprep.subr.bf16.mxu0 0
      %595 = vmatpush1.bf16.msra.mxu0 0
      %596 = vmatprep.subr.bf16.mxu0 0
      %597 = vmatpush1.bf16.msra.mxu0 0
      %598 = vmatprep.subr.bf16.mxu0 0
      %599 = vmatpush1.bf16.msra.mxu0 0
      %600 = vmatprep.subr.bf16.mxu0 0
      %601 = vmatpush1.bf16.msra.mxu0 0
      %602 = vmatprep.subr.bf16.mxu0 0
      %603 = vmatpush1.bf16.msra.mxu0 0
      %604 = vmatprep.subr.bf16.mxu0 0
      %605 = vmatpush1.bf16.msra.mxu0 0
      %606 = vmatprep.subr.bf16.mxu0 0
      %607 = vmatpush1.bf16.msra.mxu0 0
      %608 = vmatprep.subr.bf16.mxu0 0
      %609 = vmatpush1.bf16.msra.mxu0 0
      %610 = vmatprep.subr.bf16.mxu0 0
      %611 = vmatpush1.bf16.msra.mxu0 0
      %612 = vmatprep.subr.bf16.mxu0 0
      %613 = vmatpush1.bf16.msra.mxu0 0
      %614 = vmatprep.subr.bf16.mxu0 0
      %615 = vmatpush1.bf16.msra.mxu0 0
      %616 = vmatprep.subr.bf16.mxu0 0
      %617 = vmatpush1.bf16.msra.mxu0 0
      %618 = vmatprep.subr.bf16.mxu0 0
      %619 = vmatpush1.bf16.msra.mxu0 0
      %620 = vmatprep.mubr.bf16.mxu0 0
      %621 = vmatmul.mubr.bf16.gmra.mrb[0].mxu0 %v565
      %v622 = vpop.f32.mrb[0].mxu0
      %v623 = vadd.f32 0.0, %v622
      %v624 = vpop.f32.mrb[0].mxu0
      %v625 = vpop.f32.mrb[0].mxu0
      %v626 = vadd.f32 0.0, %v625
      %v627 = vpop.f32.mrb[0].mxu0
      %628 = vmatprep.mubr.bf16.mxu0 0
      %629 = vmatmul.mubr.bf16.gmra.mrb[0].mxu0 %v568
      %v630 = vpop.f32.mrb[0].mxu0
      %v631 = vadd.f32 0.0, %v630
      %v632 = vpop.f32.mrb[0].mxu0
      %v633 = vpop.f32.mrb[0].mxu0
      %v634 = vadd.f32 0.0, %v633
      %v635 = vpop.f32.mrb[0].mxu0
      %636 = vmatprep.mubr.bf16.mxu0 0
      %637 = vmatmul.mubr.bf16.gmra.mrb[0].mxu0 %v571
      %v638 = vpop.f32.mrb[0].mxu0
      %v639 = vadd.f32 0.0, %v638
      %v640 = vpop.f32.mrb[0].mxu0
      %v641 = vpop.f32.mrb[0].mxu0
      %v642 = vadd.f32 0.0, %v641
      %v643 = vpop.f32.mrb[0].mxu0
      %644 = vmatprep.mubr.bf16.mxu0 0
      %645 = vmatmul.mubr.bf16.gmra.mrb[0].mxu0 %v574
      %v646 = vpop.f32.mrb[0].mxu0
      %v647 = vadd.f32 0.0, %v646
      %v648 = vpop.f32.mrb[0].mxu0
      %v649 = vpop.f32.mrb[0].mxu0
      %v650 = vadd.f32 0.0, %v649
      %v651 = vpop.f32.mrb[0].mxu0
      %652 = vmatprep.mubr.bf16.mxu0 0
      %653 = vmatmul.mubr.bf16.gmra.mrb[0].mxu0 %v577
      %v654 = vpop.f32.mrb[0].mxu0
      %v655 = vadd.f32 0.0, %v654
      %v656 = vpop.f32.mrb[0].mxu0
      %v657 = vpop.f32.mrb[0].mxu0
      %v658 = vadd.f32 0.0, %v657
      %v659 = vpop.f32.mrb[0].mxu0
      %660 = vmatprep.mubr.bf16.mxu0 0
      %661 = vmatmul.mubr.bf16.gmra.mrb[0].mxu0 %v580
      %v662 = vpop.f32.mrb[0].mxu0
      %v663 = vadd.f32 0.0, %v662
      %v664 = vpop.f32.mrb[0].mxu0
      %v665 = vpop.f32.mrb[0].mxu0
      %v666 = vadd.f32 0.0, %v665
      %v667 = vpop.f32.mrb[0].mxu0
      %668 = vmatprep.mubr.bf16.mxu0 0
      %669 = vmatmul.mubr.bf16.gmra.mrb[0].mxu0 %v583
      %v670 = vpop.f32.mrb[0].mxu0
      %v671 = vadd.f32 0.0, %v670
      %v672 = vpop.f32.mrb[0].mxu0
      %v673 = vpop.f32.mrb[0].mxu0
      %v674 = vadd.f32 0.0, %v673
      %v675 = vpop.f32.mrb[0].mxu0
      %676 = vmatprep.mubr.bf16.mxu0 0
      %677 = vmatmul.mubr.bf16.gmra.mrb[0].mxu0 %v586
      %v678 = vpop.f32.mrb[0].mxu0
      %v679 = vadd.f32 0.0, %v678
      %v680 = vpop.f32.mrb[0].mxu0
      %v681 = vpop.f32.mrb[0].mxu0
      %v682 = vadd.f32 0.0, %v681
      %v683 = vpop.f32.mrb[0].mxu0
      %684 = vdwg.mxu0
      %685 = vmax.xlane.f32.xlu0 %v623
      %v686 = vpop.xlane.xlu0 %685
      %687 = vmax.xlane.f32.xlu0 %v626
      %v688 = vpop.xlane.xlu0 %687
      %689 = vmax.xlane.f32.xlu0 %v631
      %v690 = vpop.xlane.xlu0 %689
      %691 = vmax.xlane.f32.xlu0 %v634
      %v692 = vpop.xlane.xlu0 %691
      %693 = vmax.xlane.f32.xlu0 %v639
      %v694 = vpop.xlane.xlu0 %693
      %695 = vmax.xlane.f32.xlu0 %v642
      %v696 = vpop.xlane.xlu0 %695
      %697 = vmax.xlane.f32.xlu0 %v647
      %v698 = vpop.xlane.xlu0 %697
      %699 = vmax.xlane.f32.xlu0 %v650
      %v700 = vpop.xlane.xlu0 %699
      %701 = vmax.xlane.f32.xlu0 %v655
      %v702 = vpop.xlane.xlu0 %701
      %703 = vmax.xlane.f32.xlu0 %v658
      %v704 = vpop.xlane.xlu0 %703
      %705 = vmax.xlane.f32.xlu0 %v663
      %v706 = vpop.xlane.xlu0 %705
      %707 = vmax.xlane.f32.xlu0 %v666
      %v708 = vpop.xlane.xlu0 %707
      %709 = vmax.xlane.f32.xlu0 %v671
      %v710 = vpop.xlane.xlu0 %709
      %711 = vmax.xlane.f32.xlu0 %v674
      %v712 = vpop.xlane.xlu0 %711
      %713 = vmax.xlane.f32.xlu0 %v679
      %v714 = vpop.xlane.xlu0 %713
      %715 = vmax.xlane.f32.xlu0 %v682
      %v716 = vpop.xlane.xlu0 %715
      %v717 = vsub.f32 %v623, %v686
      %v718 = vsub.f32 %v626, %v688
      %v719 = vsub.f32 %v631, %v690
      %v720 = vsub.f32 %v634, %v692
      %v721 = vsub.f32 %v639, %v694
      %v722 = vsub.f32 %v642, %v696
      %v723 = vsub.f32 %v647, %v698
      %v724 = vsub.f32 %v650, %v700
      %v725 = vsub.f32 %v655, %v702
      %v726 = vsub.f32 %v658, %v704
      %v727 = vsub.f32 %v663, %v706
      %v728 = vsub.f32 %v666, %v708
      %v729 = vsub.f32 %v671, %v710
      %v730 = vsub.f32 %v674, %v712
      %v731 = vsub.f32 %v679, %v714
      %v732 = vsub.f32 %v682, %v716
      %v733 = vmul.f32 %v717, 1.442695
      %v734 = vpow.pop %v733
      %v735 = vmul.f32 %v718, 1.442695
      %v736 = vpow.pop %v735
      %v737 = vmul.f32 %v719, 1.442695
      %v738 = vpow.pop %v737
      %v739 = vmul.f32 %v720, 1.442695
      %v740 = vpow.pop %v739
      %v741 = vmul.f32 %v721, 1.442695
      %v742 = vpow.pop %v741
      %v743 = vmul.f32 %v722, 1.442695
      %v744 = vpow.pop %v743
      %v745 = vmul.f32 %v723, 1.442695
      %v746 = vpow.pop %v745
      %v747 = vmul.f32 %v724, 1.442695
      %v748 = vpow.pop %v747
      %v749 = vmul.f32 %v725, 1.442695
      %v750 = vpow.pop %v749
      %v751 = vmul.f32 %v726, 1.442695
      %v752 = vpow.pop %v751
      %v753 = vmul.f32 %v727, 1.442695
      %v754 = vpow.pop %v753
      %v755 = vmul.f32 %v728, 1.442695
      %v756 = vpow.pop %v755
      %v757 = vmul.f32 %v729, 1.442695
      %v758 = vpow.pop %v757
      %v759 = vmul.f32 %v730, 1.442695
      %v760 = vpow.pop %v759
      %v761 = vmul.f32 %v731, 1.442695
      %v762 = vpow.pop %v761
      %v763 = vmul.f32 %v732, 1.442695
      %v764 = vpow.pop %v763
      %765 = vadd.xlane.f32.xlu0 %v734
      %v766 = vpop.xlane.xlu0 %765
      %767 = vadd.xlane.f32.xlu0 %v736
      %v768 = vpop.xlane.xlu0 %767
      %769 = vadd.xlane.f32.xlu0 %v738
      %v770 = vpop.xlane.xlu0 %769
      %771 = vadd.xlane.f32.xlu0 %v740
      %v772 = vpop.xlane.xlu0 %771
      %773 = vadd.xlane.f32.xlu0 %v742
      %v774 = vpop.xlane.xlu0 %773
      %775 = vadd.xlane.f32.xlu0 %v744
      %v776 = vpop.xlane.xlu0 %775
      %777 = vadd.xlane.f32.xlu0 %v746
      %v778 = vpop.xlane.xlu0 %777
      %779 = vadd.xlane.f32.xlu0 %v748
      %v780 = vpop.xlane.xlu0 %779
      %781 = vadd.xlane.f32.xlu0 %v750
      %v782 = vpop.xlane.xlu0 %781
      %783 = vadd.xlane.f32.xlu0 %v752
      %v784 = vpop.xlane.xlu0 %783
      %785 = vadd.xlane.f32.xlu0 %v754
      %v786 = vpop.xlane.xlu0 %785
      %787 = vadd.xlane.f32.xlu0 %v756
      %v788 = vpop.xlane.xlu0 %787
      %789 = vadd.xlane.f32.xlu0 %v758
      %v790 = vpop.xlane.xlu0 %789
      %791 = vadd.xlane.f32.xlu0 %v760
      %v792 = vpop.xlane.xlu0 %791
      %793 = vadd.xlane.f32.xlu0 %v762
      %v794 = vpop.xlane.xlu0 %793
      %795 = vadd.xlane.f32.xlu0 %v764
      %v796 = vpop.xlane.xlu0 %795
      %v797 = vrcp.pop %v766
      %v798 = vmul.f32 1.0, %v797
      %v799 = vrcp.pop %v768
      %v800 = vmul.f32 1.0, %v799
      %v801 = vrcp.pop %v770
      %v802 = vmul.f32 1.0, %v801
      %v803 = vrcp.pop %v772
      %v804 = vmul.f32 1.0, %v803
      %v805 = vrcp.pop %v774
      %v806 = vmul.f32 1.0, %v805
      %v807 = vrcp.pop %v776
      %v808 = vmul.f32 1.0, %v807
      %v809 = vrcp.pop %v778
      %v810 = vmul.f32 1.0, %v809
      %v811 = vrcp.pop %v780
      %v812 = vmul.f32 1.0, %v811
      %v813 = vrcp.pop %v782
      %v814 = vmul.f32 1.0, %v813
      %v815 = vrcp.pop %v784
      %v816 = vmul.f32 1.0, %v815
      %v817 = vrcp.pop %v786
      %v818 = vmul.f32 1.0, %v817
      %v819 = vrcp.pop %v788
      %v820 = vmul.f32 1.0, %v819
      %v821 = vrcp.pop %v790
      %v822 = vmul.f32 1.0, %v821
      %v823 = vrcp.pop %v792
      %v824 = vmul.f32 1.0, %v823
      %v825 = vrcp.pop %v794
      %v826 = vmul.f32 1.0, %v825
      %v827 = vrcp.pop %v796
      %v828 = vmul.f32 1.0, %v827
      %v829 = vmul.f32 %v734, %v798
      %v830 = vmul.f32 %v736, %v800
      %v831 = vmul.f32 %v738, %v802
      %v832 = vmul.f32 %v740, %v804
      %v833 = vmul.f32 %v742, %v806
      %v834 = vmul.f32 %v744, %v808
      %v835 = vmul.f32 %v746, %v810
      %v836 = vmul.f32 %v748, %v812
      %v837 = vmul.f32 %v750, %v814
      %v838 = vmul.f32 %v752, %v816
      %v839 = vmul.f32 %v754, %v818
      %v840 = vmul.f32 %v756, %v820
      %v841 = vmul.f32 %v758, %v822
      %v842 = vmul.f32 %v760, %v824
      %v843 = vmul.f32 %v762, %v826
      %v844 = vmul.f32 %v764, %v828
      %v845 = vld [vmem:[%s3] sm:$0xf]
      %v846 = vld [vmem:[%s3 + $0x4] sm:$0xf]
      %v847 = vld [vmem:[%s3 + $0x8] sm:$0xf]
      %v848 = vld [vmem:[%s3 + $0xc] sm:$0xf]
      %v849 = vld [vmem:[%s3 + $0x10] sm:$0xf]
      %v850 = vld [vmem:[%s3 + $0x14] sm:$0xf]
      %v851 = vld [vmem:[%s3 + $0x18] sm:$0xf]
      %v852 = vld [vmem:[%s3 + $0x1c] sm:$0xf]
      %v853 = vld [vmem:[%s4] sm:$0xff]
      %v854 = vld [vmem:[%s4 + $0x8] sm:$0xff]
      %v855 = vld [vmem:[%s4 + $0x10] sm:$0xff]
      %v856 = vld [vmem:[%s4 + $0x18] sm:$0xff]
      %v857 = vld [vmem:[%s4 + $0x20] sm:$0xff]
      %v858 = vld [vmem:[%s4 + $0x28] sm:$0xff]
      %v859 = vld [vmem:[%s4 + $0x30] sm:$0xff]
      %v860 = vld [vmem:[%s4 + $0x38] sm:$0xff]
      %862 = vset.pattern.permute.xlu0 0
      %863 = vperm.xlu0 %862, %v853
      %v864 = vpop.permute.xlu0 %863
      %867 = vset.pattern.permute.xlu0 0
      %868 = vperm.xlu0 %867, %v854
      %v869 = vpop.permute.xlu0 %868
      %872 = vset.pattern.permute.xlu0 0
      %873 = vperm.xlu0 %872, %v855
      %v874 = vpop.permute.xlu0 %873
      %877 = vset.pattern.permute.xlu0 0
      %878 = vperm.xlu0 %877, %v856
      %v879 = vpop.permute.xlu0 %878
      %882 = vset.pattern.permute.xlu0 0
      %883 = vperm.xlu0 %882, %v857
      %v884 = vpop.permute.xlu0 %883
      %887 = vset.pattern.permute.xlu0 0
      %888 = vperm.xlu0 %887, %v858
      %v889 = vpop.permute.xlu0 %888
      %892 = vset.pattern.permute.xlu0 0
      %893 = vperm.xlu0 %892, %v859
      %v894 = vpop.permute.xlu0 %893
      %897 = vset.pattern.permute.xlu0 0
      %898 = vperm.xlu0 %897, %v860
      %v899 = vpop.permute.xlu0 %898
      %v909 = vunpack.c.l.b16 %v845
      %v910 = vunpack.c.l.b16 %v846
      %v911 = vunpack.c.l.b16 %v847
      %v912 = vunpack.c.l.b16 %v848
      %v913 = vunpack.c.l.b16 %v849
      %v914 = vunpack.c.l.b16 %v850
      %v915 = vunpack.c.l.b16 %v851
      %v916 = vunpack.c.l.b16 %v852
      %v917 = vpack.c.b16 %v910, %v909
      %v918 = vpack.c.b16 %v912, %v911
      %v919 = vpack.c.b16 %v914, %v913
      %v920 = vpack.c.b16 %v916, %v915
      %v922 = vsel %vm500, %v917, 0
      %v925 = vsel %vm500, %v918, 0
      %v928 = vsel %vm500, %v919, 0
      %v931 = vsel %vm500, %v920, 0
      %933 = vmatprep.subr.bf16.mxu0 0
      %934 = vmatpush1.bf16.msra.mxu0 %v489
      %935 = vmatprep.subr.bf16.mxu0 0
      %936 = vmatpush1.bf16.msra.mxu0 %v490
      %937 = vmatprep.subr.bf16.mxu0 0
      %938 = vmatpush1.bf16.msra.mxu0 %v491
      %939 = vmatprep.subr.bf16.mxu0 0
      %940 = vmatpush1.bf16.msra.mxu0 %v492
      %941 = vmatprep.subr.bf16.mxu0 0
      %942 = vmatpush1.bf16.msra.mxu0 0
      %943 = vmatprep.subr.bf16.mxu0 0
      %944 = vmatpush1.bf16.msra.mxu0 0
      %945 = vmatprep.subr.bf16.mxu0 0
      %946 = vmatpush1.bf16.msra.mxu0 0
      %947 = vmatprep.subr.bf16.mxu0 0
      %948 = vmatpush1.bf16.msra.mxu0 0
      %949 = vmatprep.subr.bf16.mxu0 0
      %950 = vmatpush1.bf16.msra.mxu0 0
      %951 = vmatprep.subr.bf16.mxu0 0
      %952 = vmatpush1.bf16.msra.mxu0 0
      %953 = vmatprep.subr.bf16.mxu0 0
      %954 = vmatpush1.bf16.msra.mxu0 0
      %955 = vmatprep.subr.bf16.mxu0 0
      %956 = vmatpush1.bf16.msra.mxu0 0
      %957 = vmatprep.subr.bf16.mxu0 0
      %958 = vmatpush1.bf16.msra.mxu0 0
      %959 = vmatprep.subr.bf16.mxu0 0
      %960 = vmatpush1.bf16.msra.mxu0 0
      %961 = vmatprep.subr.bf16.mxu0 0
      %962 = vmatpush1.bf16.msra.mxu0 0
      %963 = vmatprep.subr.bf16.mxu0 0
      %964 = vmatpush1.bf16.msra.mxu0 0
      %965 = vmatprep.mubr.bf16.mxu0 0
      %966 = vmatmul.mubr.bf16.gmra.mrb[0].mxu0 %v922
      %v967 = vpop.f32.mrb[0].mxu0
      %v968 = vadd.f32 %v864, %v967
      %v969 = vpop.f32.mrb[0].mxu0
      %v970 = vpop.f32.mrb[0].mxu0
      %v971 = vadd.f32 %v869, %v970
      %v972 = vpop.f32.mrb[0].mxu0
      %973 = vmatprep.mubr.bf16.mxu0 0
      %974 = vmatmul.mubr.bf16.gmra.mrb[0].mxu0 %v925
      %v975 = vpop.f32.mrb[0].mxu0
      %v976 = vadd.f32 %v874, %v975
      %v977 = vpop.f32.mrb[0].mxu0
      %v978 = vpop.f32.mrb[0].mxu0
      %v979 = vadd.f32 %v879, %v978
      %v980 = vpop.f32.mrb[0].mxu0
      %981 = vmatprep.mubr.bf16.mxu0 0
      %982 = vmatmul.mubr.bf16.gmra.mrb[0].mxu0 %v928
      %v983 = vpop.f32.mrb[0].mxu0
      %v984 = vadd.f32 %v884, %v983
      %v985 = vpop.f32.mrb[0].mxu0
      %v986 = vpop.f32.mrb[0].mxu0
      %v987 = vadd.f32 %v889, %v986
      %v988 = vpop.f32.mrb[0].mxu0
      %989 = vmatprep.mubr.bf16.mxu0 0
      %990 = vmatmul.mubr.bf16.gmra.mrb[0].mxu0 %v931
      %v991 = vpop.f32.mrb[0].mxu0
      %v992 = vadd.f32 %v894, %v991
      %v993 = vpop.f32.mrb[0].mxu0
      %v994 = vpop.f32.mrb[0].mxu0
      %v995 = vadd.f32 %v899, %v994
      %v996 = vpop.f32.mrb[0].mxu0
      %997 = vdwg.mxu0
      %v998 = vld [vmem:[#allocation3] sm:$0xff]
      %v999 = vld [vmem:[#allocation3 + $0x8] sm:$0xff]
      %v1000 = vld [vmem:[#allocation3 + $0x10] sm:$0xff]
      %v1001 = vld [vmem:[#allocation3 + $0x18] sm:$0xff]
      %v1002 = vld [vmem:[#allocation3 + $0x20] sm:$0xff]
      %v1003 = vld [vmem:[#allocation3 + $0x28] sm:$0xff]
      %v1004 = vld [vmem:[#allocation3 + $0x30] sm:$0xff]
      %v1005 = vld [vmem:[#allocation3 + $0x38] sm:$0xff]
      %v1006 = vpack.c.bf16 %v971, %v968
      %v1007 = vpack.c.bf16 %v979, %v976
      %v1008 = vpack.c.bf16 %v987, %v984
      %v1009 = vpack.c.bf16 %v995, %v992
      %v1010 = vpack.c.bf16 %v830, %v829
      %v1011 = vpack.c.bf16 %v832, %v831
      %v1012 = vpack.c.bf16 %v834, %v833
      %v1013 = vpack.c.bf16 %v836, %v835
      %v1014 = vpack.c.bf16 %v838, %v837
      %v1015 = vpack.c.bf16 %v840, %v839
      %v1016 = vpack.c.bf16 %v842, %v841
      %v1017 = vpack.c.bf16 %v844, %v843
      %1018 = vmatprep.subr.bf16.mxu0 0
      %1019 = vmatpush1.bf16.msra.mxu0 %v1010
      %1020 = vmatprep.subr.bf16.mxu0 0
      %1021 = vmatpush1.bf16.msra.mxu0 %v1011
      %1022 = vmatprep.subr.bf16.mxu0 0
      %1023 = vmatpush1.bf16.msra.mxu0 %v1012
      %1024 = vmatprep.subr.bf16.mxu0 0
      %1025 = vmatpush1.bf16.msra.mxu0 %v1013
      %1026 = vmatprep.subr.bf16.mxu0 0
      %1027 = vmatpush1.bf16.msra.mxu0 %v1014
      %1028 = vmatprep.subr.bf16.mxu0 0
      %1029 = vmatpush1.bf16.msra.mxu0 %v1015
      %1030 = vmatprep.subr.bf16.mxu0 0
      %1031 = vmatpush1.bf16.msra.mxu0 %v1016
      %1032 = vmatprep.subr.bf16.mxu0 0
      %1033 = vmatpush1.bf16.msra.mxu0 %v1017
      %1034 = vmatprep.subr.bf16.mxu0 0
      %1035 = vmatpush1.bf16.msra.mxu0 0
      %1036 = vmatprep.subr.bf16.mxu0 0
      %1037 = vmatpush1.bf16.msra.mxu0 0
      %1038 = vmatprep.subr.bf16.mxu0 0
      %1039 = vmatpush1.bf16.msra.mxu0 0
      %1040 = vmatprep.subr.bf16.mxu0 0
      %1041 = vmatpush1.bf16.msra.mxu0 0
      %1042 = vmatprep.subr.bf16.mxu0 0
      %1043 = vmatpush1.bf16.msra.mxu0 0
      %1044 = vmatprep.subr.bf16.mxu0 0
      %1045 = vmatpush1.bf16.msra.mxu0 0
      %1046 = vmatprep.subr.bf16.mxu0 0
      %1047 = vmatpush1.bf16.msra.mxu0 0
      %1048 = vmatprep.subr.bf16.mxu0 0
      %1049 = vmatpush1.bf16.msra.mxu0 0
      %1050 = vmatprep.mubr.bf16.mxu0 0
      %1051 = vmatmul.mubr.bf16.gmra.mrb[0].mxu0 %v1006
      %v1052 = vpop.f32.mrb[0].mxu0
      %v1053 = vadd.f32 0.0, %v1052
      %v1054 = vpop.f32.mrb[0].mxu0
      %v1055 = vpop.f32.mrb[0].mxu0
      %v1056 = vadd.f32 0.0, %v1055
      %v1057 = vpop.f32.mrb[0].mxu0
      %1058 = vmatprep.mubr.bf16.mxu0 0
      %1059 = vmatmul.mubr.bf16.gmra.mrb[0].mxu0 %v1007
      %v1060 = vpop.f32.mrb[0].mxu0
      %v1061 = vadd.f32 0.0, %v1060
      %v1062 = vpop.f32.mrb[0].mxu0
      %v1063 = vpop.f32.mrb[0].mxu0
      %v1064 = vadd.f32 0.0, %v1063
      %v1065 = vpop.f32.mrb[0].mxu0
      %1066 = vmatprep.mubr.bf16.mxu0 0
      %1067 = vmatmul.mubr.bf16.gmra.mrb[0].mxu0 %v1008
      %v1068 = vpop.f32.mrb[0].mxu0
      %v1069 = vadd.f32 0.0, %v1068
      %v1070 = vpop.f32.mrb[0].mxu0
      %v1071 = vpop.f32.mrb[0].mxu0
      %v1072 = vadd.f32 0.0, %v1071
      %v1073 = vpop.f32.mrb[0].mxu0
      %1074 = vmatprep.mubr.bf16.mxu0 0
      %1075 = vmatmul.mubr.bf16.gmra.mrb[0].mxu0 %v1009
      %v1076 = vpop.f32.mrb[0].mxu0
      %v1077 = vadd.f32 0.0, %v1076
      %v1078 = vpop.f32.mrb[0].mxu0
      %v1079 = vpop.f32.mrb[0].mxu0
      %v1080 = vadd.f32 0.0, %v1079
      %v1081 = vpop.f32.mrb[0].mxu0
      %1082 = vdwg.mxu0
      %v1083 = vadd.f32 %v998, %v1053
      %v1084 = vadd.f32 %v999, %v1056
      %v1085 = vadd.f32 %v1000, %v1061
      %v1086 = vadd.f32 %v1001, %v1064
      %v1087 = vadd.f32 %v1002, %v1069
      %v1088 = vadd.f32 %v1003, %v1072
      %v1089 = vadd.f32 %v1004, %v1077
      %v1090 = vadd.f32 %v1005, %v1080
      %1091 = vst [vmem:[#allocation3] sm:$0xff] %v1083
      %1092 = vst [vmem:[#allocation3 + $0x8] sm:$0xff] %v1084
      %1093 = vst [vmem:[#allocation3 + $0x10] sm:$0xff] %v1085
      %1094 = vst [vmem:[#allocation3 + $0x18] sm:$0xff] %v1086
      %1095 = vst [vmem:[#allocation3 + $0x20] sm:$0xff] %v1087
      %1096 = vst [vmem:[#allocation3 + $0x28] sm:$0xff] %v1088
      %1097 = vst [vmem:[#allocation3 + $0x30] sm:$0xff] %v1089
      %1098 = vst [vmem:[#allocation3 + $0x38] sm:$0xff] %v1090
      %v1099 = vld [vmem:[#allocation4] sm:$0x1]
      %v1100 = vadd.f32 %v829, %v830
      %v1101 = vadd.f32 %v1100, %v831
      %v1102 = vadd.f32 %v1101, %v832
      %v1103 = vadd.f32 %v1102, %v833
      %v1104 = vadd.f32 %v1103, %v834
      %v1105 = vadd.f32 %v1104, %v835
      %v1106 = vadd.f32 %v1105, %v836
      %v1107 = vadd.f32 %v1106, %v837
      %v1108 = vadd.f32 %v1107, %v838
      %v1109 = vadd.f32 %v1108, %v839
      %v1110 = vadd.f32 %v1109, %v840
      %v1111 = vadd.f32 %v1110, %v841
      %v1112 = vadd.f32 %v1111, %v842
      %v1113 = vadd.f32 %v1112, %v843
      %v1114 = vadd.f32 %v1113, %v844
      %v1115 = vrot.slane %v1114, 4
      %v1116 = vadd.f32 %v1114, %v1115
      %v1117 = vrot.slane %v1116, 2
      %v1118 = vadd.f32 %v1116, %v1117
      %v1119 = vrot.slane %v1118, 1
      %v1120 = vadd.f32 %v1118, %v1119
      %v1121 = vadd.f32 %v1099, %v1120
      %1122 = vst [vmem:[#allocation4] sm:$0x1] %v1121
      // Predicated region
      $region53: #{point_transformer_last.14} parent=47 // pred_check
        %p1123 = pneg %p402
      $region54: #{point_transformer_last.14} parent=47 // pred_check_branch
        %1125 = sbr.rel (%p1123) target = $region56
      $region55: #{point_transformer_last.14} parent=47 // pred_region
        %v1126 = vld [vmem:[#allocation4] sm:$0x1]
        %v1127 = vadd.f32 %v1126, 1e-09
        %v1128 = vrcp.pop %v1127
        %v1129 = vmul.f32 1.0, %v1128
        %v1130 = vld [vmem:[#allocation3] sm:$0xff]
        %v1131 = vld [vmem:[#allocation3 + $0x8] sm:$0xff]
        %v1132 = vld [vmem:[#allocation3 + $0x10] sm:$0xff]
        %v1133 = vld [vmem:[#allocation3 + $0x18] sm:$0xff]
        %v1134 = vld [vmem:[#allocation3 + $0x20] sm:$0xff]
        %v1135 = vld [vmem:[#allocation3 + $0x28] sm:$0xff]
        %v1136 = vld [vmem:[#allocation3 + $0x30] sm:$0xff]
        %v1137 = vld [vmem:[#allocation3 + $0x38] sm:$0xff]
        %v1139 = vlaneseq
        %v1140 = vshrl.u32 %v1139, 7
        %v1141 = vsub.s32 0, %v1140
        %v1142 = vrot.slane %v1129, %v1141
        %v1144 = vmul.f32 %v1130, %v1142
        %v1145 = vmul.f32 %v1131, %v1142
        %v1146 = vmul.f32 %v1132, %v1142
        %v1147 = vmul.f32 %v1133, %v1142
        %v1148 = vmul.f32 %v1134, %v1142
        %v1149 = vmul.f32 %v1135, %v1142
        %v1150 = vmul.f32 %v1136, %v1142
        %v1151 = vmul.f32 %v1137, %v1142
        %v1152 = vld [vmem:[%s377] sm:$0xff]
        %v1153 = vld [vmem:[%s377 + $0x8] sm:$0xff]
        %v1154 = vld [vmem:[%s377 + $0x10] sm:$0xff]
        %v1155 = vld [vmem:[%s377 + $0x18] sm:$0xff]
        %v1156 = vld [vmem:[%s377 + $0x20] sm:$0xff]
        %v1157 = vld [vmem:[%s377 + $0x28] sm:$0xff]
        %v1158 = vld [vmem:[%s377 + $0x30] sm:$0xff]
        %v1159 = vld [vmem:[%s377 + $0x38] sm:$0xff]
        %v1160 = vsub.f32 %v1152, %v1144
        %v1161 = vsub.f32 %v1153, %v1145
        %v1162 = vsub.f32 %v1154, %v1146
        %v1163 = vsub.f32 %v1155, %v1147
        %v1164 = vsub.f32 %v1156, %v1148
        %v1165 = vsub.f32 %v1157, %v1149
        %v1166 = vsub.f32 %v1158, %v1150
        %v1167 = vsub.f32 %v1159, %v1151
        %v1168 = vpack.c.bf16 %v1161, %v1160
        %v1169 = vpack.c.bf16 %v1163, %v1162
        %v1170 = vpack.c.bf16 %v1165, %v1164
        %v1171 = vpack.c.bf16 %v1167, %v1166
        %v1172 = vld [vmem:[%s5] sm:$0xf]
        %v1173 = vld [vmem:[%s5 + $0x4] sm:$0xf]
        %v1174 = vld [vmem:[%s5 + $0x8] sm:$0xf]
        %v1175 = vld [vmem:[%s5 + $0xc] sm:$0xf]
        %v1176 = vld [vmem:[%s5 + $0x10] sm:$0xf]
        %v1177 = vld [vmem:[%s5 + $0x14] sm:$0xf]
        %v1178 = vld [vmem:[%s5 + $0x18] sm:$0xf]
        %v1179 = vld [vmem:[%s5 + $0x1c] sm:$0xf]
        %v1180 = vld [vmem:[%s6] sm:$0xff]
        %v1181 = vld [vmem:[%s6 + $0x8] sm:$0xff]
        %v1182 = vld [vmem:[%s6 + $0x10] sm:$0xff]
        %v1183 = vld [vmem:[%s6 + $0x18] sm:$0xff]
        %v1184 = vld [vmem:[%s6 + $0x20] sm:$0xff]
        %v1185 = vld [vmem:[%s6 + $0x28] sm:$0xff]
        %v1186 = vld [vmem:[%s6 + $0x30] sm:$0xff]
        %v1187 = vld [vmem:[%s6 + $0x38] sm:$0xff]
        %1189 = vset.pattern.permute.xlu0 0
        %1190 = vperm.xlu0 %1189, %v1180
        %v1191 = vpop.permute.xlu0 %1190
        %1194 = vset.pattern.permute.xlu0 0
        %1195 = vperm.xlu0 %1194, %v1181
        %v1196 = vpop.permute.xlu0 %1195
        %1199 = vset.pattern.permute.xlu0 0
        %1200 = vperm.xlu0 %1199, %v1182
        %v1201 = vpop.permute.xlu0 %1200
        %1204 = vset.pattern.permute.xlu0 0
        %1205 = vperm.xlu0 %1204, %v1183
        %v1206 = vpop.permute.xlu0 %1205
        %1209 = vset.pattern.permute.xlu0 0
        %1210 = vperm.xlu0 %1209, %v1184
        %v1211 = vpop.permute.xlu0 %1210
        %1214 = vset.pattern.permute.xlu0 0
        %1215 = vperm.xlu0 %1214, %v1185
        %v1216 = vpop.permute.xlu0 %1215
        %1219 = vset.pattern.permute.xlu0 0
        %1220 = vperm.xlu0 %1219, %v1186
        %v1221 = vpop.permute.xlu0 %1220
        %1224 = vset.pattern.permute.xlu0 0
        %1225 = vperm.xlu0 %1224, %v1187
        %v1226 = vpop.permute.xlu0 %1225
        %v1236 = vunpack.c.l.b16 %v1172
        %v1237 = vunpack.c.l.b16 %v1173
        %v1238 = vunpack.c.l.b16 %v1174
        %v1239 = vunpack.c.l.b16 %v1175
        %v1240 = vunpack.c.l.b16 %v1176
        %v1241 = vunpack.c.l.b16 %v1177
        %v1242 = vunpack.c.l.b16 %v1178
        %v1243 = vunpack.c.l.b16 %v1179
        %v1244 = vpack.c.b16 %v1237, %v1236
        %v1245 = vpack.c.b16 %v1239, %v1238
        %v1246 = vpack.c.b16 %v1241, %v1240
        %v1247 = vpack.c.b16 %v1243, %v1242
        %v1249 = vsel %vm500, %v1244, 0
        %v1252 = vsel %vm500, %v1245, 0
        %v1255 = vsel %vm500, %v1246, 0
        %v1258 = vsel %vm500, %v1247, 0
        %1260 = vmatprep.subr.bf16.mxu0 0
        %1261 = vmatpush1.bf16.msra.mxu0 %v1168
        %1262 = vmatprep.subr.bf16.mxu0 0
        %1263 = vmatpush1.bf16.msra.mxu0 %v1169
        %1264 = vmatprep.subr.bf16.mxu0 0
        %1265 = vmatpush1.bf16.msra.mxu0 %v1170
        %1266 = vmatprep.subr.bf16.mxu0 0
        %1267 = vmatpush1.bf16.msra.mxu0 %v1171
        %1268 = vmatprep.subr.bf16.mxu0 0
        %1269 = vmatpush1.bf16.msra.mxu0 0
        %1270 = vmatprep.subr.bf16.mxu0 0
        %1271 = vmatpush1.bf16.msra.mxu0 0
        %1272 = vmatprep.subr.bf16.mxu0 0
        %1273 = vmatpush1.bf16.msra.mxu0 0
        %1274 = vmatprep.subr.bf16.mxu0 0
        %1275 = vmatpush1.bf16.msra.mxu0 0
        %1276 = vmatprep.subr.bf16.mxu0 0
        %1277 = vmatpush1.bf16.msra.mxu0 0
        %1278 = vmatprep.subr.bf16.mxu0 0
        %1279 = vmatpush1.bf16.msra.mxu0 0
        %1280 = vmatprep.subr.bf16.mxu0 0
        %1281 = vmatpush1.bf16.msra.mxu0 0
        %1282 = vmatprep.subr.bf16.mxu0 0
        %1283 = vmatpush1.bf16.msra.mxu0 0
        %1284 = vmatprep.subr.bf16.mxu0 0
        %1285 = vmatpush1.bf16.msra.mxu0 0
        %1286 = vmatprep.subr.bf16.mxu0 0
        %1287 = vmatpush1.bf16.msra.mxu0 0
        %1288 = vmatprep.subr.bf16.mxu0 0
        %1289 = vmatpush1.bf16.msra.mxu0 0
        %1290 = vmatprep.subr.bf16.mxu0 0
        %1291 = vmatpush1.bf16.msra.mxu0 0
        %1292 = vmatprep.mubr.bf16.mxu0 0
        %1293 = vmatmul.mubr.bf16.gmra.mrb[0].mxu0 %v1249
        %v1294 = vpop.f32.mrb[0].mxu0
        %v1295 = vadd.f32 %v1191, %v1294
        %v1296 = vpop.f32.mrb[0].mxu0
        %v1297 = vpop.f32.mrb[0].mxu0
        %v1298 = vadd.f32 %v1196, %v1297
        %v1299 = vpop.f32.mrb[0].mxu0
        %1300 = vmatprep.mubr.bf16.mxu0 0
        %1301 = vmatmul.mubr.bf16.gmra.mrb[0].mxu0 %v1252
        %v1302 = vpop.f32.mrb[0].mxu0
        %v1303 = vadd.f32 %v1201, %v1302
        %v1304 = vpop.f32.mrb[0].mxu0
        %v1305 = vpop.f32.mrb[0].mxu0
        %v1306 = vadd.f32 %v1206, %v1305
        %v1307 = vpop.f32.mrb[0].mxu0
        %1308 = vmatprep.mubr.bf16.mxu0 0
        %1309 = vmatmul.mubr.bf16.gmra.mrb[0].mxu0 %v1255
        %v1310 = vpop.f32.mrb[0].mxu0
        %v1311 = vadd.f32 %v1211, %v1310
        %v1312 = vpop.f32.mrb[0].mxu0
        %v1313 = vpop.f32.mrb[0].mxu0
        %v1314 = vadd.f32 %v1216, %v1313
        %v1315 = vpop.f32.mrb[0].mxu0
        %1316 = vmatprep.mubr.bf16.mxu0 0
        %1317 = vmatmul.mubr.bf16.gmra.mrb[0].mxu0 %v1258
        %v1318 = vpop.f32.mrb[0].mxu0
        %v1319 = vadd.f32 %v1221, %v1318
        %v1320 = vpop.f32.mrb[0].mxu0
        %v1321 = vpop.f32.mrb[0].mxu0
        %v1322 = vadd.f32 %v1226, %v1321
        %v1323 = vpop.f32.mrb[0].mxu0
        %1324 = vdwg.mxu0
        %v1325 = vpack.c.bf16 %v1298, %v1295
        %v1326 = vpack.c.bf16 %v1306, %v1303
        %v1327 = vpack.c.bf16 %v1314, %v1311
        %v1328 = vpack.c.bf16 %v1322, %v1319
        %v1333 = vunpack.c.l.b16 %v1325
        %v1334 = vunpack.c.h.b16 %v1325
        %v1335 = vunpack.c.l.b16 %v1326
        %v1336 = vunpack.c.h.b16 %v1326
        %v1337 = vunpack.c.l.b16 %v1327
        %v1338 = vunpack.c.h.b16 %v1327
        %v1339 = vunpack.c.l.b16 %v1328
        %v1340 = vunpack.c.h.b16 %v1328
        %v1341 = vpack.c.b16 %v1333, %v1333
        %v1342 = vpack.c.b16 %v1334, %v1334
        %v1343 = vpack.c.b16 %v1335, %v1335
        %v1344 = vpack.c.b16 %v1336, %v1336
        %v1345 = vpack.c.b16 %v1337, %v1337
        %v1346 = vpack.c.b16 %v1338, %v1338
        %v1347 = vpack.c.b16 %v1339, %v1339
        %v1348 = vpack.c.b16 %v1340, %v1340
        %1357 = vst [vmem:[%s390] sm:$0xf] %v1341
        %1358 = vst [vmem:[%s390 + $0x4] sm:$0xf] %v1342
        %1359 = vst [vmem:[%s390 + $0x8] sm:$0xf] %v1343
        %1360 = vst [vmem:[%s390 + $0xc] sm:$0xf] %v1344
        %1361 = vst [vmem:[%s390 + $0x10] sm:$0xf] %v1345
        %1362 = vst [vmem:[%s390 + $0x14] sm:$0xf] %v1346
        %1363 = vst [vmem:[%s390 + $0x18] sm:$0xf] %v1347
        %1364 = vst [vmem:[%s390 + $0x1c] sm:$0xf] %v1348
        %1365 = vadd.xlane.f32.xlu0 %v1295
        %v1366 = vpop.xlane.xlu0 %1365
        %1367 = vadd.xlane.f32.xlu0 %v1298
        %v1368 = vpop.xlane.xlu0 %1367
        %1369 = vadd.xlane.f32.xlu0 %v1303
        %v1370 = vpop.xlane.xlu0 %1369
        %1371 = vadd.xlane.f32.xlu0 %v1306
        %v1372 = vpop.xlane.xlu0 %1371
        %1373 = vadd.xlane.f32.xlu0 %v1311
        %v1374 = vpop.xlane.xlu0 %1373
        %1375 = vadd.xlane.f32.xlu0 %v1314
        %v1376 = vpop.xlane.xlu0 %1375
        %1377 = vadd.xlane.f32.xlu0 %v1319
        %v1378 = vpop.xlane.xlu0 %1377
        %1379 = vadd.xlane.f32.xlu0 %v1322
        %v1380 = vpop.xlane.xlu0 %1379
        %v1381 = vmul.f32 %v1366, 0.0078125
        %v1382 = vmul.f32 %v1368, 0.0078125
        %v1383 = vmul.f32 %v1370, 0.0078125
        %v1384 = vmul.f32 %v1372, 0.0078125
        %v1385 = vmul.f32 %v1374, 0.0078125
        %v1386 = vmul.f32 %v1376, 0.0078125
        %v1387 = vmul.f32 %v1378, 0.0078125
        %v1388 = vmul.f32 %v1380, 0.0078125
        %v1389 = vsub.f32 %v1295, %v1381
        %v1390 = vsub.f32 %v1298, %v1382
        %v1391 = vsub.f32 %v1303, %v1383
        %v1392 = vsub.f32 %v1306, %v1384
        %v1393 = vsub.f32 %v1311, %v1385
        %v1394 = vsub.f32 %v1314, %v1386
        %v1395 = vsub.f32 %v1319, %v1387
        %v1396 = vsub.f32 %v1322, %v1388
        %vm1397 = vcmask 7168
        %1398 = vst.msk [vmem:[%s395] sm:$0xff] %vm1397, %v1381
        %1399 = vst.msk [vmem:[%s395 + $0x8] sm:$0xff] %vm1397, %v1382
        %1400 = vst.msk [vmem:[%s395 + $0x10] sm:$0xff] %vm1397, %v1383
        %1401 = vst.msk [vmem:[%s395 + $0x18] sm:$0xff] %vm1397, %v1384
        %1402 = vst.msk [vmem:[%s395 + $0x20] sm:$0xff] %vm1397, %v1385
        %1403 = vst.msk [vmem:[%s395 + $0x28] sm:$0xff] %vm1397, %v1386
        %1404 = vst.msk [vmem:[%s395 + $0x30] sm:$0xff] %vm1397, %v1387
        %1405 = vst.msk [vmem:[%s395 + $0x38] sm:$0xff] %vm1397, %v1388
        %v1406 = vmul.f32 %v1389, %v1389
        %v1407 = vmul.f32 %v1390, %v1390
        %v1408 = vmul.f32 %v1391, %v1391
        %v1409 = vmul.f32 %v1392, %v1392
        %v1410 = vmul.f32 %v1393, %v1393
        %v1411 = vmul.f32 %v1394, %v1394
        %v1412 = vmul.f32 %v1395, %v1395
        %v1413 = vmul.f32 %v1396, %v1396
        %1414 = vadd.xlane.f32.xlu0 %v1406
        %v1415 = vpop.xlane.xlu0 %1414
        %1416 = vadd.xlane.f32.xlu0 %v1407
        %v1417 = vpop.xlane.xlu0 %1416
        %1418 = vadd.xlane.f32.xlu0 %v1408
        %v1419 = vpop.xlane.xlu0 %1418
        %1420 = vadd.xlane.f32.xlu0 %v1409
        %v1421 = vpop.xlane.xlu0 %1420
        %1422 = vadd.xlane.f32.xlu0 %v1410
        %v1423 = vpop.xlane.xlu0 %1422
        %1424 = vadd.xlane.f32.xlu0 %v1411
        %v1425 = vpop.xlane.xlu0 %1424
        %1426 = vadd.xlane.f32.xlu0 %v1412
        %v1427 = vpop.xlane.xlu0 %1426
        %1428 = vadd.xlane.f32.xlu0 %v1413
        %v1429 = vpop.xlane.xlu0 %1428
        %1430 = vst.msk [vmem:[%s400] sm:$0xff] %vm1397, %v1415
        %1431 = vst.msk [vmem:[%s400 + $0x8] sm:$0xff] %vm1397, %v1417
        %1432 = vst.msk [vmem:[%s400 + $0x10] sm:$0xff] %vm1397, %v1419
        %1433 = vst.msk [vmem:[%s400 + $0x18] sm:$0xff] %vm1397, %v1421
        %1434 = vst.msk [vmem:[%s400 + $0x20] sm:$0xff] %vm1397, %v1423
        %1435 = vst.msk [vmem:[%s400 + $0x28] sm:$0xff] %vm1397, %v1425
        %1436 = vst.msk [vmem:[%s400 + $0x30] sm:$0xff] %vm1397, %v1427
        %1437 = vst.msk [vmem:[%s400 + $0x38] sm:$0xff] %vm1397, %v1429
      $region56: #{point_transformer_last.14} parent=47 // pred_fallthru
        _
      %p1438 = scmp.lt.s32.totalorder %s25, 1
      %s1439 = scalar_select %p1438, %s25, 1
      %s1440 = smul.addr %s1439, 8
      %s1441 = smul.addr %s1440, 4
      %s1442 = scalar_lea.vmem %s7, %s1441
      %p1443 = scmp.lt.s32.totalorder %s25, 1
      %s1444 = scalar_select %p1443, %s25, 1
      %s1445 = smul.addr %s1444, 8
      %s1446 = smul.addr %s1445, 8
      %s1447 = scalar_lea.vmem %s8, %s1446
      %p1448 = scmp.lt.s32.totalorder %s25, 1
      %s1449 = scalar_select %p1448, %s25, 1
      %s1450 = smul.addr %s1449, 8
      %s1451 = smul.addr %s1450, 8
      %s1452 = scalar_lea.vmem %s9, %s1451
      // Predicated region
      $region57: #{point_transformer_last.14} parent=47 // pred_check
        %p1453 = pneg %p210
      $region58: #{point_transformer_last.14} parent=47 // pred_check_branch
        %1455 = sbr.rel (%p1453) target = $region60
      $region59: #{point_transformer_last.14} parent=47 // pred_region
        _
      $region60: #{point_transformer_last.14} parent=47 // pred_fallthru
        _
      // Predicated region
      $region61: #{point_transformer_last.14} parent=47 // pred_check
        %p1456 = pneg %p236
      $region62: #{point_transformer_last.14} parent=47 // pred_check_branch
        %1458 = sbr.rel (%p1456) target = $region64
      $region63: #{point_transformer_last.14} parent=47 // pred_region
        _
      $region64: #{point_transformer_last.14} parent=47 // pred_fallthru
        _
      // Predicated region
      $region65: #{point_transformer_last.14} parent=47 // pred_check
        %p1459 = pneg %p262
      $region66: #{point_transformer_last.14} parent=47 // pred_check_branch
        %1461 = sbr.rel (%p1459) target = $region68
      $region67: #{point_transformer_last.14} parent=47 // pred_region
        _
      $region68: #{point_transformer_last.14} parent=47 // pred_fallthru
        _
    $region48: #{point_transformer_last.14} parent=5 // pred_fallthru
      _
    %p1462 = scmp.le.s32.totalorder 2, %s16
    // Predicated region
    $region69: #{point_transformer_last.14} parent=5 // pred_check
      %p1463 = pneg %p1462
    $region70: #{point_transformer_last.14} parent=5 // pred_check_branch
      %1465 = sbr.rel (%p1463) target = $region72
    $region71: #{point_transformer_last.14} parent=5 // pred_region
      %s1466 = ssub.s32 %s16, 2
      // Predicated region
      $region73: #{point_transformer_last.14} parent=71 // pred_check
        %p1467 = pneg %p216
      $region74: #{point_transformer_last.14} parent=71 // pred_check_branch
        %1469 = sbr.rel (%p1467) target = $region76
      $region75: #{point_transformer_last.14} parent=71 // pred_region
        %p1470 = scmp.lt.s32.totalorder %s27, 1
        %s1471 = scalar_select %p1470, %s27, 1
        %s1472 = smul.addr %s1471, 8
        %s1473 = smul.addr %s1472, 4
        %s1474 = scalar_lea.vmem %s7, %s1473
      $region76: #{point_transformer_last.14} parent=71 // pred_fallthru
        _
      // Predicated region
      $region77: #{point_transformer_last.14} parent=71 // pred_check
        %p1475 = pneg %p242
      $region78: #{point_transformer_last.14} parent=71 // pred_check_branch
        %1477 = sbr.rel (%p1475) target = $region80
      $region79: #{point_transformer_last.14} parent=71 // pred_region
        %p1478 = scmp.lt.s32.totalorder %s27, 1
        %s1479 = scalar_select %p1478, %s27, 1
        %s1480 = smul.addr %s1479, 8
        %s1481 = smul.addr %s1480, 8
        %s1482 = scalar_lea.vmem %s8, %s1481
      $region80: #{point_transformer_last.14} parent=71 // pred_fallthru
        _
      // Predicated region
      $region81: #{point_transformer_last.14} parent=71 // pred_check
        %p1483 = pneg %p268
      $region82: #{point_transformer_last.14} parent=71 // pred_check_branch
        %1485 = sbr.rel (%p1483) target = $region84
      $region83: #{point_transformer_last.14} parent=71 // pred_region
        %p1486 = scmp.lt.s32.totalorder %s27, 1
        %s1487 = scalar_select %p1486, %s27, 1
        %s1488 = smul.addr %s1487, 8
        %s1489 = smul.addr %s1488, 8
        %s1490 = scalar_lea.vmem %s9, %s1489
      $region84: #{point_transformer_last.14} parent=71 // pred_fallthru
        _
    $region72: #{point_transformer_last.14} parent=5 // pred_fallthru
      _
  $region6: #{point_transformer_last.14} parent=0 // loop_footer
    %s20 = sadd.s32 1, %s16
  $region7: #{point_transformer_last.14} parent=0 // loop_footer_branch
    %15 = sbr.rel target = $region3
  $region8: #{point_transformer_last.14} parent=0 // loop_exit
    _

// kernel: point_transformer_last.15
$region0: #{point_transformer_last.15}
  #allocation0 [shape = 'u32[]', space=smem, size = 0x4, offset = 0x4, fixed_abs, tag = 'smem constant byte address 0x4 - core index']
  #allocation1 [shape = 'u32[144,128]{1,0:T(1,128)}', space=vmem, size = 0x12000, scoped, tag = 'internal scratch']
  %s0 = inlined_call_operand.vmem [shape: bf16[2,64,128], index: 0, kind: input, shape index: {}]
  %s1 = inlined_call_operand.vmem [shape: f32[2,64,128], index: 1, kind: input, shape index: {}]
  %s2 = inlined_call_operand.vmem [shape: f32[64,1], index: 2, kind: input, shape index: {}]
  %s3 = inlined_call_operand.vmem [shape: f32[64,1], index: 3, kind: input, shape index: {}]
  %s4 = inlined_call_operand.vmem [shape: f32[2,64,128], index: 4, kind: output, shape index: {}]
  %s5 = sld [smem:[#allocation0]]
  $region49: #{point_transformer_last.15} parent=0
    _
  %s7 = ssub.s32 1, %s5
  %s8 = scalar_select 0, %s7, %s5
  loop: start=0, step=1, limit=4
  $region2: #{point_transformer_last.15} parent=0 // loop_pre_header
    _
  $region3: #{point_transformer_last.15} parent=0 // loop_header
    %s10 = sphi 0, %s14
    %p11 = scmp.ge.s32.totalorder %s10, 4
    %s17 = sphi 0, %s29
    %s18 = sphi 0, %s25
    %s19 = sphi 0, %s17
    %s20 = sphi 0, %s18
    %s21 = sphi 0, %s19
    %s22 = sphi 0, %s20
    %s34 = sphi 0, %s36
    %s37 = sphi 0, %s34
    %s38 = sphi 0, %s37
    %s54 = sphi 0, %s38
    %s62 = sphi 0, %s64
    %s65 = sphi 0, %s62
    %s66 = sphi 0, %s65
    %s82 = sphi 0, %s66
    %s86 = sphi 0, %s86
    %s88 = sphi 0, %s86
    %s89 = sphi 0, %s88
    %s103 = sphi 0, %s89
    %s107 = sphi 0, %s107
    %s109 = sphi 0, %s107
    %s110 = sphi 0, %s109
    %s124 = sphi 0, %s110
    %s132 = sphi 0, %s134
    %s135 = sphi 0, %s132
    %s136 = sphi 0, %s135
    %s152 = sphi 0, %s136
  $region4: #{point_transformer_last.15} parent=0 // loop_header_branch
    %13 = sbr.rel (%p11) target = $region8
  $region5: #{point_transformer_last.15} parent=0 // loop_body
    %s15 = ssub.s32 %s10, 1
    %s16 = ssub.s32 %s10, 2
    %s23 = sadd.s32 1, %s18
    %p24 = scmp.ge.s32.totalorder %s23, 1
    %s25 = scalar_select %p24, 0, %s23
    %s26 = sadd.s32 1, %s17
    %s27 = scalar_select %p24, %s26, %s17
    %p28 = scmp.ge.s32.totalorder %s27, 2
    %s29 = scalar_select %p28, 0, %s27
    %s30 = ssub.s32 %s17, %s29
    %s31 = ssub.s32 %s18, %s25
    %s32 = sor.u32 %s30, %s31
    %p33 = scmp.eq.s32.totalorder %s32, 0
    %s35 = sadd.s32 %s34, 1
    %s36 = scalar_select %p33, %s34, %s35
    %p39 = pneg %p33
    %p40 = scmp.eq.s32.totalorder %s10, 1
    %p41 = por %p39, %p40
    %p42 = scmp.ne.s32.totalorder %s34, %s37
    %p43 = scmp.eq.s32.totalorder %s10, 0
    %p44 = por %p42, %p43
    %p45 = scmp.ne.s32.totalorder %s34, %s37
    %p46 = scmp.eq.s32.totalorder %s15, 1
    %p47 = por %p45, %p46
    %p48 = scmp.ne.s32.totalorder %s37, %s38
    %p49 = scmp.eq.s32.totalorder %s15, 0
    %p50 = por %p48, %p49
    %p51 = scmp.ne.s32.totalorder %s37, %s38
    %p52 = scmp.eq.s32.totalorder %s16, 1
    %p53 = por %p51, %p52
    %p55 = scmp.ne.s32.totalorder %s38, %s54
    %p56 = scmp.eq.s32.totalorder %s16, 0
    %p57 = por %p55, %p56
    %s58 = ssub.s32 %s17, %s29
    %s59 = ssub.s32 %s18, %s25
    %s60 = sor.u32 %s58, %s59
    %p61 = scmp.eq.s32.totalorder %s60, 0
    %s63 = sadd.s32 %s62, 1
    %s64 = scalar_select %p61, %s62, %s63
    %p67 = pneg %p61
    %p68 = scmp.eq.s32.totalorder %s10, 1
    %p69 = por %p67, %p68
    %p70 = scmp.ne.s32.totalorder %s62, %s65
    %p71 = scmp.eq.s32.totalorder %s10, 0
    %p72 = por %p70, %p71
    %p73 = scmp.ne.s32.totalorder %s62, %s65
    %p74 = scmp.eq.s32.totalorder %s15, 1
    %p75 = por %p73, %p74
    %p76 = scmp.ne.s32.totalorder %s65, %s66
    %p77 = scmp.eq.s32.totalorder %s15, 0
    %p78 = por %p76, %p77
    %p79 = scmp.ne.s32.totalorder %s65, %s66
    %p80 = scmp.eq.s32.totalorder %s16, 1
    %p81 = por %p79, %p80
    %p83 = scmp.ne.s32.totalorder %s66, %s82
    %p84 = scmp.eq.s32.totalorder %s16, 0
    %p85 = por %p83, %p84
    %s87 = sadd.s32 %s86, 1
    %p90 = scmp.eq.s32.totalorder %s10, 1
    %p91 = scmp.ne.s32.totalorder %s86, %s88
    %p92 = scmp.eq.s32.totalorder %s10, 0
    %p93 = por %p91, %p92
    %p94 = scmp.ne.s32.totalorder %s86, %s88
    %p95 = scmp.eq.s32.totalorder %s15, 1
    %p96 = por %p94, %p95
    %p97 = scmp.ne.s32.totalorder %s88, %s89
    %p98 = scmp.eq.s32.totalorder %s15, 0
    %p99 = por %p97, %p98
    %p100 = scmp.ne.s32.totalorder %s88, %s89
    %p101 = scmp.eq.s32.totalorder %s16, 1
    %p102 = por %p100, %p101
    %p104 = scmp.ne.s32.totalorder %s89, %s103
    %p105 = scmp.eq.s32.totalorder %s16, 0
    %p106 = por %p104, %p105
    %s108 = sadd.s32 %s107, 1
    %p111 = scmp.eq.s32.totalorder %s10, 1
    %p112 = scmp.ne.s32.totalorder %s107, %s109
    %p113 = scmp.eq.s32.totalorder %s10, 0
    %p114 = por %p112, %p113
    %p115 = scmp.ne.s32.totalorder %s107, %s109
    %p116 = scmp.eq.s32.totalorder %s15, 1
    %p117 = por %p115, %p116
    %p118 = scmp.ne.s32.totalorder %s109, %s110
    %p119 = scmp.eq.s32.totalorder %s15, 0
    %p120 = por %p118, %p119
    %p121 = scmp.ne.s32.totalorder %s109, %s110
    %p122 = scmp.eq.s32.totalorder %s16, 1
    %p123 = por %p121, %p122
    %p125 = scmp.ne.s32.totalorder %s110, %s124
    %p126 = scmp.eq.s32.totalorder %s16, 0
    %p127 = por %p125, %p126
    %s128 = ssub.s32 %s17, %s29
    %s129 = ssub.s32 %s18, %s25
    %s130 = sor.u32 %s128, %s129
    %p131 = scmp.eq.s32.totalorder %s130, 0
    %s133 = sadd.s32 %s132, 1
    %s134 = scalar_select %p131, %s132, %s133
    %p137 = pneg %p131
    %p138 = scmp.eq.s32.totalorder %s10, 1
    %p139 = por %p137, %p138
    %p140 = scmp.ne.s32.totalorder %s132, %s135
    %p141 = scmp.eq.s32.totalorder %s10, 0
    %p142 = por %p140, %p141
    %p143 = scmp.ne.s32.totalorder %s132, %s135
    %p144 = scmp.eq.s32.totalorder %s15, 1
    %p145 = por %p143, %p144
    %p146 = scmp.ne.s32.totalorder %s135, %s136
    %p147 = scmp.eq.s32.totalorder %s15, 0
    %p148 = por %p146, %p147
    %p149 = scmp.ne.s32.totalorder %s135, %s136
    %p150 = scmp.eq.s32.totalorder %s16, 1
    %p151 = por %p149, %p150
    %p153 = scmp.ne.s32.totalorder %s136, %s152
    %p154 = scmp.eq.s32.totalorder %s16, 0
    %p155 = por %p153, %p154
    %p156 = scmp.le.s32.totalorder 1, %s10
    %p157 = scmp.lt.s32.totalorder %s10, 3
    %p158 = pnand %p156, %p157
    %p159 = pneg %p158
    // Predicated region
    $region9: #{point_transformer_last.15} parent=5 // pred_check
      _
    $region10: #{point_transformer_last.15} parent=5 // pred_check_branch
      %161 = sbr.rel (%p158) target = $region12
    $region11: #{point_transformer_last.15} parent=5 // pred_region
      %s162 = ssub.s32 %s10, 1
      // Predicated region
      $region13: #{point_transformer_last.15} parent=11 // pred_check
        %p163 = pneg %p99
      $region14: #{point_transformer_last.15} parent=11 // pred_check_branch
        %165 = sbr.rel (%p163) target = $region16
      $region15: #{point_transformer_last.15} parent=11 // pred_region
        _
      $region16: #{point_transformer_last.15} parent=11 // pred_fallthru
        _
      // Predicated region
      $region17: #{point_transformer_last.15} parent=11 // pred_check
        %p166 = pneg %p120
      $region18: #{point_transformer_last.15} parent=11 // pred_check_branch
        %168 = sbr.rel (%p166) target = $region20
      $region19: #{point_transformer_last.15} parent=11 // pred_region
        _
      $region20: #{point_transformer_last.15} parent=11 // pred_fallthru
        _
    $region12: #{point_transformer_last.15} parent=5 // pred_fallthru
      _
    %p169 = scmp.lt.s32.totalorder %s10, 2
    // Predicated region
    $region21: #{point_transformer_last.15} parent=5 // pred_check
      %p170 = pneg %p169
    $region22: #{point_transformer_last.15} parent=5 // pred_check_branch
      %172 = sbr.rel (%p170) target = $region24
    $region23: #{point_transformer_last.15} parent=5 // pred_region
      // Predicated region
      $region25: #{point_transformer_last.15} parent=23 // pred_check
        %p173 = pneg %p44
      $region26: #{point_transformer_last.15} parent=23 // pred_check_branch
        %175 = sbr.rel (%p173) target = $region28
      $region27: #{point_transformer_last.15} parent=23 // pred_region
        %p176 = scmp.lt.s32.totalorder %s17, 1
        %s177 = scalar_select %p176, %s17, 1
        %p178 = scmp.lt.s32.totalorder %s18, 0
        %s179 = scalar_select %p178, %s18, 0
        %s180 = smul.addr %s177, 8
        %s181 = sadd.s32 %s179, %s180
        %s182 = smul.addr %s181, 4
        %s183 = scalar_lea.vmem %s0, %s182
      $region28: #{point_transformer_last.15} parent=23 // pred_fallthru
        _
      // Predicated region
      $region29: #{point_transformer_last.15} parent=23 // pred_check
        %p184 = pneg %p72
      $region30: #{point_transformer_last.15} parent=23 // pred_check_branch
        %186 = sbr.rel (%p184) target = $region32
      $region31: #{point_transformer_last.15} parent=23 // pred_region
        %p187 = scmp.lt.s32.totalorder %s17, 1
        %s188 = scalar_select %p187, %s17, 1
        %p189 = scmp.lt.s32.totalorder %s18, 0
        %s190 = scalar_select %p189, %s18, 0
        %s191 = smul.addr %s188, 8
        %s192 = sadd.s32 %s190, %s191
        %s193 = smul.addr %s192, 8
        %s194 = scalar_lea.vmem %s1, %s193
      $region32: #{point_transformer_last.15} parent=23 // pred_fallthru
        _
    $region24: #{point_transformer_last.15} parent=5 // pred_fallthru
      _
    %p195 = scmp.le.s32.totalorder 1, %s10
    %p196 = scmp.lt.s32.totalorder %s10, 3
    %p197 = pnand %p195, %p196
    %p198 = pneg %p197
    // Predicated region
    $region33: #{point_transformer_last.15} parent=5 // pred_check
      _
    $region34: #{point_transformer_last.15} parent=5 // pred_check_branch
      %200 = sbr.rel (%p197) target = $region36
    $region35: #{point_transformer_last.15} parent=5 // pred_region
      %s201 = ssub.s32 %s10, 1
      %p202 = scmp.lt.s32.totalorder %s19, 1
      %s203 = scalar_select %p202, %s19, 1
      %p204 = scmp.lt.s32.totalorder %s20, 0
      %s205 = scalar_select %p204, %s20, 0
      %s206 = smul.addr %s203, 8
      %s207 = sadd.s32 %s205, %s206
      %s208 = smul.addr %s207, 4
      %s209 = scalar_lea.vmem %s0, %s208
      %p210 = pneg %p50
      %p211 = pneg %p47
      %p212 = scmp.lt.s32.totalorder %s19, 1
      %s213 = scalar_select %p212, %s19, 1
      %p214 = scmp.lt.s32.totalorder %s20, 0
      %s215 = scalar_select %p214, %s20, 0
      %s216 = smul.addr %s213, 8
      %s217 = sadd.s32 %s215, %s216
      %s218 = smul.addr %s217, 8
      %s219 = scalar_lea.vmem %s1, %s218
      %p220 = pneg %p78
      %p221 = pneg %p75
      %p222 = pneg %p99
      %p223 = pneg %p96
      %p224 = pneg %p120
      %p225 = pneg %p117
      %p226 = pneg %p148
      %p227 = pneg %p145
      %p228 = scmp.lt.s32.totalorder %s19, 1
      %s229 = scalar_select %p228, %s19, 1
      %p230 = scmp.lt.s32.totalorder %s20, 0
      %s231 = scalar_select %p230, %s20, 0
      %s232 = smul.addr %s229, 8
      %s233 = sadd.s32 %s231, %s232
      %s234 = smul.addr %s233, 8
      %s235 = scalar_lea.vmem %s4, %s234
      %p236 = scmp.lt.s32.totalorder %s19, 1
      %s237 = scalar_select %p236, %s19, 1
      %p238 = scmp.lt.s32.totalorder %s20, 0
      %s239 = scalar_select %p238, %s20, 0
      %s240 = smul.addr %s237, 8
      %s241 = sadd.s32 %s239, %s240
      %s242 = smul.addr %s241, 4
      %s243 = scalar_lea.vmem %s0, %s242
      %p244 = scmp.lt.s32.totalorder %s19, 1
      %s245 = scalar_select %p244, %s19, 1
      %p246 = scmp.lt.s32.totalorder %s20, 0
      %s247 = scalar_select %p246, %s20, 0
      %s248 = smul.addr %s245, 8
      %s249 = sadd.s32 %s247, %s248
      %s250 = smul.addr %s249, 8
      %s251 = scalar_lea.vmem %s1, %s250
      %p252 = scmp.lt.s32.totalorder %s19, 1
      %s253 = scalar_select %p252, %s19, 1
      %p254 = scmp.lt.s32.totalorder %s20, 0
      %s255 = scalar_select %p254, %s20, 0
      %s256 = smul.addr %s253, 8
      %s257 = sadd.s32 %s255, %s256
      %s258 = smul.addr %s257, 8
      %s259 = scalar_lea.vmem %s4, %s258
      %v260 = vld [vmem:[%s243] sm:$0xf]
      %v261 = vld [vmem:[%s243 + $0x4] sm:$0xf]
      %v262 = vld [vmem:[%s243 + $0x8] sm:$0xf]
      %v263 = vld [vmem:[%s243 + $0xc] sm:$0xf]
      %v264 = vld [vmem:[%s243 + $0x10] sm:$0xf]
      %v265 = vld [vmem:[%s243 + $0x14] sm:$0xf]
      %v266 = vld [vmem:[%s243 + $0x18] sm:$0xf]
      %v267 = vld [vmem:[%s243 + $0x1c] sm:$0xf]
      %v268 = vunpack.c.l.bf16 %v260
      %v269 = vunpack.c.l.bf16 %v261
      %v270 = vunpack.c.l.bf16 %v262
      %v271 = vunpack.c.l.bf16 %v263
      %v272 = vunpack.c.l.bf16 %v264
      %v273 = vunpack.c.l.bf16 %v265
      %v274 = vunpack.c.l.bf16 %v266
      %v275 = vunpack.c.l.bf16 %v267
      %v276 = vld [vmem:[%s251] sm:$0xff]
      %v277 = vld [vmem:[%s251 + $0x8] sm:$0xff]
      %v278 = vld [vmem:[%s251 + $0x10] sm:$0xff]
      %v279 = vld [vmem:[%s251 + $0x18] sm:$0xff]
      %v280 = vld [vmem:[%s251 + $0x20] sm:$0xff]
      %v281 = vld [vmem:[%s251 + $0x28] sm:$0xff]
      %v282 = vld [vmem:[%s251 + $0x30] sm:$0xff]
      %v283 = vld [vmem:[%s251 + $0x38] sm:$0xff]
      %v284 = vld [vmem:[%s2] sm:$0xff]
      %v285 = vld [vmem:[%s2 + $0x8] sm:$0xff]
      %v286 = vld [vmem:[%s2 + $0x10] sm:$0xff]
      %v287 = vld [vmem:[%s2 + $0x18] sm:$0xff]
      %v288 = vld [vmem:[%s2 + $0x20] sm:$0xff]
      %v289 = vld [vmem:[%s2 + $0x28] sm:$0xff]
      %v290 = vld [vmem:[%s2 + $0x30] sm:$0xff]
      %v291 = vld [vmem:[%s2 + $0x38] sm:$0xff]
      %293 = vset.pattern.permute.xlu0 0
      %294 = vperm.xlu0 %293, %v284
      %v295 = vpop.permute.xlu0 %294
      %298 = vset.pattern.permute.xlu0 0
      %299 = vperm.xlu0 %298, %v285
      %v300 = vpop.permute.xlu0 %299
      %303 = vset.pattern.permute.xlu0 0
      %304 = vperm.xlu0 %303, %v286
      %v305 = vpop.permute.xlu0 %304
      %308 = vset.pattern.permute.xlu0 0
      %309 = vperm.xlu0 %308, %v287
      %v310 = vpop.permute.xlu0 %309
      %313 = vset.pattern.permute.xlu0 0
      %314 = vperm.xlu0 %313, %v288
      %v315 = vpop.permute.xlu0 %314
      %318 = vset.pattern.permute.xlu0 0
      %319 = vperm.xlu0 %318, %v289
      %v320 = vpop.permute.xlu0 %319
      %323 = vset.pattern.permute.xlu0 0
      %324 = vperm.xlu0 %323, %v290
      %v325 = vpop.permute.xlu0 %324
      %328 = vset.pattern.permute.xlu0 0
      %329 = vperm.xlu0 %328, %v291
      %v330 = vpop.permute.xlu0 %329
      %v332 = vmul.f32 %v268, %v295
      %v333 = vmul.f32 %v269, %v300
      %v334 = vmul.f32 %v270, %v305
      %v335 = vmul.f32 %v271, %v310
      %v336 = vmul.f32 %v272, %v315
      %v337 = vmul.f32 %v273, %v320
      %v338 = vmul.f32 %v274, %v325
      %v339 = vmul.f32 %v275, %v330
      %v340 = vld [vmem:[%s3] sm:$0xff]
      %v341 = vld [vmem:[%s3 + $0x8] sm:$0xff]
      %v342 = vld [vmem:[%s3 + $0x10] sm:$0xff]
      %v343 = vld [vmem:[%s3 + $0x18] sm:$0xff]
      %v344 = vld [vmem:[%s3 + $0x20] sm:$0xff]
      %v345 = vld [vmem:[%s3 + $0x28] sm:$0xff]
      %v346 = vld [vmem:[%s3 + $0x30] sm:$0xff]
      %v347 = vld [vmem:[%s3 + $0x38] sm:$0xff]
      %349 = vset.pattern.permute.xlu0 0
      %350 = vperm.xlu0 %349, %v340
      %v351 = vpop.permute.xlu0 %350
      %354 = vset.pattern.permute.xlu0 0
      %355 = vperm.xlu0 %354, %v341
      %v356 = vpop.permute.xlu0 %355
      %359 = vset.pattern.permute.xlu0 0
      %360 = vperm.xlu0 %359, %v342
      %v361 = vpop.permute.xlu0 %360
      %364 = vset.pattern.permute.xlu0 0
      %365 = vperm.xlu0 %364, %v343
      %v366 = vpop.permute.xlu0 %365
      %369 = vset.pattern.permute.xlu0 0
      %370 = vperm.xlu0 %369, %v344
      %v371 = vpop.permute.xlu0 %370
      %374 = vset.pattern.permute.xlu0 0
      %375 = vperm.xlu0 %374, %v345
      %v376 = vpop.permute.xlu0 %375
      %379 = vset.pattern.permute.xlu0 0
      %380 = vperm.xlu0 %379, %v346
      %v381 = vpop.permute.xlu0 %380
      %384 = vset.pattern.permute.xlu0 0
      %385 = vperm.xlu0 %384, %v347
      %v386 = vpop.permute.xlu0 %385
      %v388 = vadd.f32 %v332, %v351
      %v389 = vadd.f32 %v333, %v356
      %v390 = vadd.f32 %v334, %v361
      %v391 = vadd.f32 %v335, %v366
      %v392 = vadd.f32 %v336, %v371
      %v393 = vadd.f32 %v337, %v376
      %v394 = vadd.f32 %v338, %v381
      %v395 = vadd.f32 %v339, %v386
      %v396 = vmax.f32 %v388, 0.0
      %v397 = vmax.f32 %v389, 0.0
      %v398 = vmax.f32 %v390, 0.0
      %v399 = vmax.f32 %v391, 0.0
      %v400 = vmax.f32 %v392, 0.0
      %v401 = vmax.f32 %v393, 0.0
      %v402 = vmax.f32 %v394, 0.0
      %v403 = vmax.f32 %v395, 0.0
      %v404 = vadd.f32 %v276, %v396
      %v405 = vadd.f32 %v277, %v397
      %v406 = vadd.f32 %v278, %v398
      %v407 = vadd.f32 %v279, %v399
      %v408 = vadd.f32 %v280, %v400
      %v409 = vadd.f32 %v281, %v401
      %v410 = vadd.f32 %v282, %v402
      %v411 = vadd.f32 %v283, %v403
      %412 = vst [vmem:[%s259] sm:$0xff] %v404
      %413 = vst [vmem:[%s259 + $0x8] sm:$0xff] %v405
      %414 = vst [vmem:[%s259 + $0x10] sm:$0xff] %v406
      %415 = vst [vmem:[%s259 + $0x18] sm:$0xff] %v407
      %416 = vst [vmem:[%s259 + $0x20] sm:$0xff] %v408
      %417 = vst [vmem:[%s259 + $0x28] sm:$0xff] %v409
      %418 = vst [vmem:[%s259 + $0x30] sm:$0xff] %v410
      %419 = vst [vmem:[%s259 + $0x38] sm:$0xff] %v411
      %p420 = scmp.lt.s32.totalorder %s19, 1
      %s421 = scalar_select %p420, %s19, 1
      %p422 = scmp.lt.s32.totalorder %s20, 0
      %s423 = scalar_select %p422, %s20, 0
      %s424 = smul.addr %s421, 8
      %s425 = sadd.s32 %s423, %s424
      %s426 = smul.addr %s425, 8
      %s427 = scalar_lea.vmem %s4, %s426
      // Predicated region
      $region37: #{point_transformer_last.15} parent=35 // pred_check
        %p428 = pneg %p145
      $region38: #{point_transformer_last.15} parent=35 // pred_check_branch
        %430 = sbr.rel (%p428) target = $region40
      $region39: #{point_transformer_last.15} parent=35 // pred_region
        _
      $region40: #{point_transformer_last.15} parent=35 // pred_fallthru
        _
    $region36: #{point_transformer_last.15} parent=5 // pred_fallthru
      _
    %p431 = scmp.le.s32.totalorder 2, %s10
    // Predicated region
    $region41: #{point_transformer_last.15} parent=5 // pred_check
      %p432 = pneg %p431
    $region42: #{point_transformer_last.15} parent=5 // pred_check_branch
      %434 = sbr.rel (%p432) target = $region44
    $region43: #{point_transformer_last.15} parent=5 // pred_region
      %s435 = ssub.s32 %s10, 2
      // Predicated region
      $region45: #{point_transformer_last.15} parent=43 // pred_check
        %p436 = pneg %p151
      $region46: #{point_transformer_last.15} parent=43 // pred_check_branch
        %438 = sbr.rel (%p436) target = $region48
      $region47: #{point_transformer_last.15} parent=43 // pred_region
        %p439 = scmp.lt.s32.totalorder %s21, 1
        %s440 = scalar_select %p439, %s21, 1
        %p441 = scmp.lt.s32.totalorder %s22, 0
        %s442 = scalar_select %p441, %s22, 0
        %s443 = smul.addr %s440, 8
        %s444 = sadd.s32 %s442, %s443
        %s445 = smul.addr %s444, 8
        %s446 = scalar_lea.vmem %s4, %s445
      $region48: #{point_transformer_last.15} parent=43 // pred_fallthru
        _
    $region44: #{point_transformer_last.15} parent=5 // pred_fallthru
      _
  $region6: #{point_transformer_last.15} parent=0 // loop_footer
    %s14 = sadd.s32 1, %s10
  $region7: #{point_transformer_last.15} parent=0 // loop_footer_branch
    %9 = sbr.rel target = $region3
  $region8: #{point_transformer_last.15} parent=0 // loop_exit
    _

</llo_original>
